<compile_context>
chip_gen: v7x
topology: tpu7x:2x2x1
jax: 0.10.0
libtpu: 0.0.40
codegen_flags: <defaults>
</compile_context>

<pallas_src>
import functools
import math

import jax
import jax.numpy as jnp
from jax.experimental import pallas as pl
from jax.experimental.pallas import tpu as pltpu

LANE = 128          # lane-dense padded feature width
NUM_LAYERS = 14


# ----------------------------- Fused Pallas kernel -----------------------------

def _graph_resnet_kernel(feat_ref, feat_res_ref, adj_ref, w_hbm_ref, b_ref,
                         coords_ref, feat_out_ref, w_buf, w_sem):
    adj = adj_ref[...]                    # [N, N] bf16 (MXU operand)
    feat = feat_ref[...]                  # [N, LANE] f32, zero-padded input features
    feat_res = feat_res_ref[...]          # [N, LANE] f32, features[:, :hidden] pre-masked

    def start_fetch(layer, slot):
        cp = pltpu.make_async_copy(w_hbm_ref.at[layer], w_buf.at[slot], w_sem.at[slot])
        cp.start()
        return cp

    pending = {"cp": start_fetch(0, 0)}   # prime slot 0 with layer 0's weights

    def run_layer(x_f32, layer, relu):
        slot = layer & 1
        # Prefetch next layer's W into the other slot before blocking on this one.
        nxt = start_fetch(layer + 1, 1 - slot) if layer + 1 < NUM_LAYERS else None
        pending["cp"].wait()
        pending["cp"] = nxt
        w = w_buf[slot]                   # [LANE, LANE] bf16, zero-padded
        b = b_ref[layer]                  # [1, LANE]    f32,  zero-padded
        support = jnp.dot(x_f32.astype(jnp.bfloat16), w,
                          preferred_element_type=jnp.float32)
        out = jnp.dot(adj, support.astype(jnp.bfloat16),
                      preferred_element_type=jnp.float32)
        out = out + b
        return jnp.maximum(out, 0.0) if relu else out

    x = run_layer(feat, 0, True)
    x = run_layer(x, 1, True)
    feat = (feat_res + x) * 0.5

    for layer in (2, 4, 6, 8, 10):
        x = run_layer(feat, layer, True)
        x = run_layer(x, layer + 1, True)
        feat = (feat + x) * 0.5

    x = run_layer(feat, 12, True)
    feat = (feat + x) * 0.5

    coords = run_layer(feat, 13, False)

    coords_ref[...] = coords.astype(coords_ref.dtype)
    feat_out_ref[...] = feat.astype(feat_out_ref.dtype)


# ----------------------------- Parameter setup -----------------------------

def init_params(key, input_features, hidden, output_features):
    """Deterministic init mimicking SimpleGCN.reset_parameters
    (uniform(-stdv, stdv) with stdv = 1/sqrt(out_features))."""
    dims = [(input_features, hidden)] + [(hidden, hidden)] * 12 + [(hidden, output_features)]
    params = []
    for (fin, fout) in dims:
        key, kw, kb = jax.random.split(key, 3)
        stdv = 1.0 / math.sqrt(fout)
        w = jax.random.uniform(kw, (fin, fout), jnp.float32, -stdv, stdv)
        b = jax.random.uniform(kb, (1, fout), jnp.float32, -stdv, stdv)
        params.append((w, b))
    return params


def stack_params(params):
    """Zero-pad every layer's (W, b) to lane-dense [LANE, LANE] / [1, LANE] and stack
    along a leading layer axis. W is stored bf16 (MXU operand, halves HBM bytes);
    b stays f32 (VPU bias add, tiny and VMEM-resident)."""
    w_stack = jnp.zeros((NUM_LAYERS, LANE, LANE), jnp.float32)
    b_stack = jnp.zeros((NUM_LAYERS, 1, LANE), jnp.float32)
    for l, (w, b) in enumerate(params):
        fin, fout = w.shape
        assert fin <= LANE and fout <= LANE
        w_stack = w_stack.at[l, :fin, :fout].set(w)
        b_stack = b_stack.at[l, :, :fout].set(b)
    return w_stack.astype(jnp.bfloat16), b_stack


# ----------------------------- Forward pass -----------------------------

@functools.partial(jax.jit, static_argnames=("hidden", "output_features"))
def graph_resnet_forward(features, adj, w_stack_bf16, b_stack, *, hidden, output_features):
    """Replicates GraphResNet.forward. Returns (coords [N,out], features [N,hidden])."""
    n, fin = features.shape
    assert fin >= hidden, "GraphResNet.forward slices features[..., :hidden]"

    feat_pad = jnp.zeros((n, LANE), jnp.float32).at[:, :fin].set(features)
    # Pre-masked copy for the first residual (features[..., :hidden]) — wrapper-side
    # layout plumbing so the kernel has no iota/select.
    feat_res_pad = jnp.zeros((n, LANE), jnp.float32).at[:, :hidden].set(features[:, :hidden])
    adj_bf16 = adj.astype(jnp.bfloat16)

    flops = 2 * (2 * NUM_LAYERS) * n * LANE * LANE          # 28 matmuls on padded tiles
    bytes_accessed = (feat_pad.size * 4 + feat_res_pad.size * 4 + adj_bf16.size * 2
                      + w_stack_bf16.size * 2 + b_stack.size * 4 + 2 * n * LANE * 4)

    vmem = pl.BlockSpec(memory_space=pltpu.MemorySpace.VMEM)
    hbm = pl.BlockSpec(memory_space=pl.ANY)                  # weights stay in HBM; manual DMA
    coords_pad, feat_out_pad = pl.pallas_call(
        _graph_resnet_kernel,
        out_shape=(jax.ShapeDtypeStruct((n, LANE), jnp.float32),
                   jax.ShapeDtypeStruct((n, LANE), jnp.float32)),
        in_specs=[vmem, vmem, vmem, hbm, vmem],
        out_specs=(vmem, vmem),
        scratch_shapes=[pltpu.VMEM((2, LANE, LANE), jnp.bfloat16),   # double-buffered W
                        pltpu.SemaphoreType.DMA((2,))],
        cost_estimate=pl.CostEstimate(flops=flops, transcendentals=0,
                                      bytes_accessed=bytes_accessed),
        compiler_params=pltpu.CompilerParams(vmem_limit_bytes=32 * 1024 * 1024),
    )(feat_pad, feat_res_pad, adj_bf16, w_stack_bf16, b_stack)

    return coords_pad[:, :output_features], feat_out_pad[:, :hidden]


# ----------------------------- Reference (pure JAX) -----------------------------

def _gcn_ref(x, adj, w, b, relu, mxu_dtype):
    if mxu_dtype is None:
        out = adj @ (x @ w) + b
    else:
        xw = jnp.dot(x.astype(mxu_dtype), w.astype(mxu_dtype),
                     preferred_element_type=jnp.float32)
        out = jnp.dot(adj.astype(mxu_dtype), xw.astype(mxu_dtype),
                      preferred_element_type=jnp.float32) + b
    return jnp.maximum(out, 0.0) if relu else out


def graph_resnet_ref(features, adj, params, hidden, mxu_dtype=None):
    def gcn(x, i, relu):
        w, b = params[i]
        return _gcn_ref(x, adj, w, b, relu, mxu_dtype)

    x = gcn(features, 0, True)
    x = gcn(x, 1, True)
    features = (features[..., :hidden] + x) / 2.0
    for i in (2, 4, 6, 8, 10):
        x = gcn(features, i, True)
        x = gcn(x, i + 1, True)
        features = (features + x) / 2.0
    x = gcn(features, 12, True)
    features = (features + x) / 2.0
    coords = gcn(features, 13, False)
    return coords, features


# ----------------------------- Main -----------------------------

if __name__ == "__main__":
    N = 64                 # number of graph nodes
    INPUT_FEATURES = 64    # must be >= HIDDEN (forward slices features[..., :hidden])
    HIDDEN = 32
    OUTPUT_FEATURES = 3

    key = jax.random.PRNGKey(0)
    k_feat, k_adj, k_params = jax.random.split(key, 3)

    features = jax.random.normal(k_feat, (N, INPUT_FEATURES), jnp.float32)
    # symmetric, row-normalized dense adjacency (stand-in for torch.spmm's sparse adj)
    a = jax.random.uniform(k_adj, (N, N), jnp.float32)
    a = (a + a.T) * 0.5 + jnp.eye(N, dtype=jnp.float32)
    adj = a / jnp.sum(a, axis=-1, keepdims=True)

    params = init_params(k_params, INPUT_FEATURES, HIDDEN, OUTPUT_FEATURES)
    w_stack_bf16, b_stack = stack_params(params)

    coords, feats_out = graph_resnet_forward(
        features, adj, w_stack_bf16, b_stack,
        hidden=HIDDEN, output_features=OUTPUT_FEATURES)
    coords = jax.block_until_ready(coords)
    feats_out = jax.block_until_ready(feats_out)

    assert coords.shape == (N, OUTPUT_FEATURES)
    assert feats_out.shape == (N, HIDDEN)

    # Tight check against a reference that applies the same bf16 MXU-operand casts.
    coords_bf, feats_bf = graph_resnet_ref(features, adj, params, HIDDEN,
                                           mxu_dtype=jnp.bfloat16)
    assert jnp.allclose(coords, coords_bf, atol=2e-3, rtol=2e-3)
    assert jnp.allclose(feats_out, feats_bf, atol=2e-3, rtol=2e-3)

    # Loose check against the exact-f32 reference (difference = bf16 operand rounding).
    coords_f32, feats_f32 = graph_resnet_ref(features, adj, params, HIDDEN, mxu_dtype=None)
    assert jnp.allclose(coords, coords_f32, atol=5e-2, rtol=5e-2)
    assert jnp.allclose(feats_out, feats_f32, atol=5e-2, rtol=5e-2)

    print("KERNEL_OK")
</pallas_src>

<mosaic_0001>
module attributes {stable_mosaic.version = 11 : i64} {
  func.func @_graph_resnet_kernel(%arg0: memref<64x128xf32, #tpu.memory_space<vmem>>, %arg1: memref<64x128xf32, #tpu.memory_space<vmem>>, %arg2: memref<64x64xbf16, #tpu.memory_space<vmem>>, %arg3: memref<14x128x128xbf16, #tpu.memory_space<any>>, %arg4: memref<14x1x128xf32, #tpu.memory_space<vmem>>, %arg5: memref<64x128xf32, #tpu.memory_space<vmem>>, %arg6: memref<64x128xf32, #tpu.memory_space<vmem>>, %arg7: memref<2x128x128xbf16, #tpu.memory_space<vmem>>, %arg8: memref<2x!tpu.dma_semaphore, #tpu.memory_space<semaphore_mem>>) attributes {dimension_semantics = [], scalar_prefetch = 0 : i64, scratch_operands = 2 : i64, tpu.core_type = #tpu.core_type<tc>} {
    %c0 = arith.constant 0 : index
    %c0_0 = arith.constant 0 : index
    %0 = vector.load %arg2[%c0, %c0_0] : memref<64x64xbf16, #tpu.memory_space<vmem>>, vector<64x64xbf16>
    %c0_1 = arith.constant 0 : index
    %c0_2 = arith.constant 0 : index
    %1 = vector.load %arg0[%c0_1, %c0_2] : memref<64x128xf32, #tpu.memory_space<vmem>>, vector<64x128xf32>
    %c0_3 = arith.constant 0 : index
    %c0_4 = arith.constant 0 : index
    %2 = vector.load %arg1[%c0_3, %c0_4] : memref<64x128xf32, #tpu.memory_space<vmem>>, vector<64x128xf32>
    %c0_i32 = arith.constant 0 : i32
    %c0_i32_5 = arith.constant 0 : i32
    %c0_i32_6 = arith.constant 0 : i32
    %c0_i32_7 = arith.constant 0 : i32
    %c0_i32_8 = arith.constant 0 : i32
    %3 = tpu.memref_slice %arg3[%c0_i32, %c0_i32_7, %c0_i32_8] : memref<14x128x128xbf16, #tpu.memory_space<any>> -> memref<1x128x128xbf16, #tpu.memory_space<any>>
    %4 = tpu.memref_squeeze %3 : memref<1x128x128xbf16, #tpu.memory_space<any>> -> memref<128x128xbf16, #tpu.memory_space<any>>
    %c0_i32_9 = arith.constant 0 : i32
    %c0_i32_10 = arith.constant 0 : i32
    %5 = tpu.memref_slice %arg7[%c0_i32_5, %c0_i32_9, %c0_i32_10] : memref<2x128x128xbf16, #tpu.memory_space<vmem>> -> memref<1x128x128xbf16, #tpu.memory_space<vmem>>
    %6 = tpu.memref_squeeze %5 : memref<1x128x128xbf16, #tpu.memory_space<vmem>> -> memref<128x128xbf16, #tpu.memory_space<vmem>>
    %7 = tpu.memref_slice %arg8[%c0_i32_6] : memref<2x!tpu.dma_semaphore, #tpu.memory_space<semaphore_mem>> -> memref<1x!tpu.dma_semaphore, #tpu.memory_space<semaphore_mem>>
    %8 = tpu.memref_squeeze %7 : memref<1x!tpu.dma_semaphore, #tpu.memory_space<semaphore_mem>> -> memref<!tpu.dma_semaphore, #tpu.memory_space<semaphore_mem>>
    tpu.enqueue_dma source(%4 : memref<128x128xbf16, #tpu.memory_space<any>>) target(%6 : memref<128x128xbf16, #tpu.memory_space<vmem>>) target_semaphore(%8 : memref<!tpu.dma_semaphore, #tpu.memory_space<semaphore_mem>>)
    %c1_i32 = arith.constant 1 : i32
    %c1_i32_11 = arith.constant 1 : i32
    %c1_i32_12 = arith.constant 1 : i32
    %c0_i32_13 = arith.constant 0 : i32
    %c0_i32_14 = arith.constant 0 : i32
    %9 = tpu.memref_slice %arg3[%c1_i32, %c0_i32_13, %c0_i32_14] : memref<14x128x128xbf16, #tpu.memory_space<any>> -> memref<1x128x128xbf16, #tpu.memory_space<any>>
    %10 = tpu.memref_squeeze %9 : memref<1x128x128xbf16, #tpu.memory_space<any>> -> memref<128x128xbf16, #tpu.memory_space<any>>
    %c0_i32_15 = arith.constant 0 : i32
    %c0_i32_16 = arith.constant 0 : i32
    %11 = tpu.memref_slice %arg7[%c1_i32_11, %c0_i32_15, %c0_i32_16] : memref<2x128x128xbf16, #tpu.memory_space<vmem>> -> memref<1x128x128xbf16, #tpu.memory_space<vmem>>
    %12 = tpu.memref_squeeze %11 : memref<1x128x128xbf16, #tpu.memory_space<vmem>> -> memref<128x128xbf16, #tpu.memory_space<vmem>>
    %13 = tpu.memref_slice %arg8[%c1_i32_12] : memref<2x!tpu.dma_semaphore, #tpu.memory_space<semaphore_mem>> -> memref<1x!tpu.dma_semaphore, #tpu.memory_space<semaphore_mem>>
    %14 = tpu.memref_squeeze %13 : memref<1x!tpu.dma_semaphore, #tpu.memory_space<semaphore_mem>> -> memref<!tpu.dma_semaphore, #tpu.memory_space<semaphore_mem>>
    tpu.enqueue_dma source(%10 : memref<128x128xbf16, #tpu.memory_space<any>>) target(%12 : memref<128x128xbf16, #tpu.memory_space<vmem>>) target_semaphore(%14 : memref<!tpu.dma_semaphore, #tpu.memory_space<semaphore_mem>>)
    %c0_i32_17 = arith.constant 0 : i32
    %c0_i32_18 = arith.constant 0 : i32
    %c0_i32_19 = arith.constant 0 : i32
    %c0_i32_20 = arith.constant 0 : i32
    %c0_i32_21 = arith.constant 0 : i32
    %15 = tpu.memref_slice %arg3[%c0_i32_17, %c0_i32_20, %c0_i32_21] : memref<14x128x128xbf16, #tpu.memory_space<any>> -> memref<1x128x128xbf16, #tpu.memory_space<any>>
    %16 = tpu.memref_squeeze %15 : memref<1x128x128xbf16, #tpu.memory_space<any>> -> memref<128x128xbf16, #tpu.memory_space<any>>
    %c0_i32_22 = arith.constant 0 : i32
    %c0_i32_23 = arith.constant 0 : i32
    %17 = tpu.memref_slice %arg7[%c0_i32_18, %c0_i32_22, %c0_i32_23] : memref<2x128x128xbf16, #tpu.memory_space<vmem>> -> memref<1x128x128xbf16, #tpu.memory_space<vmem>>
    %18 = tpu.memref_squeeze %17 : memref<1x128x128xbf16, #tpu.memory_space<vmem>> -> memref<128x128xbf16, #tpu.memory_space<vmem>>
    %19 = tpu.memref_slice %arg8[%c0_i32_19] : memref<2x!tpu.dma_semaphore, #tpu.memory_space<semaphore_mem>> -> memref<1x!tpu.dma_semaphore, #tpu.memory_space<semaphore_mem>>
    %20 = tpu.memref_squeeze %19 : memref<1x!tpu.dma_semaphore, #tpu.memory_space<semaphore_mem>> -> memref<!tpu.dma_semaphore, #tpu.memory_space<semaphore_mem>>
    tpu.wait_dma2 semaphore(%20 : memref<!tpu.dma_semaphore, #tpu.memory_space<semaphore_mem>>) src(%16 : memref<128x128xbf16, #tpu.memory_space<any>>) dst(%18 : memref<128x128xbf16, #tpu.memory_space<vmem>>)
    %c0_24 = arith.constant 0 : index
    %c0_25 = arith.constant 0 : index
    %c0_26 = arith.constant 0 : index
    %21 = vector.load %arg7[%c0_24, %c0_25, %c0_26] : memref<2x128x128xbf16, #tpu.memory_space<vmem>>, vector<1x128x128xbf16>
    %22 = vector.shape_cast %21 : vector<1x128x128xbf16> to vector<128x128xbf16>
    %c0_27 = arith.constant 0 : index
    %c0_28 = arith.constant 0 : index
    %c0_29 = arith.constant 0 : index
    %23 = vector.load %arg4[%c0_27, %c0_28, %c0_29] : memref<14x1x128xf32, #tpu.memory_space<vmem>>, vector<1x1x128xf32>
    %24 = vector.shape_cast %23 : vector<1x1x128xf32> to vector<1x128xf32>
    %25 = arith.truncf %1 : vector<64x128xf32> to vector<64x128xbf16>
    %cst = arith.constant dense<0.000000e+00> : vector<64x128xf32>
    %26 = tpu.matmul %25, %22, %cst {dimension_numbers = #tpu.dot_dimension_numbers<[1], [0], [0], [1], [0, 0, 1, 1], [], []>} : vector<64x128xbf16>, vector<128x128xbf16>, vector<64x128xf32> -> vector<64x128xf32>
    %27 = arith.truncf %26 : vector<64x128xf32> to vector<64x128xbf16>
    %cst_30 = arith.constant dense<0.000000e+00> : vector<64x128xf32>
    %28 = tpu.matmul %0, %27, %cst_30 {dimension_numbers = #tpu.dot_dimension_numbers<[1], [0], [0], [1], [0, 0, 1, 1], [], []>} : vector<64x64xbf16>, vector<64x128xbf16>, vector<64x128xf32> -> vector<64x128xf32>
    %29 = vector.broadcast %24 : vector<1x128xf32> to vector<64x128xf32>
    %30 = arith.addf %28, %29 : vector<64x128xf32>
    %cst_31 = arith.constant 0.000000e+00 : f32
    %31 = vector.broadcast %cst_31 : f32 to vector<64x128xf32>
    %32 = arith.maximumf %30, %31 : vector<64x128xf32>
    %c2_i32 = arith.constant 2 : i32
    %c0_i32_32 = arith.constant 0 : i32
    %c0_i32_33 = arith.constant 0 : i32
    %c0_i32_34 = arith.constant 0 : i32
    %c0_i32_35 = arith.constant 0 : i32
    %33 = tpu.memref_slice %arg3[%c2_i32, %c0_i32_34, %c0_i32_35] : memref<14x128x128xbf16, #tpu.memory_space<any>> -> memref<1x128x128xbf16, #tpu.memory_space<any>>
    %34 = tpu.memref_squeeze %33 : memref<1x128x128xbf16, #tpu.memory_space<any>> -> memref<128x128xbf16, #tpu.memory_space<any>>
    %c0_i32_36 = arith.constant 0 : i32
    %c0_i32_37 = arith.constant 0 : i32
    %35 = tpu.memref_slice %arg7[%c0_i32_32, %c0_i32_36, %c0_i32_37] : memref<2x128x128xbf16, #tpu.memory_space<vmem>> -> memref<1x128x128xbf16, #tpu.memory_space<vmem>>
    %36 = tpu.memref_squeeze %35 : memref<1x128x128xbf16, #tpu.memory_space<vmem>> -> memref<128x128xbf16, #tpu.memory_space<vmem>>
    %37 = tpu.memref_slice %arg8[%c0_i32_33] : memref<2x!tpu.dma_semaphore, #tpu.memory_space<semaphore_mem>> -> memref<1x!tpu.dma_semaphore, #tpu.memory_space<semaphore_mem>>
    %38 = tpu.memref_squeeze %37 : memref<1x!tpu.dma_semaphore, #tpu.memory_space<semaphore_mem>> -> memref<!tpu.dma_semaphore, #tpu.memory_space<semaphore_mem>>
    tpu.enqueue_dma source(%34 : memref<128x128xbf16, #tpu.memory_space<any>>) target(%36 : memref<128x128xbf16, #tpu.memory_space<vmem>>) target_semaphore(%38 : memref<!tpu.dma_semaphore, #tpu.memory_space<semaphore_mem>>)
    %c1_i32_38 = arith.constant 1 : i32
    %c1_i32_39 = arith.constant 1 : i32
    %c1_i32_40 = arith.constant 1 : i32
    %c0_i32_41 = arith.constant 0 : i32
    %c0_i32_42 = arith.constant 0 : i32
    %39 = tpu.memref_slice %arg3[%c1_i32_38, %c0_i32_41, %c0_i32_42] : memref<14x128x128xbf16, #tpu.memory_space<any>> -> memref<1x128x128xbf16, #tpu.memory_space<any>>
    %40 = tpu.memref_squeeze %39 : memref<1x128x128xbf16, #tpu.memory_space<any>> -> memref<128x128xbf16, #tpu.memory_space<any>>
    %c0_i32_43 = arith.constant 0 : i32
    %c0_i32_44 = arith.constant 0 : i32
    %41 = tpu.memref_slice %arg7[%c1_i32_39, %c0_i32_43, %c0_i32_44] : memref<2x128x128xbf16, #tpu.memory_space<vmem>> -> memref<1x128x128xbf16, #tpu.memory_space<vmem>>
    %42 = tpu.memref_squeeze %41 : memref<1x128x128xbf16, #tpu.memory_space<vmem>> -> memref<128x128xbf16, #tpu.memory_space<vmem>>
    %43 = tpu.memref_slice %arg8[%c1_i32_40] : memref<2x!tpu.dma_semaphore, #tpu.memory_space<semaphore_mem>> -> memref<1x!tpu.dma_semaphore, #tpu.memory_space<semaphore_mem>>
    %44 = tpu.memref_squeeze %43 : memref<1x!tpu.dma_semaphore, #tpu.memory_space<semaphore_mem>> -> memref<!tpu.dma_semaphore, #tpu.memory_space<semaphore_mem>>
    tpu.wait_dma2 semaphore(%44 : memref<!tpu.dma_semaphore, #tpu.memory_space<semaphore_mem>>) src(%40 : memref<128x128xbf16, #tpu.memory_space<any>>) dst(%42 : memref<128x128xbf16, #tpu.memory_space<vmem>>)
    %c1 = arith.constant 1 : index
    %c0_45 = arith.constant 0 : index
    %c0_46 = arith.constant 0 : index
    %45 = vector.load %arg7[%c1, %c0_45, %c0_46] : memref<2x128x128xbf16, #tpu.memory_space<vmem>>, vector<1x128x128xbf16>
    %46 = vector.shape_cast %45 : vector<1x128x128xbf16> to vector<128x128xbf16>
    %c1_47 = arith.constant 1 : index
    %c0_48 = arith.constant 0 : index
    %c0_49 = arith.constant 0 : index
    %47 = vector.load %arg4[%c1_47, %c0_48, %c0_49] : memref<14x1x128xf32, #tpu.memory_space<vmem>>, vector<1x1x128xf32>
    %48 = vector.shape_cast %47 : vector<1x1x128xf32> to vector<1x128xf32>
    %49 = arith.truncf %32 : vector<64x128xf32> to vector<64x128xbf16>
    %cst_50 = arith.constant dense<0.000000e+00> : vector<64x128xf32>
    %50 = tpu.matmul %49, %46, %cst_50 {dimension_numbers = #tpu.dot_dimension_numbers<[1], [0], [0], [1], [0, 0, 1, 1], [], []>} : vector<64x128xbf16>, vector<128x128xbf16>, vector<64x128xf32> -> vector<64x128xf32>
    %51 = arith.truncf %50 : vector<64x128xf32> to vector<64x128xbf16>
    %cst_51 = arith.constant dense<0.000000e+00> : vector<64x128xf32>
    %52 = tpu.matmul %0, %51, %cst_51 {dimension_numbers = #tpu.dot_dimension_numbers<[1], [0], [0], [1], [0, 0, 1, 1], [], []>} : vector<64x64xbf16>, vector<64x128xbf16>, vector<64x128xf32> -> vector<64x128xf32>
    %53 = vector.broadcast %48 : vector<1x128xf32> to vector<64x128xf32>
    %54 = arith.addf %52, %53 : vector<64x128xf32>
    %cst_52 = arith.constant 0.000000e+00 : f32
    %55 = vector.broadcast %cst_52 : f32 to vector<64x128xf32>
    %56 = arith.maximumf %54, %55 : vector<64x128xf32>
    %57 = arith.addf %2, %56 : vector<64x128xf32>
    %cst_53 = arith.constant 5.000000e-01 : f32
    %58 = vector.broadcast %cst_53 : f32 to vector<64x128xf32>
    %59 = arith.mulf %57, %58 : vector<64x128xf32>
    %c3_i32 = arith.constant 3 : i32
    %c1_i32_54 = arith.constant 1 : i32
    %c1_i32_55 = arith.constant 1 : i32
    %c0_i32_56 = arith.constant 0 : i32
    %c0_i32_57 = arith.constant 0 : i32
    %60 = tpu.memref_slice %arg3[%c3_i32, %c0_i32_56, %c0_i32_57] : memref<14x128x128xbf16, #tpu.memory_space<any>> -> memref<1x128x128xbf16, #tpu.memory_space<any>>
    %61 = tpu.memref_squeeze %60 : memref<1x128x128xbf16, #tpu.memory_space<any>> -> memref<128x128xbf16, #tpu.memory_space<any>>
    %c0_i32_58 = arith.constant 0 : i32
    %c0_i32_59 = arith.constant 0 : i32
    %62 = tpu.memref_slice %arg7[%c1_i32_54, %c0_i32_58, %c0_i32_59] : memref<2x128x128xbf16, #tpu.memory_space<vmem>> -> memref<1x128x128xbf16, #tpu.memory_space<vmem>>
    %63 = tpu.memref_squeeze %62 : memref<1x128x128xbf16, #tpu.memory_space<vmem>> -> memref<128x128xbf16, #tpu.memory_space<vmem>>
    %64 = tpu.memref_slice %arg8[%c1_i32_55] : memref<2x!tpu.dma_semaphore, #tpu.memory_space<semaphore_mem>> -> memref<1x!tpu.dma_semaphore, #tpu.memory_space<semaphore_mem>>
    %65 = tpu.memref_squeeze %64 : memref<1x!tpu.dma_semaphore, #tpu.memory_space<semaphore_mem>> -> memref<!tpu.dma_semaphore, #tpu.memory_space<semaphore_mem>>
    tpu.enqueue_dma source(%61 : memref<128x128xbf16, #tpu.memory_space<any>>) target(%63 : memref<128x128xbf16, #tpu.memory_space<vmem>>) target_semaphore(%65 : memref<!tpu.dma_semaphore, #tpu.memory_space<semaphore_mem>>)
    %c2_i32_60 = arith.constant 2 : i32
    %c0_i32_61 = arith.constant 0 : i32
    %c0_i32_62 = arith.constant 0 : i32
    %c0_i32_63 = arith.constant 0 : i32
    %c0_i32_64 = arith.constant 0 : i32
    %66 = tpu.memref_slice %arg3[%c2_i32_60, %c0_i32_63, %c0_i32_64] : memref<14x128x128xbf16, #tpu.memory_space<any>> -> memref<1x128x128xbf16, #tpu.memory_space<any>>
    %67 = tpu.memref_squeeze %66 : memref<1x128x128xbf16, #tpu.memory_space<any>> -> memref<128x128xbf16, #tpu.memory_space<any>>
    %c0_i32_65 = arith.constant 0 : i32
    %c0_i32_66 = arith.constant 0 : i32
    %68 = tpu.memref_slice %arg7[%c0_i32_61, %c0_i32_65, %c0_i32_66] : memref<2x128x128xbf16, #tpu.memory_space<vmem>> -> memref<1x128x128xbf16, #tpu.memory_space<vmem>>
    %69 = tpu.memref_squeeze %68 : memref<1x128x128xbf16, #tpu.memory_space<vmem>> -> memref<128x128xbf16, #tpu.memory_space<vmem>>
    %70 = tpu.memref_slice %arg8[%c0_i32_62] : memref<2x!tpu.dma_semaphore, #tpu.memory_space<semaphore_mem>> -> memref<1x!tpu.dma_semaphore, #tpu.memory_space<semaphore_mem>>
    %71 = tpu.memref_squeeze %70 : memref<1x!tpu.dma_semaphore, #tpu.memory_space<semaphore_mem>> -> memref<!tpu.dma_semaphore, #tpu.memory_space<semaphore_mem>>
    tpu.wait_dma2 semaphore(%71 : memref<!tpu.dma_semaphore, #tpu.memory_space<semaphore_mem>>) src(%67 : memref<128x128xbf16, #tpu.memory_space<any>>) dst(%69 : memref<128x128xbf16, #tpu.memory_space<vmem>>)
    %c0_67 = arith.constant 0 : index
    %c0_68 = arith.constant 0 : index
    %c0_69 = arith.constant 0 : index
    %72 = vector.load %arg7[%c0_67, %c0_68, %c0_69] : memref<2x128x128xbf16, #tpu.memory_space<vmem>>, vector<1x128x128xbf16>
    %73 = vector.shape_cast %72 : vector<1x128x128xbf16> to vector<128x128xbf16>
    %c2 = arith.constant 2 : index
    %c0_70 = arith.constant 0 : index
    %c0_71 = arith.constant 0 : index
    %74 = vector.load %arg4[%c2, %c0_70, %c0_71] : memref<14x1x128xf32, #tpu.memory_space<vmem>>, vector<1x1x128xf32>
    %75 = vector.shape_cast %74 : vector<1x1x128xf32> to vector<1x128xf32>
    %76 = arith.truncf %59 : vector<64x128xf32> to vector<64x128xbf16>
    %cst_72 = arith.constant dense<0.000000e+00> : vector<64x128xf32>
    %77 = tpu.matmul %76, %73, %cst_72 {dimension_numbers = #tpu.dot_dimension_numbers<[1], [0], [0], [1], [0, 0, 1, 1], [], []>} : vector<64x128xbf16>, vector<128x128xbf16>, vector<64x128xf32> -> vector<64x128xf32>
    %78 = arith.truncf %77 : vector<64x128xf32> to vector<64x128xbf16>
    %cst_73 = arith.constant dense<0.000000e+00> : vector<64x128xf32>
    %79 = tpu.matmul %0, %78, %cst_73 {dimension_numbers = #tpu.dot_dimension_numbers<[1], [0], [0], [1], [0, 0, 1, 1], [], []>} : vector<64x64xbf16>, vector<64x128xbf16>, vector<64x128xf32> -> vector<64x128xf32>
    %80 = vector.broadcast %75 : vector<1x128xf32> to vector<64x128xf32>
    %81 = arith.addf %79, %80 : vector<64x128xf32>
    %cst_74 = arith.constant 0.000000e+00 : f32
    %82 = vector.broadcast %cst_74 : f32 to vector<64x128xf32>
    %83 = arith.maximumf %81, %82 : vector<64x128xf32>
    %c4_i32 = arith.constant 4 : i32
    %c0_i32_75 = arith.constant 0 : i32
    %c0_i32_76 = arith.constant 0 : i32
    %c0_i32_77 = arith.constant 0 : i32
    %c0_i32_78 = arith.constant 0 : i32
    %84 = tpu.memref_slice %arg3[%c4_i32, %c0_i32_77, %c0_i32_78] : memref<14x128x128xbf16, #tpu.memory_space<any>> -> memref<1x128x128xbf16, #tpu.memory_space<any>>
    %85 = tpu.memref_squeeze %84 : memref<1x128x128xbf16, #tpu.memory_space<any>> -> memref<128x128xbf16, #tpu.memory_space<any>>
    %c0_i32_79 = arith.constant 0 : i32
    %c0_i32_80 = arith.constant 0 : i32
    %86 = tpu.memref_slice %arg7[%c0_i32_75, %c0_i32_79, %c0_i32_80] : memref<2x128x128xbf16, #tpu.memory_space<vmem>> -> memref<1x128x128xbf16, #tpu.memory_space<vmem>>
    %87 = tpu.memref_squeeze %86 : memref<1x128x128xbf16, #tpu.memory_space<vmem>> -> memref<128x128xbf16, #tpu.memory_space<vmem>>
    %88 = tpu.memref_slice %arg8[%c0_i32_76] : memref<2x!tpu.dma_semaphore, #tpu.memory_space<semaphore_mem>> -> memref<1x!tpu.dma_semaphore, #tpu.memory_space<semaphore_mem>>
    %89 = tpu.memref_squeeze %88 : memref<1x!tpu.dma_semaphore, #tpu.memory_space<semaphore_mem>> -> memref<!tpu.dma_semaphore, #tpu.memory_space<semaphore_mem>>
    tpu.enqueue_dma source(%85 : memref<128x128xbf16, #tpu.memory_space<any>>) target(%87 : memref<128x128xbf16, #tpu.memory_space<vmem>>) target_semaphore(%89 : memref<!tpu.dma_semaphore, #tpu.memory_space<semaphore_mem>>)
    %c3_i32_81 = arith.constant 3 : i32
    %c1_i32_82 = arith.constant 1 : i32
    %c1_i32_83 = arith.constant 1 : i32
    %c0_i32_84 = arith.constant 0 : i32
    %c0_i32_85 = arith.constant 0 : i32
    %90 = tpu.memref_slice %arg3[%c3_i32_81, %c0_i32_84, %c0_i32_85] : memref<14x128x128xbf16, #tpu.memory_space<any>> -> memref<1x128x128xbf16, #tpu.memory_space<any>>
    %91 = tpu.memref_squeeze %90 : memref<1x128x128xbf16, #tpu.memory_space<any>> -> memref<128x128xbf16, #tpu.memory_space<any>>
    %c0_i32_86 = arith.constant 0 : i32
    %c0_i32_87 = arith.constant 0 : i32
    %92 = tpu.memref_slice %arg7[%c1_i32_82, %c0_i32_86, %c0_i32_87] : memref<2x128x128xbf16, #tpu.memory_space<vmem>> -> memref<1x128x128xbf16, #tpu.memory_space<vmem>>
    %93 = tpu.memref_squeeze %92 : memref<1x128x128xbf16, #tpu.memory_space<vmem>> -> memref<128x128xbf16, #tpu.memory_space<vmem>>
    %94 = tpu.memref_slice %arg8[%c1_i32_83] : memref<2x!tpu.dma_semaphore, #tpu.memory_space<semaphore_mem>> -> memref<1x!tpu.dma_semaphore, #tpu.memory_space<semaphore_mem>>
    %95 = tpu.memref_squeeze %94 : memref<1x!tpu.dma_semaphore, #tpu.memory_space<semaphore_mem>> -> memref<!tpu.dma_semaphore, #tpu.memory_space<semaphore_mem>>
    tpu.wait_dma2 semaphore(%95 : memref<!tpu.dma_semaphore, #tpu.memory_space<semaphore_mem>>) src(%91 : memref<128x128xbf16, #tpu.memory_space<any>>) dst(%93 : memref<128x128xbf16, #tpu.memory_space<vmem>>)
    %c1_88 = arith.constant 1 : index
    %c0_89 = arith.constant 0 : index
    %c0_90 = arith.constant 0 : index
    %96 = vector.load %arg7[%c1_88, %c0_89, %c0_90] : memref<2x128x128xbf16, #tpu.memory_space<vmem>>, vector<1x128x128xbf16>
    %97 = vector.shape_cast %96 : vector<1x128x128xbf16> to vector<128x128xbf16>
    %c3 = arith.constant 3 : index
    %c0_91 = arith.constant 0 : index
    %c0_92 = arith.constant 0 : index
    %98 = vector.load %arg4[%c3, %c0_91, %c0_92] : memref<14x1x128xf32, #tpu.memory_space<vmem>>, vector<1x1x128xf32>
    %99 = vector.shape_cast %98 : vector<1x1x128xf32> to vector<1x128xf32>
    %100 = arith.truncf %83 : vector<64x128xf32> to vector<64x128xbf16>
    %cst_93 = arith.constant dense<0.000000e+00> : vector<64x128xf32>
    %101 = tpu.matmul %100, %97, %cst_93 {dimension_numbers = #tpu.dot_dimension_numbers<[1], [0], [0], [1], [0, 0, 1, 1], [], []>} : vector<64x128xbf16>, vector<128x128xbf16>, vector<64x128xf32> -> vector<64x128xf32>
    %102 = arith.truncf %101 : vector<64x128xf32> to vector<64x128xbf16>
    %cst_94 = arith.constant dense<0.000000e+00> : vector<64x128xf32>
    %103 = tpu.matmul %0, %102, %cst_94 {dimension_numbers = #tpu.dot_dimension_numbers<[1], [0], [0], [1], [0, 0, 1, 1], [], []>} : vector<64x64xbf16>, vector<64x128xbf16>, vector<64x128xf32> -> vector<64x128xf32>
    %104 = vector.broadcast %99 : vector<1x128xf32> to vector<64x128xf32>
    %105 = arith.addf %103, %104 : vector<64x128xf32>
    %cst_95 = arith.constant 0.000000e+00 : f32
    %106 = vector.broadcast %cst_95 : f32 to vector<64x128xf32>
    %107 = arith.maximumf %105, %106 : vector<64x128xf32>
    %108 = arith.addf %59, %107 : vector<64x128xf32>
    %cst_96 = arith.constant 5.000000e-01 : f32
    %109 = vector.broadcast %cst_96 : f32 to vector<64x128xf32>
    %110 = arith.mulf %108, %109 : vector<64x128xf32>
    %c5_i32 = arith.constant 5 : i32
    %c1_i32_97 = arith.constant 1 : i32
    %c1_i32_98 = arith.constant 1 : i32
    %c0_i32_99 = arith.constant 0 : i32
    %c0_i32_100 = arith.constant 0 : i32
    %111 = tpu.memref_slice %arg3[%c5_i32, %c0_i32_99, %c0_i32_100] : memref<14x128x128xbf16, #tpu.memory_space<any>> -> memref<1x128x128xbf16, #tpu.memory_space<any>>
    %112 = tpu.memref_squeeze %111 : memref<1x128x128xbf16, #tpu.memory_space<any>> -> memref<128x128xbf16, #tpu.memory_space<any>>
    %c0_i32_101 = arith.constant 0 : i32
    %c0_i32_102 = arith.constant 0 : i32
    %113 = tpu.memref_slice %arg7[%c1_i32_97, %c0_i32_101, %c0_i32_102] : memref<2x128x128xbf16, #tpu.memory_space<vmem>> -> memref<1x128x128xbf16, #tpu.memory_space<vmem>>
    %114 = tpu.memref_squeeze %113 : memref<1x128x128xbf16, #tpu.memory_space<vmem>> -> memref<128x128xbf16, #tpu.memory_space<vmem>>
    %115 = tpu.memref_slice %arg8[%c1_i32_98] : memref<2x!tpu.dma_semaphore, #tpu.memory_space<semaphore_mem>> -> memref<1x!tpu.dma_semaphore, #tpu.memory_space<semaphore_mem>>
    %116 = tpu.memref_squeeze %115 : memref<1x!tpu.dma_semaphore, #tpu.memory_space<semaphore_mem>> -> memref<!tpu.dma_semaphore, #tpu.memory_space<semaphore_mem>>
    tpu.enqueue_dma source(%112 : memref<128x128xbf16, #tpu.memory_space<any>>) target(%114 : memref<128x128xbf16, #tpu.memory_space<vmem>>) target_semaphore(%116 : memref<!tpu.dma_semaphore, #tpu.memory_space<semaphore_mem>>)
    %c4_i32_103 = arith.constant 4 : i32
    %c0_i32_104 = arith.constant 0 : i32
    %c0_i32_105 = arith.constant 0 : i32
    %c0_i32_106 = arith.constant 0 : i32
    %c0_i32_107 = arith.constant 0 : i32
    %117 = tpu.memref_slice %arg3[%c4_i32_103, %c0_i32_106, %c0_i32_107] : memref<14x128x128xbf16, #tpu.memory_space<any>> -> memref<1x128x128xbf16, #tpu.memory_space<any>>
    %118 = tpu.memref_squeeze %117 : memref<1x128x128xbf16, #tpu.memory_space<any>> -> memref<128x128xbf16, #tpu.memory_space<any>>
    %c0_i32_108 = arith.constant 0 : i32
    %c0_i32_109 = arith.constant 0 : i32
    %119 = tpu.memref_slice %arg7[%c0_i32_104, %c0_i32_108, %c0_i32_109] : memref<2x128x128xbf16, #tpu.memory_space<vmem>> -> memref<1x128x128xbf16, #tpu.memory_space<vmem>>
    %120 = tpu.memref_squeeze %119 : memref<1x128x128xbf16, #tpu.memory_space<vmem>> -> memref<128x128xbf16, #tpu.memory_space<vmem>>
    %121 = tpu.memref_slice %arg8[%c0_i32_105] : memref<2x!tpu.dma_semaphore, #tpu.memory_space<semaphore_mem>> -> memref<1x!tpu.dma_semaphore, #tpu.memory_space<semaphore_mem>>
    %122 = tpu.memref_squeeze %121 : memref<1x!tpu.dma_semaphore, #tpu.memory_space<semaphore_mem>> -> memref<!tpu.dma_semaphore, #tpu.memory_space<semaphore_mem>>
    tpu.wait_dma2 semaphore(%122 : memref<!tpu.dma_semaphore, #tpu.memory_space<semaphore_mem>>) src(%118 : memref<128x128xbf16, #tpu.memory_space<any>>) dst(%120 : memref<128x128xbf16, #tpu.memory_space<vmem>>)
    %c0_110 = arith.constant 0 : index
    %c0_111 = arith.constant 0 : index
    %c0_112 = arith.constant 0 : index
    %123 = vector.load %arg7[%c0_110, %c0_111, %c0_112] : memref<2x128x128xbf16, #tpu.memory_space<vmem>>, vector<1x128x128xbf16>
    %124 = vector.shape_cast %123 : vector<1x128x128xbf16> to vector<128x128xbf16>
    %c4 = arith.constant 4 : index
    %c0_113 = arith.constant 0 : index
    %c0_114 = arith.constant 0 : index
    %125 = vector.load %arg4[%c4, %c0_113, %c0_114] : memref<14x1x128xf32, #tpu.memory_space<vmem>>, vector<1x1x128xf32>
    %126 = vector.shape_cast %125 : vector<1x1x128xf32> to vector<1x128xf32>
    %127 = arith.truncf %110 : vector<64x128xf32> to vector<64x128xbf16>
    %cst_115 = arith.constant dense<0.000000e+00> : vector<64x128xf32>
    %128 = tpu.matmul %127, %124, %cst_115 {dimension_numbers = #tpu.dot_dimension_numbers<[1], [0], [0], [1], [0, 0, 1, 1], [], []>} : vector<64x128xbf16>, vector<128x128xbf16>, vector<64x128xf32> -> vector<64x128xf32>
    %129 = arith.truncf %128 : vector<64x128xf32> to vector<64x128xbf16>
    %cst_116 = arith.constant dense<0.000000e+00> : vector<64x128xf32>
    %130 = tpu.matmul %0, %129, %cst_116 {dimension_numbers = #tpu.dot_dimension_numbers<[1], [0], [0], [1], [0, 0, 1, 1], [], []>} : vector<64x64xbf16>, vector<64x128xbf16>, vector<64x128xf32> -> vector<64x128xf32>
    %131 = vector.broadcast %126 : vector<1x128xf32> to vector<64x128xf32>
    %132 = arith.addf %130, %131 : vector<64x128xf32>
    %cst_117 = arith.constant 0.000000e+00 : f32
    %133 = vector.broadcast %cst_117 : f32 to vector<64x128xf32>
    %134 = arith.maximumf %132, %133 : vector<64x128xf32>
    %c6_i32 = arith.constant 6 : i32
    %c0_i32_118 = arith.constant 0 : i32
    %c0_i32_119 = arith.constant 0 : i32
    %c0_i32_120 = arith.constant 0 : i32
    %c0_i32_121 = arith.constant 0 : i32
    %135 = tpu.memref_slice %arg3[%c6_i32, %c0_i32_120, %c0_i32_121] : memref<14x128x128xbf16, #tpu.memory_space<any>> -> memref<1x128x128xbf16, #tpu.memory_space<any>>
    %136 = tpu.memref_squeeze %135 : memref<1x128x128xbf16, #tpu.memory_space<any>> -> memref<128x128xbf16, #tpu.memory_space<any>>
    %c0_i32_122 = arith.constant 0 : i32
    %c0_i32_123 = arith.constant 0 : i32
    %137 = tpu.memref_slice %arg7[%c0_i32_118, %c0_i32_122, %c0_i32_123] : memref<2x128x128xbf16, #tpu.memory_space<vmem>> -> memref<1x128x128xbf16, #tpu.memory_space<vmem>>
    %138 = tpu.memref_squeeze %137 : memref<1x128x128xbf16, #tpu.memory_space<vmem>> -> memref<128x128xbf16, #tpu.memory_space<vmem>>
    %139 = tpu.memref_slice %arg8[%c0_i32_119] : memref<2x!tpu.dma_semaphore, #tpu.memory_space<semaphore_mem>> -> memref<1x!tpu.dma_semaphore, #tpu.memory_space<semaphore_mem>>
    %140 = tpu.memref_squeeze %139 : memref<1x!tpu.dma_semaphore, #tpu.memory_space<semaphore_mem>> -> memref<!tpu.dma_semaphore, #tpu.memory_space<semaphore_mem>>
    tpu.enqueue_dma source(%136 : memref<128x128xbf16, #tpu.memory_space<any>>) target(%138 : memref<128x128xbf16, #tpu.memory_space<vmem>>) target_semaphore(%140 : memref<!tpu.dma_semaphore, #tpu.memory_space<semaphore_mem>>)
    %c5_i32_124 = arith.constant 5 : i32
    %c1_i32_125 = arith.constant 1 : i32
    %c1_i32_126 = arith.constant 1 : i32
    %c0_i32_127 = arith.constant 0 : i32
    %c0_i32_128 = arith.constant 0 : i32
    %141 = tpu.memref_slice %arg3[%c5_i32_124, %c0_i32_127, %c0_i32_128] : memref<14x128x128xbf16, #tpu.memory_space<any>> -> memref<1x128x128xbf16, #tpu.memory_space<any>>
    %142 = tpu.memref_squeeze %141 : memref<1x128x128xbf16, #tpu.memory_space<any>> -> memref<128x128xbf16, #tpu.memory_space<any>>
    %c0_i32_129 = arith.constant 0 : i32
    %c0_i32_130 = arith.constant 0 : i32
    %143 = tpu.memref_slice %arg7[%c1_i32_125, %c0_i32_129, %c0_i32_130] : memref<2x128x128xbf16, #tpu.memory_space<vmem>> -> memref<1x128x128xbf16, #tpu.memory_space<vmem>>
    %144 = tpu.memref_squeeze %143 : memref<1x128x128xbf16, #tpu.memory_space<vmem>> -> memref<128x128xbf16, #tpu.memory_space<vmem>>
    %145 = tpu.memref_slice %arg8[%c1_i32_126] : memref<2x!tpu.dma_semaphore, #tpu.memory_space<semaphore_mem>> -> memref<1x!tpu.dma_semaphore, #tpu.memory_space<semaphore_mem>>
    %146 = tpu.memref_squeeze %145 : memref<1x!tpu.dma_semaphore, #tpu.memory_space<semaphore_mem>> -> memref<!tpu.dma_semaphore, #tpu.memory_space<semaphore_mem>>
    tpu.wait_dma2 semaphore(%146 : memref<!tpu.dma_semaphore, #tpu.memory_space<semaphore_mem>>) src(%142 : memref<128x128xbf16, #tpu.memory_space<any>>) dst(%144 : memref<128x128xbf16, #tpu.memory_space<vmem>>)
    %c1_131 = arith.constant 1 : index
    %c0_132 = arith.constant 0 : index
    %c0_133 = arith.constant 0 : index
    %147 = vector.load %arg7[%c1_131, %c0_132, %c0_133] : memref<2x128x128xbf16, #tpu.memory_space<vmem>>, vector<1x128x128xbf16>
    %148 = vector.shape_cast %147 : vector<1x128x128xbf16> to vector<128x128xbf16>
    %c5 = arith.constant 5 : index
    %c0_134 = arith.constant 0 : index
    %c0_135 = arith.constant 0 : index
    %149 = vector.load %arg4[%c5, %c0_134, %c0_135] : memref<14x1x128xf32, #tpu.memory_space<vmem>>, vector<1x1x128xf32>
    %150 = vector.shape_cast %149 : vector<1x1x128xf32> to vector<1x128xf32>
    %151 = arith.truncf %134 : vector<64x128xf32> to vector<64x128xbf16>
    %cst_136 = arith.constant dense<0.000000e+00> : vector<64x128xf32>
    %152 = tpu.matmul %151, %148, %cst_136 {dimension_numbers = #tpu.dot_dimension_numbers<[1], [0], [0], [1], [0, 0, 1, 1], [], []>} : vector<64x128xbf16>, vector<128x128xbf16>, vector<64x128xf32> -> vector<64x128xf32>
    %153 = arith.truncf %152 : vector<64x128xf32> to vector<64x128xbf16>
    %cst_137 = arith.constant dense<0.000000e+00> : vector<64x128xf32>
    %154 = tpu.matmul %0, %153, %cst_137 {dimension_numbers = #tpu.dot_dimension_numbers<[1], [0], [0], [1], [0, 0, 1, 1], [], []>} : vector<64x64xbf16>, vector<64x128xbf16>, vector<64x128xf32> -> vector<64x128xf32>
    %155 = vector.broadcast %150 : vector<1x128xf32> to vector<64x128xf32>
    %156 = arith.addf %154, %155 : vector<64x128xf32>
    %cst_138 = arith.constant 0.000000e+00 : f32
    %157 = vector.broadcast %cst_138 : f32 to vector<64x128xf32>
    %158 = arith.maximumf %156, %157 : vector<64x128xf32>
    %159 = arith.addf %110, %158 : vector<64x128xf32>
    %cst_139 = arith.constant 5.000000e-01 : f32
    %160 = vector.broadcast %cst_139 : f32 to vector<64x128xf32>
    %161 = arith.mulf %159, %160 : vector<64x128xf32>
    %c7_i32 = arith.constant 7 : i32
    %c1_i32_140 = arith.constant 1 : i32
    %c1_i32_141 = arith.constant 1 : i32
    %c0_i32_142 = arith.constant 0 : i32
    %c0_i32_143 = arith.constant 0 : i32
    %162 = tpu.memref_slice %arg3[%c7_i32, %c0_i32_142, %c0_i32_143] : memref<14x128x128xbf16, #tpu.memory_space<any>> -> memref<1x128x128xbf16, #tpu.memory_space<any>>
    %163 = tpu.memref_squeeze %162 : memref<1x128x128xbf16, #tpu.memory_space<any>> -> memref<128x128xbf16, #tpu.memory_space<any>>
    %c0_i32_144 = arith.constant 0 : i32
    %c0_i32_145 = arith.constant 0 : i32
    %164 = tpu.memref_slice %arg7[%c1_i32_140, %c0_i32_144, %c0_i32_145] : memref<2x128x128xbf16, #tpu.memory_space<vmem>> -> memref<1x128x128xbf16, #tpu.memory_space<vmem>>
    %165 = tpu.memref_squeeze %164 : memref<1x128x128xbf16, #tpu.memory_space<vmem>> -> memref<128x128xbf16, #tpu.memory_space<vmem>>
    %166 = tpu.memref_slice %arg8[%c1_i32_141] : memref<2x!tpu.dma_semaphore, #tpu.memory_space<semaphore_mem>> -> memref<1x!tpu.dma_semaphore, #tpu.memory_space<semaphore_mem>>
    %167 = tpu.memref_squeeze %166 : memref<1x!tpu.dma_semaphore, #tpu.memory_space<semaphore_mem>> -> memref<!tpu.dma_semaphore, #tpu.memory_space<semaphore_mem>>
    tpu.enqueue_dma source(%163 : memref<128x128xbf16, #tpu.memory_space<any>>) target(%165 : memref<128x128xbf16, #tpu.memory_space<vmem>>) target_semaphore(%167 : memref<!tpu.dma_semaphore, #tpu.memory_space<semaphore_mem>>)
    %c6_i32_146 = arith.constant 6 : i32
    %c0_i32_147 = arith.constant 0 : i32
    %c0_i32_148 = arith.constant 0 : i32
    %c0_i32_149 = arith.constant 0 : i32
    %c0_i32_150 = arith.constant 0 : i32
    %168 = tpu.memref_slice %arg3[%c6_i32_146, %c0_i32_149, %c0_i32_150] : memref<14x128x128xbf16, #tpu.memory_space<any>> -> memref<1x128x128xbf16, #tpu.memory_space<any>>
    %169 = tpu.memref_squeeze %168 : memref<1x128x128xbf16, #tpu.memory_space<any>> -> memref<128x128xbf16, #tpu.memory_space<any>>
    %c0_i32_151 = arith.constant 0 : i32
    %c0_i32_152 = arith.constant 0 : i32
    %170 = tpu.memref_slice %arg7[%c0_i32_147, %c0_i32_151, %c0_i32_152] : memref<2x128x128xbf16, #tpu.memory_space<vmem>> -> memref<1x128x128xbf16, #tpu.memory_space<vmem>>
    %171 = tpu.memref_squeeze %170 : memref<1x128x128xbf16, #tpu.memory_space<vmem>> -> memref<128x128xbf16, #tpu.memory_space<vmem>>
    %172 = tpu.memref_slice %arg8[%c0_i32_148] : memref<2x!tpu.dma_semaphore, #tpu.memory_space<semaphore_mem>> -> memref<1x!tpu.dma_semaphore, #tpu.memory_space<semaphore_mem>>
    %173 = tpu.memref_squeeze %172 : memref<1x!tpu.dma_semaphore, #tpu.memory_space<semaphore_mem>> -> memref<!tpu.dma_semaphore, #tpu.memory_space<semaphore_mem>>
    tpu.wait_dma2 semaphore(%173 : memref<!tpu.dma_semaphore, #tpu.memory_space<semaphore_mem>>) src(%169 : memref<128x128xbf16, #tpu.memory_space<any>>) dst(%171 : memref<128x128xbf16, #tpu.memory_space<vmem>>)
    %c0_153 = arith.constant 0 : index
    %c0_154 = arith.constant 0 : index
    %c0_155 = arith.constant 0 : index
    %174 = vector.load %arg7[%c0_153, %c0_154, %c0_155] : memref<2x128x128xbf16, #tpu.memory_space<vmem>>, vector<1x128x128xbf16>
    %175 = vector.shape_cast %174 : vector<1x128x128xbf16> to vector<128x128xbf16>
    %c6 = arith.constant 6 : index
    %c0_156 = arith.constant 0 : index
    %c0_157 = arith.constant 0 : index
    %176 = vector.load %arg4[%c6, %c0_156, %c0_157] : memref<14x1x128xf32, #tpu.memory_space<vmem>>, vector<1x1x128xf32>
    %177 = vector.shape_cast %176 : vector<1x1x128xf32> to vector<1x128xf32>
    %178 = arith.truncf %161 : vector<64x128xf32> to vector<64x128xbf16>
    %cst_158 = arith.constant dense<0.000000e+00> : vector<64x128xf32>
    %179 = tpu.matmul %178, %175, %cst_158 {dimension_numbers = #tpu.dot_dimension_numbers<[1], [0], [0], [1], [0, 0, 1, 1], [], []>} : vector<64x128xbf16>, vector<128x128xbf16>, vector<64x128xf32> -> vector<64x128xf32>
    %180 = arith.truncf %179 : vector<64x128xf32> to vector<64x128xbf16>
    %cst_159 = arith.constant dense<0.000000e+00> : vector<64x128xf32>
    %181 = tpu.matmul %0, %180, %cst_159 {dimension_numbers = #tpu.dot_dimension_numbers<[1], [0], [0], [1], [0, 0, 1, 1], [], []>} : vector<64x64xbf16>, vector<64x128xbf16>, vector<64x128xf32> -> vector<64x128xf32>
    %182 = vector.broadcast %177 : vector<1x128xf32> to vector<64x128xf32>
    %183 = arith.addf %181, %182 : vector<64x128xf32>
    %cst_160 = arith.constant 0.000000e+00 : f32
    %184 = vector.broadcast %cst_160 : f32 to vector<64x128xf32>
    %185 = arith.maximumf %183, %184 : vector<64x128xf32>
    %c8_i32 = arith.constant 8 : i32
    %c0_i32_161 = arith.constant 0 : i32
    %c0_i32_162 = arith.constant 0 : i32
    %c0_i32_163 = arith.constant 0 : i32
    %c0_i32_164 = arith.constant 0 : i32
    %186 = tpu.memref_slice %arg3[%c8_i32, %c0_i32_163, %c0_i32_164] : memref<14x128x128xbf16, #tpu.memory_space<any>> -> memref<1x128x128xbf16, #tpu.memory_space<any>>
    %187 = tpu.memref_squeeze %186 : memref<1x128x128xbf16, #tpu.memory_space<any>> -> memref<128x128xbf16, #tpu.memory_space<any>>
    %c0_i32_165 = arith.constant 0 : i32
    %c0_i32_166 = arith.constant 0 : i32
    %188 = tpu.memref_slice %arg7[%c0_i32_161, %c0_i32_165, %c0_i32_166] : memref<2x128x128xbf16, #tpu.memory_space<vmem>> -> memref<1x128x128xbf16, #tpu.memory_space<vmem>>
    %189 = tpu.memref_squeeze %188 : memref<1x128x128xbf16, #tpu.memory_space<vmem>> -> memref<128x128xbf16, #tpu.memory_space<vmem>>
    %190 = tpu.memref_slice %arg8[%c0_i32_162] : memref<2x!tpu.dma_semaphore, #tpu.memory_space<semaphore_mem>> -> memref<1x!tpu.dma_semaphore, #tpu.memory_space<semaphore_mem>>
    %191 = tpu.memref_squeeze %190 : memref<1x!tpu.dma_semaphore, #tpu.memory_space<semaphore_mem>> -> memref<!tpu.dma_semaphore, #tpu.memory_space<semaphore_mem>>
    tpu.enqueue_dma source(%187 : memref<128x128xbf16, #tpu.memory_space<any>>) target(%189 : memref<128x128xbf16, #tpu.memory_space<vmem>>) target_semaphore(%191 : memref<!tpu.dma_semaphore, #tpu.memory_space<semaphore_mem>>)
    %c7_i32_167 = arith.constant 7 : i32
    %c1_i32_168 = arith.constant 1 : i32
    %c1_i32_169 = arith.constant 1 : i32
    %c0_i32_170 = arith.constant 0 : i32
    %c0_i32_171 = arith.constant 0 : i32
    %192 = tpu.memref_slice %arg3[%c7_i32_167, %c0_i32_170, %c0_i32_171] : memref<14x128x128xbf16, #tpu.memory_space<any>> -> memref<1x128x128xbf16, #tpu.memory_space<any>>
    %193 = tpu.memref_squeeze %192 : memref<1x128x128xbf16, #tpu.memory_space<any>> -> memref<128x128xbf16, #tpu.memory_space<any>>
    %c0_i32_172 = arith.constant 0 : i32
    %c0_i32_173 = arith.constant 0 : i32
    %194 = tpu.memref_slice %arg7[%c1_i32_168, %c0_i32_172, %c0_i32_173] : memref<2x128x128xbf16, #tpu.memory_space<vmem>> -> memref<1x128x128xbf16, #tpu.memory_space<vmem>>
    %195 = tpu.memref_squeeze %194 : memref<1x128x128xbf16, #tpu.memory_space<vmem>> -> memref<128x128xbf16, #tpu.memory_space<vmem>>
    %196 = tpu.memref_slice %arg8[%c1_i32_169] : memref<2x!tpu.dma_semaphore, #tpu.memory_space<semaphore_mem>> -> memref<1x!tpu.dma_semaphore, #tpu.memory_space<semaphore_mem>>
    %197 = tpu.memref_squeeze %196 : memref<1x!tpu.dma_semaphore, #tpu.memory_space<semaphore_mem>> -> memref<!tpu.dma_semaphore, #tpu.memory_space<semaphore_mem>>
    tpu.wait_dma2 semaphore(%197 : memref<!tpu.dma_semaphore, #tpu.memory_space<semaphore_mem>>) src(%193 : memref<128x128xbf16, #tpu.memory_space<any>>) dst(%195 : memref<128x128xbf16, #tpu.memory_space<vmem>>)
    %c1_174 = arith.constant 1 : index
    %c0_175 = arith.constant 0 : index
    %c0_176 = arith.constant 0 : index
    %198 = vector.load %arg7[%c1_174, %c0_175, %c0_176] : memref<2x128x128xbf16, #tpu.memory_space<vmem>>, vector<1x128x128xbf16>
    %199 = vector.shape_cast %198 : vector<1x128x128xbf16> to vector<128x128xbf16>
    %c7 = arith.constant 7 : index
    %c0_177 = arith.constant 0 : index
    %c0_178 = arith.constant 0 : index
    %200 = vector.load %arg4[%c7, %c0_177, %c0_178] : memref<14x1x128xf32, #tpu.memory_space<vmem>>, vector<1x1x128xf32>
    %201 = vector.shape_cast %200 : vector<1x1x128xf32> to vector<1x128xf32>
    %202 = arith.truncf %185 : vector<64x128xf32> to vector<64x128xbf16>
    %cst_179 = arith.constant dense<0.000000e+00> : vector<64x128xf32>
    %203 = tpu.matmul %202, %199, %cst_179 {dimension_numbers = #tpu.dot_dimension_numbers<[1], [0], [0], [1], [0, 0, 1, 1], [], []>} : vector<64x128xbf16>, vector<128x128xbf16>, vector<64x128xf32> -> vector<64x128xf32>
    %204 = arith.truncf %203 : vector<64x128xf32> to vector<64x128xbf16>
    %cst_180 = arith.constant dense<0.000000e+00> : vector<64x128xf32>
    %205 = tpu.matmul %0, %204, %cst_180 {dimension_numbers = #tpu.dot_dimension_numbers<[1], [0], [0], [1], [0, 0, 1, 1], [], []>} : vector<64x64xbf16>, vector<64x128xbf16>, vector<64x128xf32> -> vector<64x128xf32>
    %206 = vector.broadcast %201 : vector<1x128xf32> to vector<64x128xf32>
    %207 = arith.addf %205, %206 : vector<64x128xf32>
    %cst_181 = arith.constant 0.000000e+00 : f32
    %208 = vector.broadcast %cst_181 : f32 to vector<64x128xf32>
    %209 = arith.maximumf %207, %208 : vector<64x128xf32>
    %210 = arith.addf %161, %209 : vector<64x128xf32>
    %cst_182 = arith.constant 5.000000e-01 : f32
    %211 = vector.broadcast %cst_182 : f32 to vector<64x128xf32>
    %212 = arith.mulf %210, %211 : vector<64x128xf32>
    %c9_i32 = arith.constant 9 : i32
    %c1_i32_183 = arith.constant 1 : i32
    %c1_i32_184 = arith.constant 1 : i32
    %c0_i32_185 = arith.constant 0 : i32
    %c0_i32_186 = arith.constant 0 : i32
    %213 = tpu.memref_slice %arg3[%c9_i32, %c0_i32_185, %c0_i32_186] : memref<14x128x128xbf16, #tpu.memory_space<any>> -> memref<1x128x128xbf16, #tpu.memory_space<any>>
    %214 = tpu.memref_squeeze %213 : memref<1x128x128xbf16, #tpu.memory_space<any>> -> memref<128x128xbf16, #tpu.memory_space<any>>
    %c0_i32_187 = arith.constant 0 : i32
    %c0_i32_188 = arith.constant 0 : i32
    %215 = tpu.memref_slice %arg7[%c1_i32_183, %c0_i32_187, %c0_i32_188] : memref<2x128x128xbf16, #tpu.memory_space<vmem>> -> memref<1x128x128xbf16, #tpu.memory_space<vmem>>
    %216 = tpu.memref_squeeze %215 : memref<1x128x128xbf16, #tpu.memory_space<vmem>> -> memref<128x128xbf16, #tpu.memory_space<vmem>>
    %217 = tpu.memref_slice %arg8[%c1_i32_184] : memref<2x!tpu.dma_semaphore, #tpu.memory_space<semaphore_mem>> -> memref<1x!tpu.dma_semaphore, #tpu.memory_space<semaphore_mem>>
    %218 = tpu.memref_squeeze %217 : memref<1x!tpu.dma_semaphore, #tpu.memory_space<semaphore_mem>> -> memref<!tpu.dma_semaphore, #tpu.memory_space<semaphore_mem>>
    tpu.enqueue_dma source(%214 : memref<128x128xbf16, #tpu.memory_space<any>>) target(%216 : memref<128x128xbf16, #tpu.memory_space<vmem>>) target_semaphore(%218 : memref<!tpu.dma_semaphore, #tpu.memory_space<semaphore_mem>>)
    %c8_i32_189 = arith.constant 8 : i32
    %c0_i32_190 = arith.constant 0 : i32
    %c0_i32_191 = arith.constant 0 : i32
    %c0_i32_192 = arith.constant 0 : i32
    %c0_i32_193 = arith.constant 0 : i32
    %219 = tpu.memref_slice %arg3[%c8_i32_189, %c0_i32_192, %c0_i32_193] : memref<14x128x128xbf16, #tpu.memory_space<any>> -> memref<1x128x128xbf16, #tpu.memory_space<any>>
    %220 = tpu.memref_squeeze %219 : memref<1x128x128xbf16, #tpu.memory_space<any>> -> memref<128x128xbf16, #tpu.memory_space<any>>
    %c0_i32_194 = arith.constant 0 : i32
    %c0_i32_195 = arith.constant 0 : i32
    %221 = tpu.memref_slice %arg7[%c0_i32_190, %c0_i32_194, %c0_i32_195] : memref<2x128x128xbf16, #tpu.memory_space<vmem>> -> memref<1x128x128xbf16, #tpu.memory_space<vmem>>
    %222 = tpu.memref_squeeze %221 : memref<1x128x128xbf16, #tpu.memory_space<vmem>> -> memref<128x128xbf16, #tpu.memory_space<vmem>>
    %223 = tpu.memref_slice %arg8[%c0_i32_191] : memref<2x!tpu.dma_semaphore, #tpu.memory_space<semaphore_mem>> -> memref<1x!tpu.dma_semaphore, #tpu.memory_space<semaphore_mem>>
    %224 = tpu.memref_squeeze %223 : memref<1x!tpu.dma_semaphore, #tpu.memory_space<semaphore_mem>> -> memref<!tpu.dma_semaphore, #tpu.memory_space<semaphore_mem>>
    tpu.wait_dma2 semaphore(%224 : memref<!tpu.dma_semaphore, #tpu.memory_space<semaphore_mem>>) src(%220 : memref<128x128xbf16, #tpu.memory_space<any>>) dst(%222 : memref<128x128xbf16, #tpu.memory_space<vmem>>)
    %c0_196 = arith.constant 0 : index
    %c0_197 = arith.constant 0 : index
    %c0_198 = arith.constant 0 : index
    %225 = vector.load %arg7[%c0_196, %c0_197, %c0_198] : memref<2x128x128xbf16, #tpu.memory_space<vmem>>, vector<1x128x128xbf16>
    %226 = vector.shape_cast %225 : vector<1x128x128xbf16> to vector<128x128xbf16>
    %c8 = arith.constant 8 : index
    %c0_199 = arith.constant 0 : index
    %c0_200 = arith.constant 0 : index
    %227 = vector.load %arg4[%c8, %c0_199, %c0_200] : memref<14x1x128xf32, #tpu.memory_space<vmem>>, vector<1x1x128xf32>
    %228 = vector.shape_cast %227 : vector<1x1x128xf32> to vector<1x128xf32>
    %229 = arith.truncf %212 : vector<64x128xf32> to vector<64x128xbf16>
    %cst_201 = arith.constant dense<0.000000e+00> : vector<64x128xf32>
    %230 = tpu.matmul %229, %226, %cst_201 {dimension_numbers = #tpu.dot_dimension_numbers<[1], [0], [0], [1], [0, 0, 1, 1], [], []>} : vector<64x128xbf16>, vector<128x128xbf16>, vector<64x128xf32> -> vector<64x128xf32>
    %231 = arith.truncf %230 : vector<64x128xf32> to vector<64x128xbf16>
    %cst_202 = arith.constant dense<0.000000e+00> : vector<64x128xf32>
    %232 = tpu.matmul %0, %231, %cst_202 {dimension_numbers = #tpu.dot_dimension_numbers<[1], [0], [0], [1], [0, 0, 1, 1], [], []>} : vector<64x64xbf16>, vector<64x128xbf16>, vector<64x128xf32> -> vector<64x128xf32>
    %233 = vector.broadcast %228 : vector<1x128xf32> to vector<64x128xf32>
    %234 = arith.addf %232, %233 : vector<64x128xf32>
    %cst_203 = arith.constant 0.000000e+00 : f32
    %235 = vector.broadcast %cst_203 : f32 to vector<64x128xf32>
    %236 = arith.maximumf %234, %235 : vector<64x128xf32>
    %c10_i32 = arith.constant 10 : i32
    %c0_i32_204 = arith.constant 0 : i32
    %c0_i32_205 = arith.constant 0 : i32
    %c0_i32_206 = arith.constant 0 : i32
    %c0_i32_207 = arith.constant 0 : i32
    %237 = tpu.memref_slice %arg3[%c10_i32, %c0_i32_206, %c0_i32_207] : memref<14x128x128xbf16, #tpu.memory_space<any>> -> memref<1x128x128xbf16, #tpu.memory_space<any>>
    %238 = tpu.memref_squeeze %237 : memref<1x128x128xbf16, #tpu.memory_space<any>> -> memref<128x128xbf16, #tpu.memory_space<any>>
    %c0_i32_208 = arith.constant 0 : i32
    %c0_i32_209 = arith.constant 0 : i32
    %239 = tpu.memref_slice %arg7[%c0_i32_204, %c0_i32_208, %c0_i32_209] : memref<2x128x128xbf16, #tpu.memory_space<vmem>> -> memref<1x128x128xbf16, #tpu.memory_space<vmem>>
    %240 = tpu.memref_squeeze %239 : memref<1x128x128xbf16, #tpu.memory_space<vmem>> -> memref<128x128xbf16, #tpu.memory_space<vmem>>
    %241 = tpu.memref_slice %arg8[%c0_i32_205] : memref<2x!tpu.dma_semaphore, #tpu.memory_space<semaphore_mem>> -> memref<1x!tpu.dma_semaphore, #tpu.memory_space<semaphore_mem>>
    %242 = tpu.memref_squeeze %241 : memref<1x!tpu.dma_semaphore, #tpu.memory_space<semaphore_mem>> -> memref<!tpu.dma_semaphore, #tpu.memory_space<semaphore_mem>>
    tpu.enqueue_dma source(%238 : memref<128x128xbf16, #tpu.memory_space<any>>) target(%240 : memref<128x128xbf16, #tpu.memory_space<vmem>>) target_semaphore(%242 : memref<!tpu.dma_semaphore, #tpu.memory_space<semaphore_mem>>)
    %c9_i32_210 = arith.constant 9 : i32
    %c1_i32_211 = arith.constant 1 : i32
    %c1_i32_212 = arith.constant 1 : i32
    %c0_i32_213 = arith.constant 0 : i32
    %c0_i32_214 = arith.constant 0 : i32
    %243 = tpu.memref_slice %arg3[%c9_i32_210, %c0_i32_213, %c0_i32_214] : memref<14x128x128xbf16, #tpu.memory_space<any>> -> memref<1x128x128xbf16, #tpu.memory_space<any>>
    %244 = tpu.memref_squeeze %243 : memref<1x128x128xbf16, #tpu.memory_space<any>> -> memref<128x128xbf16, #tpu.memory_space<any>>
    %c0_i32_215 = arith.constant 0 : i32
    %c0_i32_216 = arith.constant 0 : i32
    %245 = tpu.memref_slice %arg7[%c1_i32_211, %c0_i32_215, %c0_i32_216] : memref<2x128x128xbf16, #tpu.memory_space<vmem>> -> memref<1x128x128xbf16, #tpu.memory_space<vmem>>
    %246 = tpu.memref_squeeze %245 : memref<1x128x128xbf16, #tpu.memory_space<vmem>> -> memref<128x128xbf16, #tpu.memory_space<vmem>>
    %247 = tpu.memref_slice %arg8[%c1_i32_212] : memref<2x!tpu.dma_semaphore, #tpu.memory_space<semaphore_mem>> -> memref<1x!tpu.dma_semaphore, #tpu.memory_space<semaphore_mem>>
    %248 = tpu.memref_squeeze %247 : memref<1x!tpu.dma_semaphore, #tpu.memory_space<semaphore_mem>> -> memref<!tpu.dma_semaphore, #tpu.memory_space<semaphore_mem>>
    tpu.wait_dma2 semaphore(%248 : memref<!tpu.dma_semaphore, #tpu.memory_space<semaphore_mem>>) src(%244 : memref<128x128xbf16, #tpu.memory_space<any>>) dst(%246 : memref<128x128xbf16, #tpu.memory_space<vmem>>)
    %c1_217 = arith.constant 1 : index
    %c0_218 = arith.constant 0 : index
    %c0_219 = arith.constant 0 : index
    %249 = vector.load %arg7[%c1_217, %c0_218, %c0_219] : memref<2x128x128xbf16, #tpu.memory_space<vmem>>, vector<1x128x128xbf16>
    %250 = vector.shape_cast %249 : vector<1x128x128xbf16> to vector<128x128xbf16>
    %c9 = arith.constant 9 : index
    %c0_220 = arith.constant 0 : index
    %c0_221 = arith.constant 0 : index
    %251 = vector.load %arg4[%c9, %c0_220, %c0_221] : memref<14x1x128xf32, #tpu.memory_space<vmem>>, vector<1x1x128xf32>
    %252 = vector.shape_cast %251 : vector<1x1x128xf32> to vector<1x128xf32>
    %253 = arith.truncf %236 : vector<64x128xf32> to vector<64x128xbf16>
    %cst_222 = arith.constant dense<0.000000e+00> : vector<64x128xf32>
    %254 = tpu.matmul %253, %250, %cst_222 {dimension_numbers = #tpu.dot_dimension_numbers<[1], [0], [0], [1], [0, 0, 1, 1], [], []>} : vector<64x128xbf16>, vector<128x128xbf16>, vector<64x128xf32> -> vector<64x128xf32>
    %255 = arith.truncf %254 : vector<64x128xf32> to vector<64x128xbf16>
    %cst_223 = arith.constant dense<0.000000e+00> : vector<64x128xf32>
    %256 = tpu.matmul %0, %255, %cst_223 {dimension_numbers = #tpu.dot_dimension_numbers<[1], [0], [0], [1], [0, 0, 1, 1], [], []>} : vector<64x64xbf16>, vector<64x128xbf16>, vector<64x128xf32> -> vector<64x128xf32>
    %257 = vector.broadcast %252 : vector<1x128xf32> to vector<64x128xf32>
    %258 = arith.addf %256, %257 : vector<64x128xf32>
    %cst_224 = arith.constant 0.000000e+00 : f32
    %259 = vector.broadcast %cst_224 : f32 to vector<64x128xf32>
    %260 = arith.maximumf %258, %259 : vector<64x128xf32>
    %261 = arith.addf %212, %260 : vector<64x128xf32>
    %cst_225 = arith.constant 5.000000e-01 : f32
    %262 = vector.broadcast %cst_225 : f32 to vector<64x128xf32>
    %263 = arith.mulf %261, %262 : vector<64x128xf32>
    %c11_i32 = arith.constant 11 : i32
    %c1_i32_226 = arith.constant 1 : i32
    %c1_i32_227 = arith.constant 1 : i32
    %c0_i32_228 = arith.constant 0 : i32
    %c0_i32_229 = arith.constant 0 : i32
    %264 = tpu.memref_slice %arg3[%c11_i32, %c0_i32_228, %c0_i32_229] : memref<14x128x128xbf16, #tpu.memory_space<any>> -> memref<1x128x128xbf16, #tpu.memory_space<any>>
    %265 = tpu.memref_squeeze %264 : memref<1x128x128xbf16, #tpu.memory_space<any>> -> memref<128x128xbf16, #tpu.memory_space<any>>
    %c0_i32_230 = arith.constant 0 : i32
    %c0_i32_231 = arith.constant 0 : i32
    %266 = tpu.memref_slice %arg7[%c1_i32_226, %c0_i32_230, %c0_i32_231] : memref<2x128x128xbf16, #tpu.memory_space<vmem>> -> memref<1x128x128xbf16, #tpu.memory_space<vmem>>
    %267 = tpu.memref_squeeze %266 : memref<1x128x128xbf16, #tpu.memory_space<vmem>> -> memref<128x128xbf16, #tpu.memory_space<vmem>>
    %268 = tpu.memref_slice %arg8[%c1_i32_227] : memref<2x!tpu.dma_semaphore, #tpu.memory_space<semaphore_mem>> -> memref<1x!tpu.dma_semaphore, #tpu.memory_space<semaphore_mem>>
    %269 = tpu.memref_squeeze %268 : memref<1x!tpu.dma_semaphore, #tpu.memory_space<semaphore_mem>> -> memref<!tpu.dma_semaphore, #tpu.memory_space<semaphore_mem>>
    tpu.enqueue_dma source(%265 : memref<128x128xbf16, #tpu.memory_space<any>>) target(%267 : memref<128x128xbf16, #tpu.memory_space<vmem>>) target_semaphore(%269 : memref<!tpu.dma_semaphore, #tpu.memory_space<semaphore_mem>>)
    %c10_i32_232 = arith.constant 10 : i32
    %c0_i32_233 = arith.constant 0 : i32
    %c0_i32_234 = arith.constant 0 : i32
    %c0_i32_235 = arith.constant 0 : i32
    %c0_i32_236 = arith.constant 0 : i32
    %270 = tpu.memref_slice %arg3[%c10_i32_232, %c0_i32_235, %c0_i32_236] : memref<14x128x128xbf16, #tpu.memory_space<any>> -> memref<1x128x128xbf16, #tpu.memory_space<any>>
    %271 = tpu.memref_squeeze %270 : memref<1x128x128xbf16, #tpu.memory_space<any>> -> memref<128x128xbf16, #tpu.memory_space<any>>
    %c0_i32_237 = arith.constant 0 : i32
    %c0_i32_238 = arith.constant 0 : i32
    %272 = tpu.memref_slice %arg7[%c0_i32_233, %c0_i32_237, %c0_i32_238] : memref<2x128x128xbf16, #tpu.memory_space<vmem>> -> memref<1x128x128xbf16, #tpu.memory_space<vmem>>
    %273 = tpu.memref_squeeze %272 : memref<1x128x128xbf16, #tpu.memory_space<vmem>> -> memref<128x128xbf16, #tpu.memory_space<vmem>>
    %274 = tpu.memref_slice %arg8[%c0_i32_234] : memref<2x!tpu.dma_semaphore, #tpu.memory_space<semaphore_mem>> -> memref<1x!tpu.dma_semaphore, #tpu.memory_space<semaphore_mem>>
    %275 = tpu.memref_squeeze %274 : memref<1x!tpu.dma_semaphore, #tpu.memory_space<semaphore_mem>> -> memref<!tpu.dma_semaphore, #tpu.memory_space<semaphore_mem>>
    tpu.wait_dma2 semaphore(%275 : memref<!tpu.dma_semaphore, #tpu.memory_space<semaphore_mem>>) src(%271 : memref<128x128xbf16, #tpu.memory_space<any>>) dst(%273 : memref<128x128xbf16, #tpu.memory_space<vmem>>)
    %c0_239 = arith.constant 0 : index
    %c0_240 = arith.constant 0 : index
    %c0_241 = arith.constant 0 : index
    %276 = vector.load %arg7[%c0_239, %c0_240, %c0_241] : memref<2x128x128xbf16, #tpu.memory_space<vmem>>, vector<1x128x128xbf16>
    %277 = vector.shape_cast %276 : vector<1x128x128xbf16> to vector<128x128xbf16>
    %c10 = arith.constant 10 : index
    %c0_242 = arith.constant 0 : index
    %c0_243 = arith.constant 0 : index
    %278 = vector.load %arg4[%c10, %c0_242, %c0_243] : memref<14x1x128xf32, #tpu.memory_space<vmem>>, vector<1x1x128xf32>
    %279 = vector.shape_cast %278 : vector<1x1x128xf32> to vector<1x128xf32>
    %280 = arith.truncf %263 : vector<64x128xf32> to vector<64x128xbf16>
    %cst_244 = arith.constant dense<0.000000e+00> : vector<64x128xf32>
    %281 = tpu.matmul %280, %277, %cst_244 {dimension_numbers = #tpu.dot_dimension_numbers<[1], [0], [0], [1], [0, 0, 1, 1], [], []>} : vector<64x128xbf16>, vector<128x128xbf16>, vector<64x128xf32> -> vector<64x128xf32>
    %282 = arith.truncf %281 : vector<64x128xf32> to vector<64x128xbf16>
    %cst_245 = arith.constant dense<0.000000e+00> : vector<64x128xf32>
    %283 = tpu.matmul %0, %282, %cst_245 {dimension_numbers = #tpu.dot_dimension_numbers<[1], [0], [0], [1], [0, 0, 1, 1], [], []>} : vector<64x64xbf16>, vector<64x128xbf16>, vector<64x128xf32> -> vector<64x128xf32>
    %284 = vector.broadcast %279 : vector<1x128xf32> to vector<64x128xf32>
    %285 = arith.addf %283, %284 : vector<64x128xf32>
    %cst_246 = arith.constant 0.000000e+00 : f32
    %286 = vector.broadcast %cst_246 : f32 to vector<64x128xf32>
    %287 = arith.maximumf %285, %286 : vector<64x128xf32>
    %c12_i32 = arith.constant 12 : i32
    %c0_i32_247 = arith.constant 0 : i32
    %c0_i32_248 = arith.constant 0 : i32
    %c0_i32_249 = arith.constant 0 : i32
    %c0_i32_250 = arith.constant 0 : i32
    %288 = tpu.memref_slice %arg3[%c12_i32, %c0_i32_249, %c0_i32_250] : memref<14x128x128xbf16, #tpu.memory_space<any>> -> memref<1x128x128xbf16, #tpu.memory_space<any>>
    %289 = tpu.memref_squeeze %288 : memref<1x128x128xbf16, #tpu.memory_space<any>> -> memref<128x128xbf16, #tpu.memory_space<any>>
    %c0_i32_251 = arith.constant 0 : i32
    %c0_i32_252 = arith.constant 0 : i32
    %290 = tpu.memref_slice %arg7[%c0_i32_247, %c0_i32_251, %c0_i32_252] : memref<2x128x128xbf16, #tpu.memory_space<vmem>> -> memref<1x128x128xbf16, #tpu.memory_space<vmem>>
    %291 = tpu.memref_squeeze %290 : memref<1x128x128xbf16, #tpu.memory_space<vmem>> -> memref<128x128xbf16, #tpu.memory_space<vmem>>
    %292 = tpu.memref_slice %arg8[%c0_i32_248] : memref<2x!tpu.dma_semaphore, #tpu.memory_space<semaphore_mem>> -> memref<1x!tpu.dma_semaphore, #tpu.memory_space<semaphore_mem>>
    %293 = tpu.memref_squeeze %292 : memref<1x!tpu.dma_semaphore, #tpu.memory_space<semaphore_mem>> -> memref<!tpu.dma_semaphore, #tpu.memory_space<semaphore_mem>>
    tpu.enqueue_dma source(%289 : memref<128x128xbf16, #tpu.memory_space<any>>) target(%291 : memref<128x128xbf16, #tpu.memory_space<vmem>>) target_semaphore(%293 : memref<!tpu.dma_semaphore, #tpu.memory_space<semaphore_mem>>)
    %c11_i32_253 = arith.constant 11 : i32
    %c1_i32_254 = arith.constant 1 : i32
    %c1_i32_255 = arith.constant 1 : i32
    %c0_i32_256 = arith.constant 0 : i32
    %c0_i32_257 = arith.constant 0 : i32
    %294 = tpu.memref_slice %arg3[%c11_i32_253, %c0_i32_256, %c0_i32_257] : memref<14x128x128xbf16, #tpu.memory_space<any>> -> memref<1x128x128xbf16, #tpu.memory_space<any>>
    %295 = tpu.memref_squeeze %294 : memref<1x128x128xbf16, #tpu.memory_space<any>> -> memref<128x128xbf16, #tpu.memory_space<any>>
    %c0_i32_258 = arith.constant 0 : i32
    %c0_i32_259 = arith.constant 0 : i32
    %296 = tpu.memref_slice %arg7[%c1_i32_254, %c0_i32_258, %c0_i32_259] : memref<2x128x128xbf16, #tpu.memory_space<vmem>> -> memref<1x128x128xbf16, #tpu.memory_space<vmem>>
    %297 = tpu.memref_squeeze %296 : memref<1x128x128xbf16, #tpu.memory_space<vmem>> -> memref<128x128xbf16, #tpu.memory_space<vmem>>
    %298 = tpu.memref_slice %arg8[%c1_i32_255] : memref<2x!tpu.dma_semaphore, #tpu.memory_space<semaphore_mem>> -> memref<1x!tpu.dma_semaphore, #tpu.memory_space<semaphore_mem>>
    %299 = tpu.memref_squeeze %298 : memref<1x!tpu.dma_semaphore, #tpu.memory_space<semaphore_mem>> -> memref<!tpu.dma_semaphore, #tpu.memory_space<semaphore_mem>>
    tpu.wait_dma2 semaphore(%299 : memref<!tpu.dma_semaphore, #tpu.memory_space<semaphore_mem>>) src(%295 : memref<128x128xbf16, #tpu.memory_space<any>>) dst(%297 : memref<128x128xbf16, #tpu.memory_space<vmem>>)
    %c1_260 = arith.constant 1 : index
    %c0_261 = arith.constant 0 : index
    %c0_262 = arith.constant 0 : index
    %300 = vector.load %arg7[%c1_260, %c0_261, %c0_262] : memref<2x128x128xbf16, #tpu.memory_space<vmem>>, vector<1x128x128xbf16>
    %301 = vector.shape_cast %300 : vector<1x128x128xbf16> to vector<128x128xbf16>
    %c11 = arith.constant 11 : index
    %c0_263 = arith.constant 0 : index
    %c0_264 = arith.constant 0 : index
    %302 = vector.load %arg4[%c11, %c0_263, %c0_264] : memref<14x1x128xf32, #tpu.memory_space<vmem>>, vector<1x1x128xf32>
    %303 = vector.shape_cast %302 : vector<1x1x128xf32> to vector<1x128xf32>
    %304 = arith.truncf %287 : vector<64x128xf32> to vector<64x128xbf16>
    %cst_265 = arith.constant dense<0.000000e+00> : vector<64x128xf32>
    %305 = tpu.matmul %304, %301, %cst_265 {dimension_numbers = #tpu.dot_dimension_numbers<[1], [0], [0], [1], [0, 0, 1, 1], [], []>} : vector<64x128xbf16>, vector<128x128xbf16>, vector<64x128xf32> -> vector<64x128xf32>
    %306 = arith.truncf %305 : vector<64x128xf32> to vector<64x128xbf16>
    %cst_266 = arith.constant dense<0.000000e+00> : vector<64x128xf32>
    %307 = tpu.matmul %0, %306, %cst_266 {dimension_numbers = #tpu.dot_dimension_numbers<[1], [0], [0], [1], [0, 0, 1, 1], [], []>} : vector<64x64xbf16>, vector<64x128xbf16>, vector<64x128xf32> -> vector<64x128xf32>
    %308 = vector.broadcast %303 : vector<1x128xf32> to vector<64x128xf32>
    %309 = arith.addf %307, %308 : vector<64x128xf32>
    %cst_267 = arith.constant 0.000000e+00 : f32
    %310 = vector.broadcast %cst_267 : f32 to vector<64x128xf32>
    %311 = arith.maximumf %309, %310 : vector<64x128xf32>
    %312 = arith.addf %263, %311 : vector<64x128xf32>
    %cst_268 = arith.constant 5.000000e-01 : f32
    %313 = vector.broadcast %cst_268 : f32 to vector<64x128xf32>
    %314 = arith.mulf %312, %313 : vector<64x128xf32>
    %c13_i32 = arith.constant 13 : i32
    %c1_i32_269 = arith.constant 1 : i32
    %c1_i32_270 = arith.constant 1 : i32
    %c0_i32_271 = arith.constant 0 : i32
    %c0_i32_272 = arith.constant 0 : i32
    %315 = tpu.memref_slice %arg3[%c13_i32, %c0_i32_271, %c0_i32_272] : memref<14x128x128xbf16, #tpu.memory_space<any>> -> memref<1x128x128xbf16, #tpu.memory_space<any>>
    %316 = tpu.memref_squeeze %315 : memref<1x128x128xbf16, #tpu.memory_space<any>> -> memref<128x128xbf16, #tpu.memory_space<any>>
    %c0_i32_273 = arith.constant 0 : i32
    %c0_i32_274 = arith.constant 0 : i32
    %317 = tpu.memref_slice %arg7[%c1_i32_269, %c0_i32_273, %c0_i32_274] : memref<2x128x128xbf16, #tpu.memory_space<vmem>> -> memref<1x128x128xbf16, #tpu.memory_space<vmem>>
    %318 = tpu.memref_squeeze %317 : memref<1x128x128xbf16, #tpu.memory_space<vmem>> -> memref<128x128xbf16, #tpu.memory_space<vmem>>
    %319 = tpu.memref_slice %arg8[%c1_i32_270] : memref<2x!tpu.dma_semaphore, #tpu.memory_space<semaphore_mem>> -> memref<1x!tpu.dma_semaphore, #tpu.memory_space<semaphore_mem>>
    %320 = tpu.memref_squeeze %319 : memref<1x!tpu.dma_semaphore, #tpu.memory_space<semaphore_mem>> -> memref<!tpu.dma_semaphore, #tpu.memory_space<semaphore_mem>>
    tpu.enqueue_dma source(%316 : memref<128x128xbf16, #tpu.memory_space<any>>) target(%318 : memref<128x128xbf16, #tpu.memory_space<vmem>>) target_semaphore(%320 : memref<!tpu.dma_semaphore, #tpu.memory_space<semaphore_mem>>)
    %c12_i32_275 = arith.constant 12 : i32
    %c0_i32_276 = arith.constant 0 : i32
    %c0_i32_277 = arith.constant 0 : i32
    %c0_i32_278 = arith.constant 0 : i32
    %c0_i32_279 = arith.constant 0 : i32
    %321 = tpu.memref_slice %arg3[%c12_i32_275, %c0_i32_278, %c0_i32_279] : memref<14x128x128xbf16, #tpu.memory_space<any>> -> memref<1x128x128xbf16, #tpu.memory_space<any>>
    %322 = tpu.memref_squeeze %321 : memref<1x128x128xbf16, #tpu.memory_space<any>> -> memref<128x128xbf16, #tpu.memory_space<any>>
    %c0_i32_280 = arith.constant 0 : i32
    %c0_i32_281 = arith.constant 0 : i32
    %323 = tpu.memref_slice %arg7[%c0_i32_276, %c0_i32_280, %c0_i32_281] : memref<2x128x128xbf16, #tpu.memory_space<vmem>> -> memref<1x128x128xbf16, #tpu.memory_space<vmem>>
    %324 = tpu.memref_squeeze %323 : memref<1x128x128xbf16, #tpu.memory_space<vmem>> -> memref<128x128xbf16, #tpu.memory_space<vmem>>
    %325 = tpu.memref_slice %arg8[%c0_i32_277] : memref<2x!tpu.dma_semaphore, #tpu.memory_space<semaphore_mem>> -> memref<1x!tpu.dma_semaphore, #tpu.memory_space<semaphore_mem>>
    %326 = tpu.memref_squeeze %325 : memref<1x!tpu.dma_semaphore, #tpu.memory_space<semaphore_mem>> -> memref<!tpu.dma_semaphore, #tpu.memory_space<semaphore_mem>>
    tpu.wait_dma2 semaphore(%326 : memref<!tpu.dma_semaphore, #tpu.memory_space<semaphore_mem>>) src(%322 : memref<128x128xbf16, #tpu.memory_space<any>>) dst(%324 : memref<128x128xbf16, #tpu.memory_space<vmem>>)
    %c0_282 = arith.constant 0 : index
    %c0_283 = arith.constant 0 : index
    %c0_284 = arith.constant 0 : index
    %327 = vector.load %arg7[%c0_282, %c0_283, %c0_284] : memref<2x128x128xbf16, #tpu.memory_space<vmem>>, vector<1x128x128xbf16>
    %328 = vector.shape_cast %327 : vector<1x128x128xbf16> to vector<128x128xbf16>
    %c12 = arith.constant 12 : index
    %c0_285 = arith.constant 0 : index
    %c0_286 = arith.constant 0 : index
    %329 = vector.load %arg4[%c12, %c0_285, %c0_286] : memref<14x1x128xf32, #tpu.memory_space<vmem>>, vector<1x1x128xf32>
    %330 = vector.shape_cast %329 : vector<1x1x128xf32> to vector<1x128xf32>
    %331 = arith.truncf %314 : vector<64x128xf32> to vector<64x128xbf16>
    %cst_287 = arith.constant dense<0.000000e+00> : vector<64x128xf32>
    %332 = tpu.matmul %331, %328, %cst_287 {dimension_numbers = #tpu.dot_dimension_numbers<[1], [0], [0], [1], [0, 0, 1, 1], [], []>} : vector<64x128xbf16>, vector<128x128xbf16>, vector<64x128xf32> -> vector<64x128xf32>
    %333 = arith.truncf %332 : vector<64x128xf32> to vector<64x128xbf16>
    %cst_288 = arith.constant dense<0.000000e+00> : vector<64x128xf32>
    %334 = tpu.matmul %0, %333, %cst_288 {dimension_numbers = #tpu.dot_dimension_numbers<[1], [0], [0], [1], [0, 0, 1, 1], [], []>} : vector<64x64xbf16>, vector<64x128xbf16>, vector<64x128xf32> -> vector<64x128xf32>
    %335 = vector.broadcast %330 : vector<1x128xf32> to vector<64x128xf32>
    %336 = arith.addf %334, %335 : vector<64x128xf32>
    %cst_289 = arith.constant 0.000000e+00 : f32
    %337 = vector.broadcast %cst_289 : f32 to vector<64x128xf32>
    %338 = arith.maximumf %336, %337 : vector<64x128xf32>
    %339 = arith.addf %314, %338 : vector<64x128xf32>
    %cst_290 = arith.constant 5.000000e-01 : f32
    %340 = vector.broadcast %cst_290 : f32 to vector<64x128xf32>
    %341 = arith.mulf %339, %340 : vector<64x128xf32>
    %c13_i32_291 = arith.constant 13 : i32
    %c1_i32_292 = arith.constant 1 : i32
    %c1_i32_293 = arith.constant 1 : i32
    %c0_i32_294 = arith.constant 0 : i32
    %c0_i32_295 = arith.constant 0 : i32
    %342 = tpu.memref_slice %arg3[%c13_i32_291, %c0_i32_294, %c0_i32_295] : memref<14x128x128xbf16, #tpu.memory_space<any>> -> memref<1x128x128xbf16, #tpu.memory_space<any>>
    %343 = tpu.memref_squeeze %342 : memref<1x128x128xbf16, #tpu.memory_space<any>> -> memref<128x128xbf16, #tpu.memory_space<any>>
    %c0_i32_296 = arith.constant 0 : i32
    %c0_i32_297 = arith.constant 0 : i32
    %344 = tpu.memref_slice %arg7[%c1_i32_292, %c0_i32_296, %c0_i32_297] : memref<2x128x128xbf16, #tpu.memory_space<vmem>> -> memref<1x128x128xbf16, #tpu.memory_space<vmem>>
    %345 = tpu.memref_squeeze %344 : memref<1x128x128xbf16, #tpu.memory_space<vmem>> -> memref<128x128xbf16, #tpu.memory_space<vmem>>
    %346 = tpu.memref_slice %arg8[%c1_i32_293] : memref<2x!tpu.dma_semaphore, #tpu.memory_space<semaphore_mem>> -> memref<1x!tpu.dma_semaphore, #tpu.memory_space<semaphore_mem>>
    %347 = tpu.memref_squeeze %346 : memref<1x!tpu.dma_semaphore, #tpu.memory_space<semaphore_mem>> -> memref<!tpu.dma_semaphore, #tpu.memory_space<semaphore_mem>>
    tpu.wait_dma2 semaphore(%347 : memref<!tpu.dma_semaphore, #tpu.memory_space<semaphore_mem>>) src(%343 : memref<128x128xbf16, #tpu.memory_space<any>>) dst(%345 : memref<128x128xbf16, #tpu.memory_space<vmem>>)
    %c1_298 = arith.constant 1 : index
    %c0_299 = arith.constant 0 : index
    %c0_300 = arith.constant 0 : index
    %348 = vector.load %arg7[%c1_298, %c0_299, %c0_300] : memref<2x128x128xbf16, #tpu.memory_space<vmem>>, vector<1x128x128xbf16>
    %349 = vector.shape_cast %348 : vector<1x128x128xbf16> to vector<128x128xbf16>
    %c13 = arith.constant 13 : index
    %c0_301 = arith.constant 0 : index
    %c0_302 = arith.constant 0 : index
    %350 = vector.load %arg4[%c13, %c0_301, %c0_302] : memref<14x1x128xf32, #tpu.memory_space<vmem>>, vector<1x1x128xf32>
    %351 = vector.shape_cast %350 : vector<1x1x128xf32> to vector<1x128xf32>
    %352 = arith.truncf %341 : vector<64x128xf32> to vector<64x128xbf16>
    %cst_303 = arith.constant dense<0.000000e+00> : vector<64x128xf32>
    %353 = tpu.matmul %352, %349, %cst_303 {dimension_numbers = #tpu.dot_dimension_numbers<[1], [0], [0], [1], [0, 0, 1, 1], [], []>} : vector<64x128xbf16>, vector<128x128xbf16>, vector<64x128xf32> -> vector<64x128xf32>
    %354 = arith.truncf %353 : vector<64x128xf32> to vector<64x128xbf16>
    %cst_304 = arith.constant dense<0.000000e+00> : vector<64x128xf32>
    %355 = tpu.matmul %0, %354, %cst_304 {dimension_numbers = #tpu.dot_dimension_numbers<[1], [0], [0], [1], [0, 0, 1, 1], [], []>} : vector<64x64xbf16>, vector<64x128xbf16>, vector<64x128xf32> -> vector<64x128xf32>
    %356 = vector.broadcast %351 : vector<1x128xf32> to vector<64x128xf32>
    %357 = arith.addf %355, %356 : vector<64x128xf32>
    %c0_305 = arith.constant 0 : index
    %c0_306 = arith.constant 0 : index
    %358 = vector.load %arg5[%c0_305, %c0_306] : memref<64x128xf32, #tpu.memory_space<vmem>>, vector<64x128xf32>
    tpu.vector_store %arg5[%c0_305, %c0_306], %357 {strides = array<i32>} : memref<64x128xf32, #tpu.memory_space<vmem>>, vector<64x128xf32>,
    %c0_307 = arith.constant 0 : index
    %c0_308 = arith.constant 0 : index
    %359 = vector.load %arg6[%c0_307, %c0_308] : memref<64x128xf32, #tpu.memory_space<vmem>>, vector<64x128xf32>
    tpu.vector_store %arg6[%c0_307, %c0_308], %341 {strides = array<i32>} : memref<64x128xf32, #tpu.memory_space<vmem>>, vector<64x128xf32>,
    return
  }
}

</mosaic_0001>

<llo_original>
// kernel: graph_resnet_forward.1
$region0: #{graph_resnet_forward.1}
  #allocation0 [shape = 'u32[]', space=smem, size = 0x4, offset = 0x4, fixed_abs, tag = 'smem constant byte address 0x4 - core index']
  #allocation1 [shape = 'u32[144,128]{1,0:T(1,128)}', space=vmem, size = 0x12000, scoped, tag = 'internal scratch']
  #allocation2 [shape = 'bf16[2,128,128]{2,1,0:T(16,128)(2,1)}', space=vmem, size = 0x10000, scoped, tag = 'scratch operand']
  #allocation3 [shape = 's32[2]{0}', space=sflag, size = 0x8, scoped, tag = 'scratch operand']
  #allocation4 [shape = 's32[]', space=sflag, size = 0x4, offset = 0, fixed_abs, tag = 'sflag constant byte address 0x0 - dummy sync flag']
  #allocation5 [shape = 's32[]', space=sflag, size = 0x4, offset = 0, fixed_abs, tag = 'sflag constant byte address 0x0 - dummy sync flag']
  #allocation6 [shape = 'u32[]', space=smem, size = 0x4, offset = 0x44, fixed_abs, tag = 'smem constant byte address 0x44 - assertion arg 0']
  #allocation7 [shape = 'u32[]', space=smem, size = 0x4, offset = 0x48, fixed_abs, tag = 'smem constant byte address 0x48 - assertion arg 1']
  #allocation8 [shape = 's32[]', space=sflag, size = 0x4, offset = 0, fixed_abs, tag = 'sflag constant byte address 0x0 - dummy sync flag']
  #allocation9 [shape = 's32[]', space=sflag, size = 0x4, offset = 0, fixed_abs, tag = 'sflag constant byte address 0x0 - dummy sync flag']
  #allocation10 [shape = 's32[]', space=sflag, size = 0x4, offset = 0, fixed_abs, tag = 'sflag constant byte address 0x0 - dummy sync flag']
  #allocation11 [shape = 's32[]', space=sflag, size = 0x4, offset = 0, fixed_abs, tag = 'sflag constant byte address 0x0 - dummy sync flag']
  #allocation12 [shape = 's32[]', space=sflag, size = 0x4, offset = 0, fixed_abs, tag = 'sflag constant byte address 0x0 - dummy sync flag']
  #allocation13 [shape = 's32[]', space=sflag, size = 0x4, offset = 0, fixed_abs, tag = 'sflag constant byte address 0x0 - dummy sync flag']
  #allocation14 [shape = 's32[]', space=sflag, size = 0x4, offset = 0, fixed_abs, tag = 'sflag constant byte address 0x0 - dummy sync flag']
  #allocation15 [shape = 's32[]', space=sflag, size = 0x4, offset = 0, fixed_abs, tag = 'sflag constant byte address 0x0 - dummy sync flag']
  #allocation16 [shape = 's32[]', space=sflag, size = 0x4, offset = 0, fixed_abs, tag = 'sflag constant byte address 0x0 - dummy sync flag']
  #allocation17 [shape = 's32[]', space=sflag, size = 0x4, offset = 0, fixed_abs, tag = 'sflag constant byte address 0x0 - dummy sync flag']
  #allocation18 [shape = 's32[]', space=sflag, size = 0x4, offset = 0, fixed_abs, tag = 'sflag constant byte address 0x0 - dummy sync flag']
  #allocation19 [shape = 's32[]', space=sflag, size = 0x4, offset = 0, fixed_abs, tag = 'sflag constant byte address 0x0 - dummy sync flag']
  #allocation20 [shape = 's32[]', space=sflag, size = 0x4, offset = 0, fixed_abs, tag = 'sflag constant byte address 0x0 - dummy sync flag']
  #allocation21 [shape = 's32[]', space=sflag, size = 0x4, offset = 0, fixed_abs, tag = 'sflag constant byte address 0x0 - dummy sync flag']
  #allocation22 [shape = 's32[]', space=sflag, size = 0x4, offset = 0, fixed_abs, tag = 'sflag constant byte address 0x0 - dummy sync flag']
  #allocation23 [shape = 's32[]', space=sflag, size = 0x4, offset = 0, fixed_abs, tag = 'sflag constant byte address 0x0 - dummy sync flag']
  #allocation24 [shape = 's32[]', space=sflag, size = 0x4, offset = 0, fixed_abs, tag = 'sflag constant byte address 0x0 - dummy sync flag']
  #allocation25 [shape = 's32[]', space=sflag, size = 0x4, offset = 0, fixed_abs, tag = 'sflag constant byte address 0x0 - dummy sync flag']
  #allocation26 [shape = 's32[]', space=sflag, size = 0x4, offset = 0, fixed_abs, tag = 'sflag constant byte address 0x0 - dummy sync flag']
  #allocation27 [shape = 's32[]', space=sflag, size = 0x4, offset = 0, fixed_abs, tag = 'sflag constant byte address 0x0 - dummy sync flag']
  #allocation28 [shape = 's32[]', space=sflag, size = 0x4, offset = 0, fixed_abs, tag = 'sflag constant byte address 0x0 - dummy sync flag']
  #allocation29 [shape = 's32[]', space=sflag, size = 0x4, offset = 0, fixed_abs, tag = 'sflag constant byte address 0x0 - dummy sync flag']
  #allocation30 [shape = 's32[]', space=sflag, size = 0x4, offset = 0, fixed_abs, tag = 'sflag constant byte address 0x0 - dummy sync flag']
  #allocation31 [shape = 's32[]', space=sflag, size = 0x4, offset = 0, fixed_abs, tag = 'sflag constant byte address 0x0 - dummy sync flag']
  #allocation32 [shape = 's32[]', space=sflag, size = 0x4, offset = 0, fixed_abs, tag = 'sflag constant byte address 0x0 - dummy sync flag']
  #allocation33 [shape = 's32[]', space=sflag, size = 0x4, offset = 0, fixed_abs, tag = 'sflag constant byte address 0x0 - dummy sync flag']
  %s0 = inlined_call_operand.vmem [shape: f32[64,128], index: 0, kind: input, shape index: {}]
  %s1 = inlined_call_operand.vmem [shape: f32[64,128], index: 1, kind: input, shape index: {}]
  %s2 = inlined_call_operand.vmem [shape: bf16[64,64], index: 2, kind: input, shape index: {}]
  %s3 = inlined_call_operand.hbm [shape: bf16[14,128,128], index: 3, kind: input, shape index: {}]
  %s4 = inlined_call_operand.vmem [shape: f32[14,1,128], index: 4, kind: input, shape index: {}]
  %s5 = inlined_call_operand.vmem [shape: f32[64,128], index: 5, kind: output, shape index: {0}]
  %s6 = inlined_call_operand.vmem [shape: f32[64,128], index: 6, kind: output, shape index: {1}]
  %7 = xla_tuple %s5, %s6
  %s8 = sld [smem:[#allocation0]]
  $region90: #{graph_resnet_forward.1} parent=0
    _
  %s10 = ssub.s32 1, %s8
  %s11 = scalar_select 0, %s10, %s8
  // Predicated region
  $region2: #{graph_resnet_forward.1} parent=0 // pred_check
    _
  $region3: #{graph_resnet_forward.1} parent=0 // pred_check_branch
    %13 = sbr.rel (0) target = $region5
  $region4: #{graph_resnet_forward.1} parent=0 // pred_region
    _
  $region5: #{graph_resnet_forward.1} parent=0 // pred_fallthru
    _
  // Predicated region
  $region6: #{graph_resnet_forward.1} parent=0 // pred_check
    _
  $region7: #{graph_resnet_forward.1} parent=0 // pred_check_branch
    %15 = sbr.rel (0) target = $region9
  $region8: #{graph_resnet_forward.1} parent=0 // pred_region
    _
  $region9: #{graph_resnet_forward.1} parent=0 // pred_fallthru
    _
  // Predicated region
  $region10: #{graph_resnet_forward.1} parent=0 // pred_check
    _
  $region11: #{graph_resnet_forward.1} parent=0 // pred_check_branch
    %17 = sbr.rel (0) target = $region13
  $region12: #{graph_resnet_forward.1} parent=0 // pred_region
    _
  $region13: #{graph_resnet_forward.1} parent=0 // pred_fallthru
    _
  // Predicated region
  $region14: #{graph_resnet_forward.1} parent=0 // pred_check
    _
  $region15: #{graph_resnet_forward.1} parent=0 // pred_check_branch
    %19 = sbr.rel (0) target = $region17
  $region16: #{graph_resnet_forward.1} parent=0 // pred_region
    _
  $region17: #{graph_resnet_forward.1} parent=0 // pred_fallthru
    _
  %v21 = vld [vmem:[%s2] sm:$0xf]
  %v22 = vld [vmem:[%s2 + $0x4] sm:$0xf]
  %v23 = vld [vmem:[%s2 + $0x8] sm:$0xf]
  %v24 = vld [vmem:[%s2 + $0xc] sm:$0xf]
  %v25 = vld [vmem:[%s2 + $0x10] sm:$0xf]
  %v26 = vld [vmem:[%s2 + $0x14] sm:$0xf]
  %v27 = vld [vmem:[%s2 + $0x18] sm:$0xf]
  %v28 = vld [vmem:[%s2 + $0x1c] sm:$0xf]
  %v29 = vld [vmem:[%s0] sm:$0xff]
  %v30 = vld [vmem:[%s0 + $0x8] sm:$0xff]
  %v31 = vld [vmem:[%s0 + $0x10] sm:$0xff]
  %v32 = vld [vmem:[%s0 + $0x18] sm:$0xff]
  %v33 = vld [vmem:[%s0 + $0x20] sm:$0xff]
  %v34 = vld [vmem:[%s0 + $0x28] sm:$0xff]
  %v35 = vld [vmem:[%s0 + $0x30] sm:$0xff]
  %v36 = vld [vmem:[%s0 + $0x38] sm:$0xff]
  %v37 = vld [vmem:[%s1] sm:$0xff]
  %v38 = vld [vmem:[%s1 + $0x8] sm:$0xff]
  %v39 = vld [vmem:[%s1 + $0x10] sm:$0xff]
  %v40 = vld [vmem:[%s1 + $0x18] sm:$0xff]
  %v41 = vld [vmem:[%s1 + $0x20] sm:$0xff]
  %v42 = vld [vmem:[%s1 + $0x28] sm:$0xff]
  %v43 = vld [vmem:[%s1 + $0x30] sm:$0xff]
  %v44 = vld [vmem:[%s1 + $0x38] sm:$0xff]
  // Predicated region
  $region18: #{graph_resnet_forward.1} parent=0 // pred_check
    _
  $region19: #{graph_resnet_forward.1} parent=0 // pred_check_branch
    %46 = sbr.rel target = $region21
  $region20: #{graph_resnet_forward.1} parent=0 // pred_region
    %47 = sst [smem:[#allocation6]] [#allocation5]
    %48 = sst [smem:[#allocation7]] [#allocation4]
  $region21: #{graph_resnet_forward.1} parent=0 // pred_fallthru
    _
  %50 = shalt.err (0)
  %s52 = sshll.u32 [#allocation2], 4
  %s53 = int_to_ptr.vmem [resolvable:$true] %s52
  %55 = dma.hbm_to_vmem [thread:$0]  %s3, 1024, %s53, [#allocation3]
  %s56 = scalar_lea.hbm %s3, 1024
  %s57 = scalar_lea.vmem [#allocation2], 64
  %s58 = scalar_lea.sflag [#allocation3], 1
  // Predicated region
  $region22: #{graph_resnet_forward.1} parent=0 // pred_check
    _
  $region23: #{graph_resnet_forward.1} parent=0 // pred_check_branch
    %60 = sbr.rel target = $region25
  $region24: #{graph_resnet_forward.1} parent=0 // pred_region
    %61 = sst [smem:[#allocation6]] [#allocation9]
    %62 = sst [smem:[#allocation7]] [#allocation8]
  $region25: #{graph_resnet_forward.1} parent=0 // pred_fallthru
    _
  %64 = shalt.err (0)
  %s66 = sshll.u32 %s57, 4
  %s67 = int_to_ptr.vmem [resolvable:$true] %s66
  %69 = dma.hbm_to_vmem [thread:$0]  %s56, 1024, %s67, %s58
  %s70 = smul.u32 4, 16
  %s71 = smul.u32 %s70, 1
  %s72 = sshll.u32 %s71, 4
  %73 = dma.done [#allocation3], %s72
  %v74 = vld [vmem:[#allocation2] sm:$0xff]
  %v75 = vld [vmem:[#allocation2 + $0x8] sm:$0xff]
  %v76 = vld [vmem:[#allocation2 + $0x10] sm:$0xff]
  %v77 = vld [vmem:[#allocation2 + $0x18] sm:$0xff]
  %v78 = vld [vmem:[#allocation2 + $0x20] sm:$0xff]
  %v79 = vld [vmem:[#allocation2 + $0x28] sm:$0xff]
  %v80 = vld [vmem:[#allocation2 + $0x30] sm:$0xff]
  %v81 = vld [vmem:[#allocation2 + $0x38] sm:$0xff]
  %v82 = vld [vmem:[%s4] sm:$0x1]
  %v83 = vpack.c.bf16 %v30, %v29
  %v84 = vpack.c.bf16 %v32, %v31
  %v85 = vpack.c.bf16 %v34, %v33
  %v86 = vpack.c.bf16 %v36, %v35
  %87 = vmatprep.subr.bf16.mxu0 0
  %88 = vmatpush1.bf16.msra.mxu0 %v74
  %89 = vmatprep.subr.bf16.mxu0 0
  %90 = vmatpush1.bf16.msra.mxu0 %v75
  %91 = vmatprep.subr.bf16.mxu0 0
  %92 = vmatpush1.bf16.msra.mxu0 %v76
  %93 = vmatprep.subr.bf16.mxu0 0
  %94 = vmatpush1.bf16.msra.mxu0 %v77
  %95 = vmatprep.subr.bf16.mxu0 0
  %96 = vmatpush1.bf16.msra.mxu0 %v78
  %97 = vmatprep.subr.bf16.mxu0 0
  %98 = vmatpush1.bf16.msra.mxu0 %v79
  %99 = vmatprep.subr.bf16.mxu0 0
  %100 = vmatpush1.bf16.msra.mxu0 %v80
  %101 = vmatprep.subr.bf16.mxu0 0
  %102 = vmatpush1.bf16.msra.mxu0 %v81
  %103 = vmatprep.subr.bf16.mxu0 0
  %104 = vmatpush1.bf16.msra.mxu0 0
  %105 = vmatprep.subr.bf16.mxu0 0
  %106 = vmatpush1.bf16.msra.mxu0 0
  %107 = vmatprep.subr.bf16.mxu0 0
  %108 = vmatpush1.bf16.msra.mxu0 0
  %109 = vmatprep.subr.bf16.mxu0 0
  %110 = vmatpush1.bf16.msra.mxu0 0
  %111 = vmatprep.subr.bf16.mxu0 0
  %112 = vmatpush1.bf16.msra.mxu0 0
  %113 = vmatprep.subr.bf16.mxu0 0
  %114 = vmatpush1.bf16.msra.mxu0 0
  %115 = vmatprep.subr.bf16.mxu0 0
  %116 = vmatpush1.bf16.msra.mxu0 0
  %117 = vmatprep.subr.bf16.mxu0 0
  %118 = vmatpush1.bf16.msra.mxu0 0
  %119 = vmatprep.mubr.bf16.mxu0 0
  %120 = vmatmul.mubr.bf16.gmra.mrb[0].mxu0 %v83
  %v121 = vpop.f32.mrb[0].mxu0
  %v122 = vadd.f32 0.0, %v121
  %v123 = vpop.f32.mrb[0].mxu0
  %v124 = vpop.f32.mrb[0].mxu0
  %v125 = vadd.f32 0.0, %v124
  %v126 = vpop.f32.mrb[0].mxu0
  %127 = vmatprep.mubr.bf16.mxu0 0
  %128 = vmatmul.mubr.bf16.gmra.mrb[0].mxu0 %v84
  %v129 = vpop.f32.mrb[0].mxu0
  %v130 = vadd.f32 0.0, %v129
  %v131 = vpop.f32.mrb[0].mxu0
  %v132 = vpop.f32.mrb[0].mxu0
  %v133 = vadd.f32 0.0, %v132
  %v134 = vpop.f32.mrb[0].mxu0
  %135 = vmatprep.mubr.bf16.mxu0 0
  %136 = vmatmul.mubr.bf16.gmra.mrb[0].mxu0 %v85
  %v137 = vpop.f32.mrb[0].mxu0
  %v138 = vadd.f32 0.0, %v137
  %v139 = vpop.f32.mrb[0].mxu0
  %v140 = vpop.f32.mrb[0].mxu0
  %v141 = vadd.f32 0.0, %v140
  %v142 = vpop.f32.mrb[0].mxu0
  %143 = vmatprep.mubr.bf16.mxu0 0
  %144 = vmatmul.mubr.bf16.gmra.mrb[0].mxu0 %v86
  %v145 = vpop.f32.mrb[0].mxu0
  %v146 = vadd.f32 0.0, %v145
  %v147 = vpop.f32.mrb[0].mxu0
  %v148 = vpop.f32.mrb[0].mxu0
  %v149 = vadd.f32 0.0, %v148
  %v150 = vpop.f32.mrb[0].mxu0
  %151 = vdwg.mxu0
  %v152 = vpack.c.bf16 %v125, %v122
  %v153 = vpack.c.bf16 %v133, %v130
  %v154 = vpack.c.bf16 %v141, %v138
  %v155 = vpack.c.bf16 %v149, %v146
  %v157 = vlaneseq
  %v158 = vshrl.u32 %v157, 7
  %v159 = vsub.s32 0, %v158
  %v160 = vrot.slane %v82, %v159
  %v170 = vunpack.c.l.b16 %v21
  %v171 = vunpack.c.l.b16 %v22
  %v172 = vunpack.c.l.b16 %v23
  %v173 = vunpack.c.l.b16 %v24
  %v174 = vunpack.c.l.b16 %v25
  %v175 = vunpack.c.l.b16 %v26
  %v176 = vunpack.c.l.b16 %v27
  %v177 = vunpack.c.l.b16 %v28
  %v178 = vpack.c.b16 %v171, %v170
  %v179 = vpack.c.b16 %v173, %v172
  %v180 = vpack.c.b16 %v175, %v174
  %v181 = vpack.c.b16 %v177, %v176
  %vm182 = vcmask 523264
  %v184 = vsel %vm182, %v178, 0
  %v187 = vsel %vm182, %v179, 0
  %v190 = vsel %vm182, %v180, 0
  %v193 = vsel %vm182, %v181, 0
  %195 = vmatprep.subr.bf16.mxu0 0
  %196 = vmatpush1.bf16.msra.mxu0 %v152
  %197 = vmatprep.subr.bf16.mxu0 0
  %198 = vmatpush1.bf16.msra.mxu0 %v153
  %199 = vmatprep.subr.bf16.mxu0 0
  %200 = vmatpush1.bf16.msra.mxu0 %v154
  %201 = vmatprep.subr.bf16.mxu0 0
  %202 = vmatpush1.bf16.msra.mxu0 %v155
  %203 = vmatprep.subr.bf16.mxu0 0
  %204 = vmatpush1.bf16.msra.mxu0 0
  %205 = vmatprep.subr.bf16.mxu0 0
  %206 = vmatpush1.bf16.msra.mxu0 0
  %207 = vmatprep.subr.bf16.mxu0 0
  %208 = vmatpush1.bf16.msra.mxu0 0
  %209 = vmatprep.subr.bf16.mxu0 0
  %210 = vmatpush1.bf16.msra.mxu0 0
  %211 = vmatprep.subr.bf16.mxu0 0
  %212 = vmatpush1.bf16.msra.mxu0 0
  %213 = vmatprep.subr.bf16.mxu0 0
  %214 = vmatpush1.bf16.msra.mxu0 0
  %215 = vmatprep.subr.bf16.mxu0 0
  %216 = vmatpush1.bf16.msra.mxu0 0
  %217 = vmatprep.subr.bf16.mxu0 0
  %218 = vmatpush1.bf16.msra.mxu0 0
  %219 = vmatprep.subr.bf16.mxu0 0
  %220 = vmatpush1.bf16.msra.mxu0 0
  %221 = vmatprep.subr.bf16.mxu0 0
  %222 = vmatpush1.bf16.msra.mxu0 0
  %223 = vmatprep.subr.bf16.mxu0 0
  %224 = vmatpush1.bf16.msra.mxu0 0
  %225 = vmatprep.subr.bf16.mxu0 0
  %226 = vmatpush1.bf16.msra.mxu0 0
  %227 = vmatprep.mubr.bf16.mxu0 0
  %228 = vmatmul.mubr.bf16.gmra.mrb[0].mxu0 %v184
  %v229 = vpop.f32.mrb[0].mxu0
  %v230 = vadd.f32 %v160, %v229
  %v231 = vpop.f32.mrb[0].mxu0
  %v232 = vpop.f32.mrb[0].mxu0
  %v233 = vadd.f32 %v160, %v232
  %v234 = vpop.f32.mrb[0].mxu0
  %235 = vmatprep.mubr.bf16.mxu0 0
  %236 = vmatmul.mubr.bf16.gmra.mrb[0].mxu0 %v187
  %v237 = vpop.f32.mrb[0].mxu0
  %v238 = vadd.f32 %v160, %v237
  %v239 = vpop.f32.mrb[0].mxu0
  %v240 = vpop.f32.mrb[0].mxu0
  %v241 = vadd.f32 %v160, %v240
  %v242 = vpop.f32.mrb[0].mxu0
  %243 = vmatprep.mubr.bf16.mxu0 0
  %244 = vmatmul.mubr.bf16.gmra.mrb[0].mxu0 %v190
  %v245 = vpop.f32.mrb[0].mxu0
  %v246 = vadd.f32 %v160, %v245
  %v247 = vpop.f32.mrb[0].mxu0
  %v248 = vpop.f32.mrb[0].mxu0
  %v249 = vadd.f32 %v160, %v248
  %v250 = vpop.f32.mrb[0].mxu0
  %251 = vmatprep.mubr.bf16.mxu0 0
  %252 = vmatmul.mubr.bf16.gmra.mrb[0].mxu0 %v193
  %v253 = vpop.f32.mrb[0].mxu0
  %v254 = vadd.f32 %v160, %v253
  %v255 = vpop.f32.mrb[0].mxu0
  %v256 = vpop.f32.mrb[0].mxu0
  %v257 = vadd.f32 %v160, %v256
  %v258 = vpop.f32.mrb[0].mxu0
  %259 = vdwg.mxu0
  %v260 = vmax.f32 %v230, 0.0
  %v261 = vmax.f32 %v233, 0.0
  %v262 = vmax.f32 %v238, 0.0
  %v263 = vmax.f32 %v241, 0.0
  %v264 = vmax.f32 %v246, 0.0
  %v265 = vmax.f32 %v249, 0.0
  %v266 = vmax.f32 %v254, 0.0
  %v267 = vmax.f32 %v257, 0.0
  %s268 = scalar_lea.hbm %s3, 2048
  // Predicated region
  $region26: #{graph_resnet_forward.1} parent=0 // pred_check
    _
  $region27: #{graph_resnet_forward.1} parent=0 // pred_check_branch
    %270 = sbr.rel target = $region29
  $region28: #{graph_resnet_forward.1} parent=0 // pred_region
    %271 = sst [smem:[#allocation6]] [#allocation11]
    %272 = sst [smem:[#allocation7]] [#allocation10]
  $region29: #{graph_resnet_forward.1} parent=0 // pred_fallthru
    _
  %274 = shalt.err (0)
  %s276 = sshll.u32 [#allocation2], 4
  %s277 = int_to_ptr.vmem [resolvable:$true] %s276
  %279 = dma.hbm_to_vmem [thread:$0]  %s268, 1024, %s277, [#allocation3]
  %s280 = sshll.u32 %s71, 4
  %281 = dma.done %s58, %s280
  %v282 = vld [vmem:[%s57] sm:$0xff]
  %v283 = vld [vmem:[%s57 + $0x8] sm:$0xff]
  %v284 = vld [vmem:[%s57 + $0x10] sm:$0xff]
  %v285 = vld [vmem:[%s57 + $0x18] sm:$0xff]
  %v286 = vld [vmem:[%s57 + $0x20] sm:$0xff]
  %v287 = vld [vmem:[%s57 + $0x28] sm:$0xff]
  %v288 = vld [vmem:[%s57 + $0x30] sm:$0xff]
  %v289 = vld [vmem:[%s57 + $0x38] sm:$0xff]
  %s290 = scalar_lea.vmem %s4, 1
  %v291 = vld [vmem:[%s290] sm:$0x1]
  %v292 = vpack.c.bf16 %v261, %v260
  %v293 = vpack.c.bf16 %v263, %v262
  %v294 = vpack.c.bf16 %v265, %v264
  %v295 = vpack.c.bf16 %v267, %v266
  %296 = vmatprep.subr.bf16.mxu0 0
  %297 = vmatpush1.bf16.msra.mxu0 %v282
  %298 = vmatprep.subr.bf16.mxu0 0
  %299 = vmatpush1.bf16.msra.mxu0 %v283
  %300 = vmatprep.subr.bf16.mxu0 0
  %301 = vmatpush1.bf16.msra.mxu0 %v284
  %302 = vmatprep.subr.bf16.mxu0 0
  %303 = vmatpush1.bf16.msra.mxu0 %v285
  %304 = vmatprep.subr.bf16.mxu0 0
  %305 = vmatpush1.bf16.msra.mxu0 %v286
  %306 = vmatprep.subr.bf16.mxu0 0
  %307 = vmatpush1.bf16.msra.mxu0 %v287
  %308 = vmatprep.subr.bf16.mxu0 0
  %309 = vmatpush1.bf16.msra.mxu0 %v288
  %310 = vmatprep.subr.bf16.mxu0 0
  %311 = vmatpush1.bf16.msra.mxu0 %v289
  %312 = vmatprep.subr.bf16.mxu0 0
  %313 = vmatpush1.bf16.msra.mxu0 0
  %314 = vmatprep.subr.bf16.mxu0 0
  %315 = vmatpush1.bf16.msra.mxu0 0
  %316 = vmatprep.subr.bf16.mxu0 0
  %317 = vmatpush1.bf16.msra.mxu0 0
  %318 = vmatprep.subr.bf16.mxu0 0
  %319 = vmatpush1.bf16.msra.mxu0 0
  %320 = vmatprep.subr.bf16.mxu0 0
  %321 = vmatpush1.bf16.msra.mxu0 0
  %322 = vmatprep.subr.bf16.mxu0 0
  %323 = vmatpush1.bf16.msra.mxu0 0
  %324 = vmatprep.subr.bf16.mxu0 0
  %325 = vmatpush1.bf16.msra.mxu0 0
  %326 = vmatprep.subr.bf16.mxu0 0
  %327 = vmatpush1.bf16.msra.mxu0 0
  %328 = vmatprep.mubr.bf16.mxu0 0
  %329 = vmatmul.mubr.bf16.gmra.mrb[0].mxu0 %v292
  %v330 = vpop.f32.mrb[0].mxu0
  %v331 = vadd.f32 0.0, %v330
  %v332 = vpop.f32.mrb[0].mxu0
  %v333 = vpop.f32.mrb[0].mxu0
  %v334 = vadd.f32 0.0, %v333
  %v335 = vpop.f32.mrb[0].mxu0
  %336 = vmatprep.mubr.bf16.mxu0 0
  %337 = vmatmul.mubr.bf16.gmra.mrb[0].mxu0 %v293
  %v338 = vpop.f32.mrb[0].mxu0
  %v339 = vadd.f32 0.0, %v338
  %v340 = vpop.f32.mrb[0].mxu0
  %v341 = vpop.f32.mrb[0].mxu0
  %v342 = vadd.f32 0.0, %v341
  %v343 = vpop.f32.mrb[0].mxu0
  %344 = vmatprep.mubr.bf16.mxu0 0
  %345 = vmatmul.mubr.bf16.gmra.mrb[0].mxu0 %v294
  %v346 = vpop.f32.mrb[0].mxu0
  %v347 = vadd.f32 0.0, %v346
  %v348 = vpop.f32.mrb[0].mxu0
  %v349 = vpop.f32.mrb[0].mxu0
  %v350 = vadd.f32 0.0, %v349
  %v351 = vpop.f32.mrb[0].mxu0
  %352 = vmatprep.mubr.bf16.mxu0 0
  %353 = vmatmul.mubr.bf16.gmra.mrb[0].mxu0 %v295
  %v354 = vpop.f32.mrb[0].mxu0
  %v355 = vadd.f32 0.0, %v354
  %v356 = vpop.f32.mrb[0].mxu0
  %v357 = vpop.f32.mrb[0].mxu0
  %v358 = vadd.f32 0.0, %v357
  %v359 = vpop.f32.mrb[0].mxu0
  %360 = vdwg.mxu0
  %v361 = vpack.c.bf16 %v334, %v331
  %v362 = vpack.c.bf16 %v342, %v339
  %v363 = vpack.c.bf16 %v350, %v347
  %v364 = vpack.c.bf16 %v358, %v355
  %v366 = vlaneseq
  %v367 = vshrl.u32 %v366, 7
  %v368 = vsub.s32 0, %v367
  %v369 = vrot.slane %v291, %v368
  %371 = vmatprep.subr.bf16.mxu0 0
  %372 = vmatpush1.bf16.msra.mxu0 %v361
  %373 = vmatprep.subr.bf16.mxu0 0
  %374 = vmatpush1.bf16.msra.mxu0 %v362
  %375 = vmatprep.subr.bf16.mxu0 0
  %376 = vmatpush1.bf16.msra.mxu0 %v363
  %377 = vmatprep.subr.bf16.mxu0 0
  %378 = vmatpush1.bf16.msra.mxu0 %v364
  %379 = vmatprep.subr.bf16.mxu0 0
  %380 = vmatpush1.bf16.msra.mxu0 0
  %381 = vmatprep.subr.bf16.mxu0 0
  %382 = vmatpush1.bf16.msra.mxu0 0
  %383 = vmatprep.subr.bf16.mxu0 0
  %384 = vmatpush1.bf16.msra.mxu0 0
  %385 = vmatprep.subr.bf16.mxu0 0
  %386 = vmatpush1.bf16.msra.mxu0 0
  %387 = vmatprep.subr.bf16.mxu0 0
  %388 = vmatpush1.bf16.msra.mxu0 0
  %389 = vmatprep.subr.bf16.mxu0 0
  %390 = vmatpush1.bf16.msra.mxu0 0
  %391 = vmatprep.subr.bf16.mxu0 0
  %392 = vmatpush1.bf16.msra.mxu0 0
  %393 = vmatprep.subr.bf16.mxu0 0
  %394 = vmatpush1.bf16.msra.mxu0 0
  %395 = vmatprep.subr.bf16.mxu0 0
  %396 = vmatpush1.bf16.msra.mxu0 0
  %397 = vmatprep.subr.bf16.mxu0 0
  %398 = vmatpush1.bf16.msra.mxu0 0
  %399 = vmatprep.subr.bf16.mxu0 0
  %400 = vmatpush1.bf16.msra.mxu0 0
  %401 = vmatprep.subr.bf16.mxu0 0
  %402 = vmatpush1.bf16.msra.mxu0 0
  %403 = vmatprep.mubr.bf16.mxu0 0
  %404 = vmatmul.mubr.bf16.gmra.mrb[0].mxu0 %v184
  %v405 = vpop.f32.mrb[0].mxu0
  %v406 = vadd.f32 %v369, %v405
  %v407 = vpop.f32.mrb[0].mxu0
  %v408 = vpop.f32.mrb[0].mxu0
  %v409 = vadd.f32 %v369, %v408
  %v410 = vpop.f32.mrb[0].mxu0
  %411 = vmatprep.mubr.bf16.mxu0 0
  %412 = vmatmul.mubr.bf16.gmra.mrb[0].mxu0 %v187
  %v413 = vpop.f32.mrb[0].mxu0
  %v414 = vadd.f32 %v369, %v413
  %v415 = vpop.f32.mrb[0].mxu0
  %v416 = vpop.f32.mrb[0].mxu0
  %v417 = vadd.f32 %v369, %v416
  %v418 = vpop.f32.mrb[0].mxu0
  %419 = vmatprep.mubr.bf16.mxu0 0
  %420 = vmatmul.mubr.bf16.gmra.mrb[0].mxu0 %v190
  %v421 = vpop.f32.mrb[0].mxu0
  %v422 = vadd.f32 %v369, %v421
  %v423 = vpop.f32.mrb[0].mxu0
  %v424 = vpop.f32.mrb[0].mxu0
  %v425 = vadd.f32 %v369, %v424
  %v426 = vpop.f32.mrb[0].mxu0
  %427 = vmatprep.mubr.bf16.mxu0 0
  %428 = vmatmul.mubr.bf16.gmra.mrb[0].mxu0 %v193
  %v429 = vpop.f32.mrb[0].mxu0
  %v430 = vadd.f32 %v369, %v429
  %v431 = vpop.f32.mrb[0].mxu0
  %v432 = vpop.f32.mrb[0].mxu0
  %v433 = vadd.f32 %v369, %v432
  %v434 = vpop.f32.mrb[0].mxu0
  %435 = vdwg.mxu0
  %v436 = vmax.f32 %v406, 0.0
  %v437 = vmax.f32 %v409, 0.0
  %v438 = vmax.f32 %v414, 0.0
  %v439 = vmax.f32 %v417, 0.0
  %v440 = vmax.f32 %v422, 0.0
  %v441 = vmax.f32 %v425, 0.0
  %v442 = vmax.f32 %v430, 0.0
  %v443 = vmax.f32 %v433, 0.0
  %v444 = vadd.f32 %v37, %v436
  %v445 = vadd.f32 %v38, %v437
  %v446 = vadd.f32 %v39, %v438
  %v447 = vadd.f32 %v40, %v439
  %v448 = vadd.f32 %v41, %v440
  %v449 = vadd.f32 %v42, %v441
  %v450 = vadd.f32 %v43, %v442
  %v451 = vadd.f32 %v44, %v443
  %v452 = vmul.f32 %v444, 0.5
  %v453 = vmul.f32 %v445, 0.5
  %v454 = vmul.f32 %v446, 0.5
  %v455 = vmul.f32 %v447, 0.5
  %v456 = vmul.f32 %v448, 0.5
  %v457 = vmul.f32 %v449, 0.5
  %v458 = vmul.f32 %v450, 0.5
  %v459 = vmul.f32 %v451, 0.5
  %s460 = scalar_lea.hbm %s3, 3072
  // Predicated region
  $region30: #{graph_resnet_forward.1} parent=0 // pred_check
    _
  $region31: #{graph_resnet_forward.1} parent=0 // pred_check_branch
    %462 = sbr.rel target = $region33
  $region32: #{graph_resnet_forward.1} parent=0 // pred_region
    %463 = sst [smem:[#allocation6]] [#allocation13]
    %464 = sst [smem:[#allocation7]] [#allocation12]
  $region33: #{graph_resnet_forward.1} parent=0 // pred_fallthru
    _
  %466 = shalt.err (0)
  %s468 = sshll.u32 %s57, 4
  %s469 = int_to_ptr.vmem [resolvable:$true] %s468
  %471 = dma.hbm_to_vmem [thread:$0]  %s460, 1024, %s469, %s58
  %s472 = sshll.u32 %s71, 4
  %473 = dma.done [#allocation3], %s472
  %v474 = vld [vmem:[#allocation2] sm:$0xff]
  %v475 = vld [vmem:[#allocation2 + $0x8] sm:$0xff]
  %v476 = vld [vmem:[#allocation2 + $0x10] sm:$0xff]
  %v477 = vld [vmem:[#allocation2 + $0x18] sm:$0xff]
  %v478 = vld [vmem:[#allocation2 + $0x20] sm:$0xff]
  %v479 = vld [vmem:[#allocation2 + $0x28] sm:$0xff]
  %v480 = vld [vmem:[#allocation2 + $0x30] sm:$0xff]
  %v481 = vld [vmem:[#allocation2 + $0x38] sm:$0xff]
  %s482 = scalar_lea.vmem %s4, 2
  %v483 = vld [vmem:[%s482] sm:$0x1]
  %v484 = vpack.c.bf16 %v453, %v452
  %v485 = vpack.c.bf16 %v455, %v454
  %v486 = vpack.c.bf16 %v457, %v456
  %v487 = vpack.c.bf16 %v459, %v458
  %488 = vmatprep.subr.bf16.mxu0 0
  %489 = vmatpush1.bf16.msra.mxu0 %v474
  %490 = vmatprep.subr.bf16.mxu0 0
  %491 = vmatpush1.bf16.msra.mxu0 %v475
  %492 = vmatprep.subr.bf16.mxu0 0
  %493 = vmatpush1.bf16.msra.mxu0 %v476
  %494 = vmatprep.subr.bf16.mxu0 0
  %495 = vmatpush1.bf16.msra.mxu0 %v477
  %496 = vmatprep.subr.bf16.mxu0 0
  %497 = vmatpush1.bf16.msra.mxu0 %v478
  %498 = vmatprep.subr.bf16.mxu0 0
  %499 = vmatpush1.bf16.msra.mxu0 %v479
  %500 = vmatprep.subr.bf16.mxu0 0
  %501 = vmatpush1.bf16.msra.mxu0 %v480
  %502 = vmatprep.subr.bf16.mxu0 0
  %503 = vmatpush1.bf16.msra.mxu0 %v481
  %504 = vmatprep.subr.bf16.mxu0 0
  %505 = vmatpush1.bf16.msra.mxu0 0
  %506 = vmatprep.subr.bf16.mxu0 0
  %507 = vmatpush1.bf16.msra.mxu0 0
  %508 = vmatprep.subr.bf16.mxu0 0
  %509 = vmatpush1.bf16.msra.mxu0 0
  %510 = vmatprep.subr.bf16.mxu0 0
  %511 = vmatpush1.bf16.msra.mxu0 0
  %512 = vmatprep.subr.bf16.mxu0 0
  %513 = vmatpush1.bf16.msra.mxu0 0
  %514 = vmatprep.subr.bf16.mxu0 0
  %515 = vmatpush1.bf16.msra.mxu0 0
  %516 = vmatprep.subr.bf16.mxu0 0
  %517 = vmatpush1.bf16.msra.mxu0 0
  %518 = vmatprep.subr.bf16.mxu0 0
  %519 = vmatpush1.bf16.msra.mxu0 0
  %520 = vmatprep.mubr.bf16.mxu0 0
  %521 = vmatmul.mubr.bf16.gmra.mrb[0].mxu0 %v484
  %v522 = vpop.f32.mrb[0].mxu0
  %v523 = vadd.f32 0.0, %v522
  %v524 = vpop.f32.mrb[0].mxu0
  %v525 = vpop.f32.mrb[0].mxu0
  %v526 = vadd.f32 0.0, %v525
  %v527 = vpop.f32.mrb[0].mxu0
  %528 = vmatprep.mubr.bf16.mxu0 0
  %529 = vmatmul.mubr.bf16.gmra.mrb[0].mxu0 %v485
  %v530 = vpop.f32.mrb[0].mxu0
  %v531 = vadd.f32 0.0, %v530
  %v532 = vpop.f32.mrb[0].mxu0
  %v533 = vpop.f32.mrb[0].mxu0
  %v534 = vadd.f32 0.0, %v533
  %v535 = vpop.f32.mrb[0].mxu0
  %536 = vmatprep.mubr.bf16.mxu0 0
  %537 = vmatmul.mubr.bf16.gmra.mrb[0].mxu0 %v486
  %v538 = vpop.f32.mrb[0].mxu0
  %v539 = vadd.f32 0.0, %v538
  %v540 = vpop.f32.mrb[0].mxu0
  %v541 = vpop.f32.mrb[0].mxu0
  %v542 = vadd.f32 0.0, %v541
  %v543 = vpop.f32.mrb[0].mxu0
  %544 = vmatprep.mubr.bf16.mxu0 0
  %545 = vmatmul.mubr.bf16.gmra.mrb[0].mxu0 %v487
  %v546 = vpop.f32.mrb[0].mxu0
  %v547 = vadd.f32 0.0, %v546
  %v548 = vpop.f32.mrb[0].mxu0
  %v549 = vpop.f32.mrb[0].mxu0
  %v550 = vadd.f32 0.0, %v549
  %v551 = vpop.f32.mrb[0].mxu0
  %552 = vdwg.mxu0
  %v553 = vpack.c.bf16 %v526, %v523
  %v554 = vpack.c.bf16 %v534, %v531
  %v555 = vpack.c.bf16 %v542, %v539
  %v556 = vpack.c.bf16 %v550, %v547
  %v558 = vlaneseq
  %v559 = vshrl.u32 %v558, 7
  %v560 = vsub.s32 0, %v559
  %v561 = vrot.slane %v483, %v560
  %563 = vmatprep.subr.bf16.mxu0 0
  %564 = vmatpush1.bf16.msra.mxu0 %v553
  %565 = vmatprep.subr.bf16.mxu0 0
  %566 = vmatpush1.bf16.msra.mxu0 %v554
  %567 = vmatprep.subr.bf16.mxu0 0
  %568 = vmatpush1.bf16.msra.mxu0 %v555
  %569 = vmatprep.subr.bf16.mxu0 0
  %570 = vmatpush1.bf16.msra.mxu0 %v556
  %571 = vmatprep.subr.bf16.mxu0 0
  %572 = vmatpush1.bf16.msra.mxu0 0
  %573 = vmatprep.subr.bf16.mxu0 0
  %574 = vmatpush1.bf16.msra.mxu0 0
  %575 = vmatprep.subr.bf16.mxu0 0
  %576 = vmatpush1.bf16.msra.mxu0 0
  %577 = vmatprep.subr.bf16.mxu0 0
  %578 = vmatpush1.bf16.msra.mxu0 0
  %579 = vmatprep.subr.bf16.mxu0 0
  %580 = vmatpush1.bf16.msra.mxu0 0
  %581 = vmatprep.subr.bf16.mxu0 0
  %582 = vmatpush1.bf16.msra.mxu0 0
  %583 = vmatprep.subr.bf16.mxu0 0
  %584 = vmatpush1.bf16.msra.mxu0 0
  %585 = vmatprep.subr.bf16.mxu0 0
  %586 = vmatpush1.bf16.msra.mxu0 0
  %587 = vmatprep.subr.bf16.mxu0 0
  %588 = vmatpush1.bf16.msra.mxu0 0
  %589 = vmatprep.subr.bf16.mxu0 0
  %590 = vmatpush1.bf16.msra.mxu0 0
  %591 = vmatprep.subr.bf16.mxu0 0
  %592 = vmatpush1.bf16.msra.mxu0 0
  %593 = vmatprep.subr.bf16.mxu0 0
  %594 = vmatpush1.bf16.msra.mxu0 0
  %595 = vmatprep.mubr.bf16.mxu0 0
  %596 = vmatmul.mubr.bf16.gmra.mrb[0].mxu0 %v184
  %v597 = vpop.f32.mrb[0].mxu0
  %v598 = vadd.f32 %v561, %v597
  %v599 = vpop.f32.mrb[0].mxu0
  %v600 = vpop.f32.mrb[0].mxu0
  %v601 = vadd.f32 %v561, %v600
  %v602 = vpop.f32.mrb[0].mxu0
  %603 = vmatprep.mubr.bf16.mxu0 0
  %604 = vmatmul.mubr.bf16.gmra.mrb[0].mxu0 %v187
  %v605 = vpop.f32.mrb[0].mxu0
  %v606 = vadd.f32 %v561, %v605
  %v607 = vpop.f32.mrb[0].mxu0
  %v608 = vpop.f32.mrb[0].mxu0
  %v609 = vadd.f32 %v561, %v608
  %v610 = vpop.f32.mrb[0].mxu0
  %611 = vmatprep.mubr.bf16.mxu0 0
  %612 = vmatmul.mubr.bf16.gmra.mrb[0].mxu0 %v190
  %v613 = vpop.f32.mrb[0].mxu0
  %v614 = vadd.f32 %v561, %v613
  %v615 = vpop.f32.mrb[0].mxu0
  %v616 = vpop.f32.mrb[0].mxu0
  %v617 = vadd.f32 %v561, %v616
  %v618 = vpop.f32.mrb[0].mxu0
  %619 = vmatprep.mubr.bf16.mxu0 0
  %620 = vmatmul.mubr.bf16.gmra.mrb[0].mxu0 %v193
  %v621 = vpop.f32.mrb[0].mxu0
  %v622 = vadd.f32 %v561, %v621
  %v623 = vpop.f32.mrb[0].mxu0
  %v624 = vpop.f32.mrb[0].mxu0
  %v625 = vadd.f32 %v561, %v624
  %v626 = vpop.f32.mrb[0].mxu0
  %627 = vdwg.mxu0
  %v628 = vmax.f32 %v598, 0.0
  %v629 = vmax.f32 %v601, 0.0
  %v630 = vmax.f32 %v606, 0.0
  %v631 = vmax.f32 %v609, 0.0
  %v632 = vmax.f32 %v614, 0.0
  %v633 = vmax.f32 %v617, 0.0
  %v634 = vmax.f32 %v622, 0.0
  %v635 = vmax.f32 %v625, 0.0
  %s636 = scalar_lea.hbm %s3, 4096
  // Predicated region
  $region34: #{graph_resnet_forward.1} parent=0 // pred_check
    _
  $region35: #{graph_resnet_forward.1} parent=0 // pred_check_branch
    %638 = sbr.rel target = $region37
  $region36: #{graph_resnet_forward.1} parent=0 // pred_region
    %639 = sst [smem:[#allocation6]] [#allocation15]
    %640 = sst [smem:[#allocation7]] [#allocation14]
  $region37: #{graph_resnet_forward.1} parent=0 // pred_fallthru
    _
  %642 = shalt.err (0)
  %s644 = sshll.u32 [#allocation2], 4
  %s645 = int_to_ptr.vmem [resolvable:$true] %s644
  %647 = dma.hbm_to_vmem [thread:$0]  %s636, 1024, %s645, [#allocation3]
  %s648 = sshll.u32 %s71, 4
  %649 = dma.done %s58, %s648
  %v650 = vld [vmem:[%s57] sm:$0xff]
  %v651 = vld [vmem:[%s57 + $0x8] sm:$0xff]
  %v652 = vld [vmem:[%s57 + $0x10] sm:$0xff]
  %v653 = vld [vmem:[%s57 + $0x18] sm:$0xff]
  %v654 = vld [vmem:[%s57 + $0x20] sm:$0xff]
  %v655 = vld [vmem:[%s57 + $0x28] sm:$0xff]
  %v656 = vld [vmem:[%s57 + $0x30] sm:$0xff]
  %v657 = vld [vmem:[%s57 + $0x38] sm:$0xff]
  %s658 = scalar_lea.vmem %s4, 3
  %v659 = vld [vmem:[%s658] sm:$0x1]
  %v660 = vpack.c.bf16 %v629, %v628
  %v661 = vpack.c.bf16 %v631, %v630
  %v662 = vpack.c.bf16 %v633, %v632
  %v663 = vpack.c.bf16 %v635, %v634
  %664 = vmatprep.subr.bf16.mxu0 0
  %665 = vmatpush1.bf16.msra.mxu0 %v650
  %666 = vmatprep.subr.bf16.mxu0 0
  %667 = vmatpush1.bf16.msra.mxu0 %v651
  %668 = vmatprep.subr.bf16.mxu0 0
  %669 = vmatpush1.bf16.msra.mxu0 %v652
  %670 = vmatprep.subr.bf16.mxu0 0
  %671 = vmatpush1.bf16.msra.mxu0 %v653
  %672 = vmatprep.subr.bf16.mxu0 0
  %673 = vmatpush1.bf16.msra.mxu0 %v654
  %674 = vmatprep.subr.bf16.mxu0 0
  %675 = vmatpush1.bf16.msra.mxu0 %v655
  %676 = vmatprep.subr.bf16.mxu0 0
  %677 = vmatpush1.bf16.msra.mxu0 %v656
  %678 = vmatprep.subr.bf16.mxu0 0
  %679 = vmatpush1.bf16.msra.mxu0 %v657
  %680 = vmatprep.subr.bf16.mxu0 0
  %681 = vmatpush1.bf16.msra.mxu0 0
  %682 = vmatprep.subr.bf16.mxu0 0
  %683 = vmatpush1.bf16.msra.mxu0 0
  %684 = vmatprep.subr.bf16.mxu0 0
  %685 = vmatpush1.bf16.msra.mxu0 0
  %686 = vmatprep.subr.bf16.mxu0 0
  %687 = vmatpush1.bf16.msra.mxu0 0
  %688 = vmatprep.subr.bf16.mxu0 0
  %689 = vmatpush1.bf16.msra.mxu0 0
  %690 = vmatprep.subr.bf16.mxu0 0
  %691 = vmatpush1.bf16.msra.mxu0 0
  %692 = vmatprep.subr.bf16.mxu0 0
  %693 = vmatpush1.bf16.msra.mxu0 0
  %694 = vmatprep.subr.bf16.mxu0 0
  %695 = vmatpush1.bf16.msra.mxu0 0
  %696 = vmatprep.mubr.bf16.mxu0 0
  %697 = vmatmul.mubr.bf16.gmra.mrb[0].mxu0 %v660
  %v698 = vpop.f32.mrb[0].mxu0
  %v699 = vadd.f32 0.0, %v698
  %v700 = vpop.f32.mrb[0].mxu0
  %v701 = vpop.f32.mrb[0].mxu0
  %v702 = vadd.f32 0.0, %v701
  %v703 = vpop.f32.mrb[0].mxu0
  %704 = vmatprep.mubr.bf16.mxu0 0
  %705 = vmatmul.mubr.bf16.gmra.mrb[0].mxu0 %v661
  %v706 = vpop.f32.mrb[0].mxu0
  %v707 = vadd.f32 0.0, %v706
  %v708 = vpop.f32.mrb[0].mxu0
  %v709 = vpop.f32.mrb[0].mxu0
  %v710 = vadd.f32 0.0, %v709
  %v711 = vpop.f32.mrb[0].mxu0
  %712 = vmatprep.mubr.bf16.mxu0 0
  %713 = vmatmul.mubr.bf16.gmra.mrb[0].mxu0 %v662
  %v714 = vpop.f32.mrb[0].mxu0
  %v715 = vadd.f32 0.0, %v714
  %v716 = vpop.f32.mrb[0].mxu0
  %v717 = vpop.f32.mrb[0].mxu0
  %v718 = vadd.f32 0.0, %v717
  %v719 = vpop.f32.mrb[0].mxu0
  %720 = vmatprep.mubr.bf16.mxu0 0
  %721 = vmatmul.mubr.bf16.gmra.mrb[0].mxu0 %v663
  %v722 = vpop.f32.mrb[0].mxu0
  %v723 = vadd.f32 0.0, %v722
  %v724 = vpop.f32.mrb[0].mxu0
  %v725 = vpop.f32.mrb[0].mxu0
  %v726 = vadd.f32 0.0, %v725
  %v727 = vpop.f32.mrb[0].mxu0
  %728 = vdwg.mxu0
  %v729 = vpack.c.bf16 %v702, %v699
  %v730 = vpack.c.bf16 %v710, %v707
  %v731 = vpack.c.bf16 %v718, %v715
  %v732 = vpack.c.bf16 %v726, %v723
  %v734 = vlaneseq
  %v735 = vshrl.u32 %v734, 7
  %v736 = vsub.s32 0, %v735
  %v737 = vrot.slane %v659, %v736
  %739 = vmatprep.subr.bf16.mxu0 0
  %740 = vmatpush1.bf16.msra.mxu0 %v729
  %741 = vmatprep.subr.bf16.mxu0 0
  %742 = vmatpush1.bf16.msra.mxu0 %v730
  %743 = vmatprep.subr.bf16.mxu0 0
  %744 = vmatpush1.bf16.msra.mxu0 %v731
  %745 = vmatprep.subr.bf16.mxu0 0
  %746 = vmatpush1.bf16.msra.mxu0 %v732
  %747 = vmatprep.subr.bf16.mxu0 0
  %748 = vmatpush1.bf16.msra.mxu0 0
  %749 = vmatprep.subr.bf16.mxu0 0
  %750 = vmatpush1.bf16.msra.mxu0 0
  %751 = vmatprep.subr.bf16.mxu0 0
  %752 = vmatpush1.bf16.msra.mxu0 0
  %753 = vmatprep.subr.bf16.mxu0 0
  %754 = vmatpush1.bf16.msra.mxu0 0
  %755 = vmatprep.subr.bf16.mxu0 0
  %756 = vmatpush1.bf16.msra.mxu0 0
  %757 = vmatprep.subr.bf16.mxu0 0
  %758 = vmatpush1.bf16.msra.mxu0 0
  %759 = vmatprep.subr.bf16.mxu0 0
  %760 = vmatpush1.bf16.msra.mxu0 0
  %761 = vmatprep.subr.bf16.mxu0 0
  %762 = vmatpush1.bf16.msra.mxu0 0
  %763 = vmatprep.subr.bf16.mxu0 0
  %764 = vmatpush1.bf16.msra.mxu0 0
  %765 = vmatprep.subr.bf16.mxu0 0
  %766 = vmatpush1.bf16.msra.mxu0 0
  %767 = vmatprep.subr.bf16.mxu0 0
  %768 = vmatpush1.bf16.msra.mxu0 0
  %769 = vmatprep.subr.bf16.mxu0 0
  %770 = vmatpush1.bf16.msra.mxu0 0
  %771 = vmatprep.mubr.bf16.mxu0 0
  %772 = vmatmul.mubr.bf16.gmra.mrb[0].mxu0 %v184
  %v773 = vpop.f32.mrb[0].mxu0
  %v774 = vadd.f32 %v737, %v773
  %v775 = vpop.f32.mrb[0].mxu0
  %v776 = vpop.f32.mrb[0].mxu0
  %v777 = vadd.f32 %v737, %v776
  %v778 = vpop.f32.mrb[0].mxu0
  %779 = vmatprep.mubr.bf16.mxu0 0
  %780 = vmatmul.mubr.bf16.gmra.mrb[0].mxu0 %v187
  %v781 = vpop.f32.mrb[0].mxu0
  %v782 = vadd.f32 %v737, %v781
  %v783 = vpop.f32.mrb[0].mxu0
  %v784 = vpop.f32.mrb[0].mxu0
  %v785 = vadd.f32 %v737, %v784
  %v786 = vpop.f32.mrb[0].mxu0
  %787 = vmatprep.mubr.bf16.mxu0 0
  %788 = vmatmul.mubr.bf16.gmra.mrb[0].mxu0 %v190
  %v789 = vpop.f32.mrb[0].mxu0
  %v790 = vadd.f32 %v737, %v789
  %v791 = vpop.f32.mrb[0].mxu0
  %v792 = vpop.f32.mrb[0].mxu0
  %v793 = vadd.f32 %v737, %v792
  %v794 = vpop.f32.mrb[0].mxu0
  %795 = vmatprep.mubr.bf16.mxu0 0
  %796 = vmatmul.mubr.bf16.gmra.mrb[0].mxu0 %v193
  %v797 = vpop.f32.mrb[0].mxu0
  %v798 = vadd.f32 %v737, %v797
  %v799 = vpop.f32.mrb[0].mxu0
  %v800 = vpop.f32.mrb[0].mxu0
  %v801 = vadd.f32 %v737, %v800
  %v802 = vpop.f32.mrb[0].mxu0
  %803 = vdwg.mxu0
  %v804 = vmax.f32 %v774, 0.0
  %v805 = vmax.f32 %v777, 0.0
  %v806 = vmax.f32 %v782, 0.0
  %v807 = vmax.f32 %v785, 0.0
  %v808 = vmax.f32 %v790, 0.0
  %v809 = vmax.f32 %v793, 0.0
  %v810 = vmax.f32 %v798, 0.0
  %v811 = vmax.f32 %v801, 0.0
  %v812 = vadd.f32 %v452, %v804
  %v813 = vadd.f32 %v453, %v805
  %v814 = vadd.f32 %v454, %v806
  %v815 = vadd.f32 %v455, %v807
  %v816 = vadd.f32 %v456, %v808
  %v817 = vadd.f32 %v457, %v809
  %v818 = vadd.f32 %v458, %v810
  %v819 = vadd.f32 %v459, %v811
  %v820 = vmul.f32 %v812, 0.5
  %v821 = vmul.f32 %v813, 0.5
  %v822 = vmul.f32 %v814, 0.5
  %v823 = vmul.f32 %v815, 0.5
  %v824 = vmul.f32 %v816, 0.5
  %v825 = vmul.f32 %v817, 0.5
  %v826 = vmul.f32 %v818, 0.5
  %v827 = vmul.f32 %v819, 0.5
  %s828 = scalar_lea.hbm %s3, 5120
  // Predicated region
  $region38: #{graph_resnet_forward.1} parent=0 // pred_check
    _
  $region39: #{graph_resnet_forward.1} parent=0 // pred_check_branch
    %830 = sbr.rel target = $region41
  $region40: #{graph_resnet_forward.1} parent=0 // pred_region
    %831 = sst [smem:[#allocation6]] [#allocation17]
    %832 = sst [smem:[#allocation7]] [#allocation16]
  $region41: #{graph_resnet_forward.1} parent=0 // pred_fallthru
    _
  %834 = shalt.err (0)
  %s836 = sshll.u32 %s57, 4
  %s837 = int_to_ptr.vmem [resolvable:$true] %s836
  %839 = dma.hbm_to_vmem [thread:$0]  %s828, 1024, %s837, %s58
  %s840 = sshll.u32 %s71, 4
  %841 = dma.done [#allocation3], %s840
  %v842 = vld [vmem:[#allocation2] sm:$0xff]
  %v843 = vld [vmem:[#allocation2 + $0x8] sm:$0xff]
  %v844 = vld [vmem:[#allocation2 + $0x10] sm:$0xff]
  %v845 = vld [vmem:[#allocation2 + $0x18] sm:$0xff]
  %v846 = vld [vmem:[#allocation2 + $0x20] sm:$0xff]
  %v847 = vld [vmem:[#allocation2 + $0x28] sm:$0xff]
  %v848 = vld [vmem:[#allocation2 + $0x30] sm:$0xff]
  %v849 = vld [vmem:[#allocation2 + $0x38] sm:$0xff]
  %s850 = scalar_lea.vmem %s4, 4
  %v851 = vld [vmem:[%s850] sm:$0x1]
  %v852 = vpack.c.bf16 %v821, %v820
  %v853 = vpack.c.bf16 %v823, %v822
  %v854 = vpack.c.bf16 %v825, %v824
  %v855 = vpack.c.bf16 %v827, %v826
  %856 = vmatprep.subr.bf16.mxu0 0
  %857 = vmatpush1.bf16.msra.mxu0 %v842
  %858 = vmatprep.subr.bf16.mxu0 0
  %859 = vmatpush1.bf16.msra.mxu0 %v843
  %860 = vmatprep.subr.bf16.mxu0 0
  %861 = vmatpush1.bf16.msra.mxu0 %v844
  %862 = vmatprep.subr.bf16.mxu0 0
  %863 = vmatpush1.bf16.msra.mxu0 %v845
  %864 = vmatprep.subr.bf16.mxu0 0
  %865 = vmatpush1.bf16.msra.mxu0 %v846
  %866 = vmatprep.subr.bf16.mxu0 0
  %867 = vmatpush1.bf16.msra.mxu0 %v847
  %868 = vmatprep.subr.bf16.mxu0 0
  %869 = vmatpush1.bf16.msra.mxu0 %v848
  %870 = vmatprep.subr.bf16.mxu0 0
  %871 = vmatpush1.bf16.msra.mxu0 %v849
  %872 = vmatprep.subr.bf16.mxu0 0
  %873 = vmatpush1.bf16.msra.mxu0 0
  %874 = vmatprep.subr.bf16.mxu0 0
  %875 = vmatpush1.bf16.msra.mxu0 0
  %876 = vmatprep.subr.bf16.mxu0 0
  %877 = vmatpush1.bf16.msra.mxu0 0
  %878 = vmatprep.subr.bf16.mxu0 0
  %879 = vmatpush1.bf16.msra.mxu0 0
  %880 = vmatprep.subr.bf16.mxu0 0
  %881 = vmatpush1.bf16.msra.mxu0 0
  %882 = vmatprep.subr.bf16.mxu0 0
  %883 = vmatpush1.bf16.msra.mxu0 0
  %884 = vmatprep.subr.bf16.mxu0 0
  %885 = vmatpush1.bf16.msra.mxu0 0
  %886 = vmatprep.subr.bf16.mxu0 0
  %887 = vmatpush1.bf16.msra.mxu0 0
  %888 = vmatprep.mubr.bf16.mxu0 0
  %889 = vmatmul.mubr.bf16.gmra.mrb[0].mxu0 %v852
  %v890 = vpop.f32.mrb[0].mxu0
  %v891 = vadd.f32 0.0, %v890
  %v892 = vpop.f32.mrb[0].mxu0
  %v893 = vpop.f32.mrb[0].mxu0
  %v894 = vadd.f32 0.0, %v893
  %v895 = vpop.f32.mrb[0].mxu0
  %896 = vmatprep.mubr.bf16.mxu0 0
  %897 = vmatmul.mubr.bf16.gmra.mrb[0].mxu0 %v853
  %v898 = vpop.f32.mrb[0].mxu0
  %v899 = vadd.f32 0.0, %v898
  %v900 = vpop.f32.mrb[0].mxu0
  %v901 = vpop.f32.mrb[0].mxu0
  %v902 = vadd.f32 0.0, %v901
  %v903 = vpop.f32.mrb[0].mxu0
  %904 = vmatprep.mubr.bf16.mxu0 0
  %905 = vmatmul.mubr.bf16.gmra.mrb[0].mxu0 %v854
  %v906 = vpop.f32.mrb[0].mxu0
  %v907 = vadd.f32 0.0, %v906
  %v908 = vpop.f32.mrb[0].mxu0
  %v909 = vpop.f32.mrb[0].mxu0
  %v910 = vadd.f32 0.0, %v909
  %v911 = vpop.f32.mrb[0].mxu0
  %912 = vmatprep.mubr.bf16.mxu0 0
  %913 = vmatmul.mubr.bf16.gmra.mrb[0].mxu0 %v855
  %v914 = vpop.f32.mrb[0].mxu0
  %v915 = vadd.f32 0.0, %v914
  %v916 = vpop.f32.mrb[0].mxu0
  %v917 = vpop.f32.mrb[0].mxu0
  %v918 = vadd.f32 0.0, %v917
  %v919 = vpop.f32.mrb[0].mxu0
  %920 = vdwg.mxu0
  %v921 = vpack.c.bf16 %v894, %v891
  %v922 = vpack.c.bf16 %v902, %v899
  %v923 = vpack.c.bf16 %v910, %v907
  %v924 = vpack.c.bf16 %v918, %v915
  %v926 = vlaneseq
  %v927 = vshrl.u32 %v926, 7
  %v928 = vsub.s32 0, %v927
  %v929 = vrot.slane %v851, %v928
  %931 = vmatprep.subr.bf16.mxu0 0
  %932 = vmatpush1.bf16.msra.mxu0 %v921
  %933 = vmatprep.subr.bf16.mxu0 0
  %934 = vmatpush1.bf16.msra.mxu0 %v922
  %935 = vmatprep.subr.bf16.mxu0 0
  %936 = vmatpush1.bf16.msra.mxu0 %v923
  %937 = vmatprep.subr.bf16.mxu0 0
  %938 = vmatpush1.bf16.msra.mxu0 %v924
  %939 = vmatprep.subr.bf16.mxu0 0
  %940 = vmatpush1.bf16.msra.mxu0 0
  %941 = vmatprep.subr.bf16.mxu0 0
  %942 = vmatpush1.bf16.msra.mxu0 0
  %943 = vmatprep.subr.bf16.mxu0 0
  %944 = vmatpush1.bf16.msra.mxu0 0
  %945 = vmatprep.subr.bf16.mxu0 0
  %946 = vmatpush1.bf16.msra.mxu0 0
  %947 = vmatprep.subr.bf16.mxu0 0
  %948 = vmatpush1.bf16.msra.mxu0 0
  %949 = vmatprep.subr.bf16.mxu0 0
  %950 = vmatpush1.bf16.msra.mxu0 0
  %951 = vmatprep.subr.bf16.mxu0 0
  %952 = vmatpush1.bf16.msra.mxu0 0
  %953 = vmatprep.subr.bf16.mxu0 0
  %954 = vmatpush1.bf16.msra.mxu0 0
  %955 = vmatprep.subr.bf16.mxu0 0
  %956 = vmatpush1.bf16.msra.mxu0 0
  %957 = vmatprep.subr.bf16.mxu0 0
  %958 = vmatpush1.bf16.msra.mxu0 0
  %959 = vmatprep.subr.bf16.mxu0 0
  %960 = vmatpush1.bf16.msra.mxu0 0
  %961 = vmatprep.subr.bf16.mxu0 0
  %962 = vmatpush1.bf16.msra.mxu0 0
  %963 = vmatprep.mubr.bf16.mxu0 0
  %964 = vmatmul.mubr.bf16.gmra.mrb[0].mxu0 %v184
  %v965 = vpop.f32.mrb[0].mxu0
  %v966 = vadd.f32 %v929, %v965
  %v967 = vpop.f32.mrb[0].mxu0
  %v968 = vpop.f32.mrb[0].mxu0
  %v969 = vadd.f32 %v929, %v968
  %v970 = vpop.f32.mrb[0].mxu0
  %971 = vmatprep.mubr.bf16.mxu0 0
  %972 = vmatmul.mubr.bf16.gmra.mrb[0].mxu0 %v187
  %v973 = vpop.f32.mrb[0].mxu0
  %v974 = vadd.f32 %v929, %v973
  %v975 = vpop.f32.mrb[0].mxu0
  %v976 = vpop.f32.mrb[0].mxu0
  %v977 = vadd.f32 %v929, %v976
  %v978 = vpop.f32.mrb[0].mxu0
  %979 = vmatprep.mubr.bf16.mxu0 0
  %980 = vmatmul.mubr.bf16.gmra.mrb[0].mxu0 %v190
  %v981 = vpop.f32.mrb[0].mxu0
  %v982 = vadd.f32 %v929, %v981
  %v983 = vpop.f32.mrb[0].mxu0
  %v984 = vpop.f32.mrb[0].mxu0
  %v985 = vadd.f32 %v929, %v984
  %v986 = vpop.f32.mrb[0].mxu0
  %987 = vmatprep.mubr.bf16.mxu0 0
  %988 = vmatmul.mubr.bf16.gmra.mrb[0].mxu0 %v193
  %v989 = vpop.f32.mrb[0].mxu0
  %v990 = vadd.f32 %v929, %v989
  %v991 = vpop.f32.mrb[0].mxu0
  %v992 = vpop.f32.mrb[0].mxu0
  %v993 = vadd.f32 %v929, %v992
  %v994 = vpop.f32.mrb[0].mxu0
  %995 = vdwg.mxu0
  %v996 = vmax.f32 %v966, 0.0
  %v997 = vmax.f32 %v969, 0.0
  %v998 = vmax.f32 %v974, 0.0
  %v999 = vmax.f32 %v977, 0.0
  %v1000 = vmax.f32 %v982, 0.0
  %v1001 = vmax.f32 %v985, 0.0
  %v1002 = vmax.f32 %v990, 0.0
  %v1003 = vmax.f32 %v993, 0.0
  %s1004 = scalar_lea.hbm %s3, 6144
  // Predicated region
  $region42: #{graph_resnet_forward.1} parent=0 // pred_check
    _
  $region43: #{graph_resnet_forward.1} parent=0 // pred_check_branch
    %1006 = sbr.rel target = $region45
  $region44: #{graph_resnet_forward.1} parent=0 // pred_region
    %1007 = sst [smem:[#allocation6]] [#allocation19]
    %1008 = sst [smem:[#allocation7]] [#allocation18]
  $region45: #{graph_resnet_forward.1} parent=0 // pred_fallthru
    _
  %1010 = shalt.err (0)
  %s1012 = sshll.u32 [#allocation2], 4
  %s1013 = int_to_ptr.vmem [resolvable:$true] %s1012
  %1015 = dma.hbm_to_vmem [thread:$0]  %s1004, 1024, %s1013, [#allocation3]
  %s1016 = sshll.u32 %s71, 4
  %1017 = dma.done %s58, %s1016
  %v1018 = vld [vmem:[%s57] sm:$0xff]
  %v1019 = vld [vmem:[%s57 + $0x8] sm:$0xff]
  %v1020 = vld [vmem:[%s57 + $0x10] sm:$0xff]
  %v1021 = vld [vmem:[%s57 + $0x18] sm:$0xff]
  %v1022 = vld [vmem:[%s57 + $0x20] sm:$0xff]
  %v1023 = vld [vmem:[%s57 + $0x28] sm:$0xff]
  %v1024 = vld [vmem:[%s57 + $0x30] sm:$0xff]
  %v1025 = vld [vmem:[%s57 + $0x38] sm:$0xff]
  %s1026 = scalar_lea.vmem %s4, 5
  %v1027 = vld [vmem:[%s1026] sm:$0x1]
  %v1028 = vpack.c.bf16 %v997, %v996
  %v1029 = vpack.c.bf16 %v999, %v998
  %v1030 = vpack.c.bf16 %v1001, %v1000
  %v1031 = vpack.c.bf16 %v1003, %v1002
  %1032 = vmatprep.subr.bf16.mxu0 0
  %1033 = vmatpush1.bf16.msra.mxu0 %v1018
  %1034 = vmatprep.subr.bf16.mxu0 0
  %1035 = vmatpush1.bf16.msra.mxu0 %v1019
  %1036 = vmatprep.subr.bf16.mxu0 0
  %1037 = vmatpush1.bf16.msra.mxu0 %v1020
  %1038 = vmatprep.subr.bf16.mxu0 0
  %1039 = vmatpush1.bf16.msra.mxu0 %v1021
  %1040 = vmatprep.subr.bf16.mxu0 0
  %1041 = vmatpush1.bf16.msra.mxu0 %v1022
  %1042 = vmatprep.subr.bf16.mxu0 0
  %1043 = vmatpush1.bf16.msra.mxu0 %v1023
  %1044 = vmatprep.subr.bf16.mxu0 0
  %1045 = vmatpush1.bf16.msra.mxu0 %v1024
  %1046 = vmatprep.subr.bf16.mxu0 0
  %1047 = vmatpush1.bf16.msra.mxu0 %v1025
  %1048 = vmatprep.subr.bf16.mxu0 0
  %1049 = vmatpush1.bf16.msra.mxu0 0
  %1050 = vmatprep.subr.bf16.mxu0 0
  %1051 = vmatpush1.bf16.msra.mxu0 0
  %1052 = vmatprep.subr.bf16.mxu0 0
  %1053 = vmatpush1.bf16.msra.mxu0 0
  %1054 = vmatprep.subr.bf16.mxu0 0
  %1055 = vmatpush1.bf16.msra.mxu0 0
  %1056 = vmatprep.subr.bf16.mxu0 0
  %1057 = vmatpush1.bf16.msra.mxu0 0
  %1058 = vmatprep.subr.bf16.mxu0 0
  %1059 = vmatpush1.bf16.msra.mxu0 0
  %1060 = vmatprep.subr.bf16.mxu0 0
  %1061 = vmatpush1.bf16.msra.mxu0 0
  %1062 = vmatprep.subr.bf16.mxu0 0
  %1063 = vmatpush1.bf16.msra.mxu0 0
  %1064 = vmatprep.mubr.bf16.mxu0 0
  %1065 = vmatmul.mubr.bf16.gmra.mrb[0].mxu0 %v1028
  %v1066 = vpop.f32.mrb[0].mxu0
  %v1067 = vadd.f32 0.0, %v1066
  %v1068 = vpop.f32.mrb[0].mxu0
  %v1069 = vpop.f32.mrb[0].mxu0
  %v1070 = vadd.f32 0.0, %v1069
  %v1071 = vpop.f32.mrb[0].mxu0
  %1072 = vmatprep.mubr.bf16.mxu0 0
  %1073 = vmatmul.mubr.bf16.gmra.mrb[0].mxu0 %v1029
  %v1074 = vpop.f32.mrb[0].mxu0
  %v1075 = vadd.f32 0.0, %v1074
  %v1076 = vpop.f32.mrb[0].mxu0
  %v1077 = vpop.f32.mrb[0].mxu0
  %v1078 = vadd.f32 0.0, %v1077
  %v1079 = vpop.f32.mrb[0].mxu0
  %1080 = vmatprep.mubr.bf16.mxu0 0
  %1081 = vmatmul.mubr.bf16.gmra.mrb[0].mxu0 %v1030
  %v1082 = vpop.f32.mrb[0].mxu0
  %v1083 = vadd.f32 0.0, %v1082
  %v1084 = vpop.f32.mrb[0].mxu0
  %v1085 = vpop.f32.mrb[0].mxu0
  %v1086 = vadd.f32 0.0, %v1085
  %v1087 = vpop.f32.mrb[0].mxu0
  %1088 = vmatprep.mubr.bf16.mxu0 0
  %1089 = vmatmul.mubr.bf16.gmra.mrb[0].mxu0 %v1031
  %v1090 = vpop.f32.mrb[0].mxu0
  %v1091 = vadd.f32 0.0, %v1090
  %v1092 = vpop.f32.mrb[0].mxu0
  %v1093 = vpop.f32.mrb[0].mxu0
  %v1094 = vadd.f32 0.0, %v1093
  %v1095 = vpop.f32.mrb[0].mxu0
  %1096 = vdwg.mxu0
  %v1097 = vpack.c.bf16 %v1070, %v1067
  %v1098 = vpack.c.bf16 %v1078, %v1075
  %v1099 = vpack.c.bf16 %v1086, %v1083
  %v1100 = vpack.c.bf16 %v1094, %v1091
  %v1102 = vlaneseq
  %v1103 = vshrl.u32 %v1102, 7
  %v1104 = vsub.s32 0, %v1103
  %v1105 = vrot.slane %v1027, %v1104
  %1107 = vmatprep.subr.bf16.mxu0 0
  %1108 = vmatpush1.bf16.msra.mxu0 %v1097
  %1109 = vmatprep.subr.bf16.mxu0 0
  %1110 = vmatpush1.bf16.msra.mxu0 %v1098
  %1111 = vmatprep.subr.bf16.mxu0 0
  %1112 = vmatpush1.bf16.msra.mxu0 %v1099
  %1113 = vmatprep.subr.bf16.mxu0 0
  %1114 = vmatpush1.bf16.msra.mxu0 %v1100
  %1115 = vmatprep.subr.bf16.mxu0 0
  %1116 = vmatpush1.bf16.msra.mxu0 0
  %1117 = vmatprep.subr.bf16.mxu0 0
  %1118 = vmatpush1.bf16.msra.mxu0 0
  %1119 = vmatprep.subr.bf16.mxu0 0
  %1120 = vmatpush1.bf16.msra.mxu0 0
  %1121 = vmatprep.subr.bf16.mxu0 0
  %1122 = vmatpush1.bf16.msra.mxu0 0
  %1123 = vmatprep.subr.bf16.mxu0 0
  %1124 = vmatpush1.bf16.msra.mxu0 0
  %1125 = vmatprep.subr.bf16.mxu0 0
  %1126 = vmatpush1.bf16.msra.mxu0 0
  %1127 = vmatprep.subr.bf16.mxu0 0
  %1128 = vmatpush1.bf16.msra.mxu0 0
  %1129 = vmatprep.subr.bf16.mxu0 0
  %1130 = vmatpush1.bf16.msra.mxu0 0
  %1131 = vmatprep.subr.bf16.mxu0 0
  %1132 = vmatpush1.bf16.msra.mxu0 0
  %1133 = vmatprep.subr.bf16.mxu0 0
  %1134 = vmatpush1.bf16.msra.mxu0 0
  %1135 = vmatprep.subr.bf16.mxu0 0
  %1136 = vmatpush1.bf16.msra.mxu0 0
  %1137 = vmatprep.subr.bf16.mxu0 0
  %1138 = vmatpush1.bf16.msra.mxu0 0
  %1139 = vmatprep.mubr.bf16.mxu0 0
  %1140 = vmatmul.mubr.bf16.gmra.mrb[0].mxu0 %v184
  %v1141 = vpop.f32.mrb[0].mxu0
  %v1142 = vadd.f32 %v1105, %v1141
  %v1143 = vpop.f32.mrb[0].mxu0
  %v1144 = vpop.f32.mrb[0].mxu0
  %v1145 = vadd.f32 %v1105, %v1144
  %v1146 = vpop.f32.mrb[0].mxu0
  %1147 = vmatprep.mubr.bf16.mxu0 0
  %1148 = vmatmul.mubr.bf16.gmra.mrb[0].mxu0 %v187
  %v1149 = vpop.f32.mrb[0].mxu0
  %v1150 = vadd.f32 %v1105, %v1149
  %v1151 = vpop.f32.mrb[0].mxu0
  %v1152 = vpop.f32.mrb[0].mxu0
  %v1153 = vadd.f32 %v1105, %v1152
  %v1154 = vpop.f32.mrb[0].mxu0
  %1155 = vmatprep.mubr.bf16.mxu0 0
  %1156 = vmatmul.mubr.bf16.gmra.mrb[0].mxu0 %v190
  %v1157 = vpop.f32.mrb[0].mxu0
  %v1158 = vadd.f32 %v1105, %v1157
  %v1159 = vpop.f32.mrb[0].mxu0
  %v1160 = vpop.f32.mrb[0].mxu0
  %v1161 = vadd.f32 %v1105, %v1160
  %v1162 = vpop.f32.mrb[0].mxu0
  %1163 = vmatprep.mubr.bf16.mxu0 0
  %1164 = vmatmul.mubr.bf16.gmra.mrb[0].mxu0 %v193
  %v1165 = vpop.f32.mrb[0].mxu0
  %v1166 = vadd.f32 %v1105, %v1165
  %v1167 = vpop.f32.mrb[0].mxu0
  %v1168 = vpop.f32.mrb[0].mxu0
  %v1169 = vadd.f32 %v1105, %v1168
  %v1170 = vpop.f32.mrb[0].mxu0
  %1171 = vdwg.mxu0
  %v1172 = vmax.f32 %v1142, 0.0
  %v1173 = vmax.f32 %v1145, 0.0
  %v1174 = vmax.f32 %v1150, 0.0
  %v1175 = vmax.f32 %v1153, 0.0
  %v1176 = vmax.f32 %v1158, 0.0
  %v1177 = vmax.f32 %v1161, 0.0
  %v1178 = vmax.f32 %v1166, 0.0
  %v1179 = vmax.f32 %v1169, 0.0
  %v1180 = vadd.f32 %v820, %v1172
  %v1181 = vadd.f32 %v821, %v1173
  %v1182 = vadd.f32 %v822, %v1174
  %v1183 = vadd.f32 %v823, %v1175
  %v1184 = vadd.f32 %v824, %v1176
  %v1185 = vadd.f32 %v825, %v1177
  %v1186 = vadd.f32 %v826, %v1178
  %v1187 = vadd.f32 %v827, %v1179
  %v1188 = vmul.f32 %v1180, 0.5
  %v1189 = vmul.f32 %v1181, 0.5
  %v1190 = vmul.f32 %v1182, 0.5
  %v1191 = vmul.f32 %v1183, 0.5
  %v1192 = vmul.f32 %v1184, 0.5
  %v1193 = vmul.f32 %v1185, 0.5
  %v1194 = vmul.f32 %v1186, 0.5
  %v1195 = vmul.f32 %v1187, 0.5
  %s1196 = scalar_lea.hbm %s3, 7168
  // Predicated region
  $region46: #{graph_resnet_forward.1} parent=0 // pred_check
    _
  $region47: #{graph_resnet_forward.1} parent=0 // pred_check_branch
    %1198 = sbr.rel target = $region49
  $region48: #{graph_resnet_forward.1} parent=0 // pred_region
    %1199 = sst [smem:[#allocation6]] [#allocation21]
    %1200 = sst [smem:[#allocation7]] [#allocation20]
  $region49: #{graph_resnet_forward.1} parent=0 // pred_fallthru
    _
  %1202 = shalt.err (0)
  %s1204 = sshll.u32 %s57, 4
  %s1205 = int_to_ptr.vmem [resolvable:$true] %s1204
  %1207 = dma.hbm_to_vmem [thread:$0]  %s1196, 1024, %s1205, %s58
  %s1208 = sshll.u32 %s71, 4
  %1209 = dma.done [#allocation3], %s1208
  %v1210 = vld [vmem:[#allocation2] sm:$0xff]
  %v1211 = vld [vmem:[#allocation2 + $0x8] sm:$0xff]
  %v1212 = vld [vmem:[#allocation2 + $0x10] sm:$0xff]
  %v1213 = vld [vmem:[#allocation2 + $0x18] sm:$0xff]
  %v1214 = vld [vmem:[#allocation2 + $0x20] sm:$0xff]
  %v1215 = vld [vmem:[#allocation2 + $0x28] sm:$0xff]
  %v1216 = vld [vmem:[#allocation2 + $0x30] sm:$0xff]
  %v1217 = vld [vmem:[#allocation2 + $0x38] sm:$0xff]
  %s1218 = scalar_lea.vmem %s4, 6
  %v1219 = vld [vmem:[%s1218] sm:$0x1]
  %v1220 = vpack.c.bf16 %v1189, %v1188
  %v1221 = vpack.c.bf16 %v1191, %v1190
  %v1222 = vpack.c.bf16 %v1193, %v1192
  %v1223 = vpack.c.bf16 %v1195, %v1194
  %1224 = vmatprep.subr.bf16.mxu0 0
  %1225 = vmatpush1.bf16.msra.mxu0 %v1210
  %1226 = vmatprep.subr.bf16.mxu0 0
  %1227 = vmatpush1.bf16.msra.mxu0 %v1211
  %1228 = vmatprep.subr.bf16.mxu0 0
  %1229 = vmatpush1.bf16.msra.mxu0 %v1212
  %1230 = vmatprep.subr.bf16.mxu0 0
  %1231 = vmatpush1.bf16.msra.mxu0 %v1213
  %1232 = vmatprep.subr.bf16.mxu0 0
  %1233 = vmatpush1.bf16.msra.mxu0 %v1214
  %1234 = vmatprep.subr.bf16.mxu0 0
  %1235 = vmatpush1.bf16.msra.mxu0 %v1215
  %1236 = vmatprep.subr.bf16.mxu0 0
  %1237 = vmatpush1.bf16.msra.mxu0 %v1216
  %1238 = vmatprep.subr.bf16.mxu0 0
  %1239 = vmatpush1.bf16.msra.mxu0 %v1217
  %1240 = vmatprep.subr.bf16.mxu0 0
  %1241 = vmatpush1.bf16.msra.mxu0 0
  %1242 = vmatprep.subr.bf16.mxu0 0
  %1243 = vmatpush1.bf16.msra.mxu0 0
  %1244 = vmatprep.subr.bf16.mxu0 0
  %1245 = vmatpush1.bf16.msra.mxu0 0
  %1246 = vmatprep.subr.bf16.mxu0 0
  %1247 = vmatpush1.bf16.msra.mxu0 0
  %1248 = vmatprep.subr.bf16.mxu0 0
  %1249 = vmatpush1.bf16.msra.mxu0 0
  %1250 = vmatprep.subr.bf16.mxu0 0
  %1251 = vmatpush1.bf16.msra.mxu0 0
  %1252 = vmatprep.subr.bf16.mxu0 0
  %1253 = vmatpush1.bf16.msra.mxu0 0
  %1254 = vmatprep.subr.bf16.mxu0 0
  %1255 = vmatpush1.bf16.msra.mxu0 0
  %1256 = vmatprep.mubr.bf16.mxu0 0
  %1257 = vmatmul.mubr.bf16.gmra.mrb[0].mxu0 %v1220
  %v1258 = vpop.f32.mrb[0].mxu0
  %v1259 = vadd.f32 0.0, %v1258
  %v1260 = vpop.f32.mrb[0].mxu0
  %v1261 = vpop.f32.mrb[0].mxu0
  %v1262 = vadd.f32 0.0, %v1261
  %v1263 = vpop.f32.mrb[0].mxu0
  %1264 = vmatprep.mubr.bf16.mxu0 0
  %1265 = vmatmul.mubr.bf16.gmra.mrb[0].mxu0 %v1221
  %v1266 = vpop.f32.mrb[0].mxu0
  %v1267 = vadd.f32 0.0, %v1266
  %v1268 = vpop.f32.mrb[0].mxu0
  %v1269 = vpop.f32.mrb[0].mxu0
  %v1270 = vadd.f32 0.0, %v1269
  %v1271 = vpop.f32.mrb[0].mxu0
  %1272 = vmatprep.mubr.bf16.mxu0 0
  %1273 = vmatmul.mubr.bf16.gmra.mrb[0].mxu0 %v1222
  %v1274 = vpop.f32.mrb[0].mxu0
  %v1275 = vadd.f32 0.0, %v1274
  %v1276 = vpop.f32.mrb[0].mxu0
  %v1277 = vpop.f32.mrb[0].mxu0
  %v1278 = vadd.f32 0.0, %v1277
  %v1279 = vpop.f32.mrb[0].mxu0
  %1280 = vmatprep.mubr.bf16.mxu0 0
  %1281 = vmatmul.mubr.bf16.gmra.mrb[0].mxu0 %v1223
  %v1282 = vpop.f32.mrb[0].mxu0
  %v1283 = vadd.f32 0.0, %v1282
  %v1284 = vpop.f32.mrb[0].mxu0
  %v1285 = vpop.f32.mrb[0].mxu0
  %v1286 = vadd.f32 0.0, %v1285
  %v1287 = vpop.f32.mrb[0].mxu0
  %1288 = vdwg.mxu0
  %v1289 = vpack.c.bf16 %v1262, %v1259
  %v1290 = vpack.c.bf16 %v1270, %v1267
  %v1291 = vpack.c.bf16 %v1278, %v1275
  %v1292 = vpack.c.bf16 %v1286, %v1283
  %v1294 = vlaneseq
  %v1295 = vshrl.u32 %v1294, 7
  %v1296 = vsub.s32 0, %v1295
  %v1297 = vrot.slane %v1219, %v1296
  %1299 = vmatprep.subr.bf16.mxu0 0
  %1300 = vmatpush1.bf16.msra.mxu0 %v1289
  %1301 = vmatprep.subr.bf16.mxu0 0
  %1302 = vmatpush1.bf16.msra.mxu0 %v1290
  %1303 = vmatprep.subr.bf16.mxu0 0
  %1304 = vmatpush1.bf16.msra.mxu0 %v1291
  %1305 = vmatprep.subr.bf16.mxu0 0
  %1306 = vmatpush1.bf16.msra.mxu0 %v1292
  %1307 = vmatprep.subr.bf16.mxu0 0
  %1308 = vmatpush1.bf16.msra.mxu0 0
  %1309 = vmatprep.subr.bf16.mxu0 0
  %1310 = vmatpush1.bf16.msra.mxu0 0
  %1311 = vmatprep.subr.bf16.mxu0 0
  %1312 = vmatpush1.bf16.msra.mxu0 0
  %1313 = vmatprep.subr.bf16.mxu0 0
  %1314 = vmatpush1.bf16.msra.mxu0 0
  %1315 = vmatprep.subr.bf16.mxu0 0
  %1316 = vmatpush1.bf16.msra.mxu0 0
  %1317 = vmatprep.subr.bf16.mxu0 0
  %1318 = vmatpush1.bf16.msra.mxu0 0
  %1319 = vmatprep.subr.bf16.mxu0 0
  %1320 = vmatpush1.bf16.msra.mxu0 0
  %1321 = vmatprep.subr.bf16.mxu0 0
  %1322 = vmatpush1.bf16.msra.mxu0 0
  %1323 = vmatprep.subr.bf16.mxu0 0
  %1324 = vmatpush1.bf16.msra.mxu0 0
  %1325 = vmatprep.subr.bf16.mxu0 0
  %1326 = vmatpush1.bf16.msra.mxu0 0
  %1327 = vmatprep.subr.bf16.mxu0 0
  %1328 = vmatpush1.bf16.msra.mxu0 0
  %1329 = vmatprep.subr.bf16.mxu0 0
  %1330 = vmatpush1.bf16.msra.mxu0 0
  %1331 = vmatprep.mubr.bf16.mxu0 0
  %1332 = vmatmul.mubr.bf16.gmra.mrb[0].mxu0 %v184
  %v1333 = vpop.f32.mrb[0].mxu0
  %v1334 = vadd.f32 %v1297, %v1333
  %v1335 = vpop.f32.mrb[0].mxu0
  %v1336 = vpop.f32.mrb[0].mxu0
  %v1337 = vadd.f32 %v1297, %v1336
  %v1338 = vpop.f32.mrb[0].mxu0
  %1339 = vmatprep.mubr.bf16.mxu0 0
  %1340 = vmatmul.mubr.bf16.gmra.mrb[0].mxu0 %v187
  %v1341 = vpop.f32.mrb[0].mxu0
  %v1342 = vadd.f32 %v1297, %v1341
  %v1343 = vpop.f32.mrb[0].mxu0
  %v1344 = vpop.f32.mrb[0].mxu0
  %v1345 = vadd.f32 %v1297, %v1344
  %v1346 = vpop.f32.mrb[0].mxu0
  %1347 = vmatprep.mubr.bf16.mxu0 0
  %1348 = vmatmul.mubr.bf16.gmra.mrb[0].mxu0 %v190
  %v1349 = vpop.f32.mrb[0].mxu0
  %v1350 = vadd.f32 %v1297, %v1349
  %v1351 = vpop.f32.mrb[0].mxu0
  %v1352 = vpop.f32.mrb[0].mxu0
  %v1353 = vadd.f32 %v1297, %v1352
  %v1354 = vpop.f32.mrb[0].mxu0
  %1355 = vmatprep.mubr.bf16.mxu0 0
  %1356 = vmatmul.mubr.bf16.gmra.mrb[0].mxu0 %v193
  %v1357 = vpop.f32.mrb[0].mxu0
  %v1358 = vadd.f32 %v1297, %v1357
  %v1359 = vpop.f32.mrb[0].mxu0
  %v1360 = vpop.f32.mrb[0].mxu0
  %v1361 = vadd.f32 %v1297, %v1360
  %v1362 = vpop.f32.mrb[0].mxu0
  %1363 = vdwg.mxu0
  %v1364 = vmax.f32 %v1334, 0.0
  %v1365 = vmax.f32 %v1337, 0.0
  %v1366 = vmax.f32 %v1342, 0.0
  %v1367 = vmax.f32 %v1345, 0.0
  %v1368 = vmax.f32 %v1350, 0.0
  %v1369 = vmax.f32 %v1353, 0.0
  %v1370 = vmax.f32 %v1358, 0.0
  %v1371 = vmax.f32 %v1361, 0.0
  %s1372 = scalar_lea.hbm %s3, 8192
  // Predicated region
  $region50: #{graph_resnet_forward.1} parent=0 // pred_check
    _
  $region51: #{graph_resnet_forward.1} parent=0 // pred_check_branch
    %1374 = sbr.rel target = $region53
  $region52: #{graph_resnet_forward.1} parent=0 // pred_region
    %1375 = sst [smem:[#allocation6]] [#allocation23]
    %1376 = sst [smem:[#allocation7]] [#allocation22]
  $region53: #{graph_resnet_forward.1} parent=0 // pred_fallthru
    _
  %1378 = shalt.err (0)
  %s1380 = sshll.u32 [#allocation2], 4
  %s1381 = int_to_ptr.vmem [resolvable:$true] %s1380
  %1383 = dma.hbm_to_vmem [thread:$0]  %s1372, 1024, %s1381, [#allocation3]
  %s1384 = sshll.u32 %s71, 4
  %1385 = dma.done %s58, %s1384
  %v1386 = vld [vmem:[%s57] sm:$0xff]
  %v1387 = vld [vmem:[%s57 + $0x8] sm:$0xff]
  %v1388 = vld [vmem:[%s57 + $0x10] sm:$0xff]
  %v1389 = vld [vmem:[%s57 + $0x18] sm:$0xff]
  %v1390 = vld [vmem:[%s57 + $0x20] sm:$0xff]
  %v1391 = vld [vmem:[%s57 + $0x28] sm:$0xff]
  %v1392 = vld [vmem:[%s57 + $0x30] sm:$0xff]
  %v1393 = vld [vmem:[%s57 + $0x38] sm:$0xff]
  %s1394 = scalar_lea.vmem %s4, 7
  %v1395 = vld [vmem:[%s1394] sm:$0x1]
  %v1396 = vpack.c.bf16 %v1365, %v1364
  %v1397 = vpack.c.bf16 %v1367, %v1366
  %v1398 = vpack.c.bf16 %v1369, %v1368
  %v1399 = vpack.c.bf16 %v1371, %v1370
  %1400 = vmatprep.subr.bf16.mxu0 0
  %1401 = vmatpush1.bf16.msra.mxu0 %v1386
  %1402 = vmatprep.subr.bf16.mxu0 0
  %1403 = vmatpush1.bf16.msra.mxu0 %v1387
  %1404 = vmatprep.subr.bf16.mxu0 0
  %1405 = vmatpush1.bf16.msra.mxu0 %v1388
  %1406 = vmatprep.subr.bf16.mxu0 0
  %1407 = vmatpush1.bf16.msra.mxu0 %v1389
  %1408 = vmatprep.subr.bf16.mxu0 0
  %1409 = vmatpush1.bf16.msra.mxu0 %v1390
  %1410 = vmatprep.subr.bf16.mxu0 0
  %1411 = vmatpush1.bf16.msra.mxu0 %v1391
  %1412 = vmatprep.subr.bf16.mxu0 0
  %1413 = vmatpush1.bf16.msra.mxu0 %v1392
  %1414 = vmatprep.subr.bf16.mxu0 0
  %1415 = vmatpush1.bf16.msra.mxu0 %v1393
  %1416 = vmatprep.subr.bf16.mxu0 0
  %1417 = vmatpush1.bf16.msra.mxu0 0
  %1418 = vmatprep.subr.bf16.mxu0 0
  %1419 = vmatpush1.bf16.msra.mxu0 0
  %1420 = vmatprep.subr.bf16.mxu0 0
  %1421 = vmatpush1.bf16.msra.mxu0 0
  %1422 = vmatprep.subr.bf16.mxu0 0
  %1423 = vmatpush1.bf16.msra.mxu0 0
  %1424 = vmatprep.subr.bf16.mxu0 0
  %1425 = vmatpush1.bf16.msra.mxu0 0
  %1426 = vmatprep.subr.bf16.mxu0 0
  %1427 = vmatpush1.bf16.msra.mxu0 0
  %1428 = vmatprep.subr.bf16.mxu0 0
  %1429 = vmatpush1.bf16.msra.mxu0 0
  %1430 = vmatprep.subr.bf16.mxu0 0
  %1431 = vmatpush1.bf16.msra.mxu0 0
  %1432 = vmatprep.mubr.bf16.mxu0 0
  %1433 = vmatmul.mubr.bf16.gmra.mrb[0].mxu0 %v1396
  %v1434 = vpop.f32.mrb[0].mxu0
  %v1435 = vadd.f32 0.0, %v1434
  %v1436 = vpop.f32.mrb[0].mxu0
  %v1437 = vpop.f32.mrb[0].mxu0
  %v1438 = vadd.f32 0.0, %v1437
  %v1439 = vpop.f32.mrb[0].mxu0
  %1440 = vmatprep.mubr.bf16.mxu0 0
  %1441 = vmatmul.mubr.bf16.gmra.mrb[0].mxu0 %v1397
  %v1442 = vpop.f32.mrb[0].mxu0
  %v1443 = vadd.f32 0.0, %v1442
  %v1444 = vpop.f32.mrb[0].mxu0
  %v1445 = vpop.f32.mrb[0].mxu0
  %v1446 = vadd.f32 0.0, %v1445
  %v1447 = vpop.f32.mrb[0].mxu0
  %1448 = vmatprep.mubr.bf16.mxu0 0
  %1449 = vmatmul.mubr.bf16.gmra.mrb[0].mxu0 %v1398
  %v1450 = vpop.f32.mrb[0].mxu0
  %v1451 = vadd.f32 0.0, %v1450
  %v1452 = vpop.f32.mrb[0].mxu0
  %v1453 = vpop.f32.mrb[0].mxu0
  %v1454 = vadd.f32 0.0, %v1453
  %v1455 = vpop.f32.mrb[0].mxu0
  %1456 = vmatprep.mubr.bf16.mxu0 0
  %1457 = vmatmul.mubr.bf16.gmra.mrb[0].mxu0 %v1399
  %v1458 = vpop.f32.mrb[0].mxu0
  %v1459 = vadd.f32 0.0, %v1458
  %v1460 = vpop.f32.mrb[0].mxu0
  %v1461 = vpop.f32.mrb[0].mxu0
  %v1462 = vadd.f32 0.0, %v1461
  %v1463 = vpop.f32.mrb[0].mxu0
  %1464 = vdwg.mxu0
  %v1465 = vpack.c.bf16 %v1438, %v1435
  %v1466 = vpack.c.bf16 %v1446, %v1443
  %v1467 = vpack.c.bf16 %v1454, %v1451
  %v1468 = vpack.c.bf16 %v1462, %v1459
  %v1470 = vlaneseq
  %v1471 = vshrl.u32 %v1470, 7
  %v1472 = vsub.s32 0, %v1471
  %v1473 = vrot.slane %v1395, %v1472
  %1475 = vmatprep.subr.bf16.mxu0 0
  %1476 = vmatpush1.bf16.msra.mxu0 %v1465
  %1477 = vmatprep.subr.bf16.mxu0 0
  %1478 = vmatpush1.bf16.msra.mxu0 %v1466
  %1479 = vmatprep.subr.bf16.mxu0 0
  %1480 = vmatpush1.bf16.msra.mxu0 %v1467
  %1481 = vmatprep.subr.bf16.mxu0 0
  %1482 = vmatpush1.bf16.msra.mxu0 %v1468
  %1483 = vmatprep.subr.bf16.mxu0 0
  %1484 = vmatpush1.bf16.msra.mxu0 0
  %1485 = vmatprep.subr.bf16.mxu0 0
  %1486 = vmatpush1.bf16.msra.mxu0 0
  %1487 = vmatprep.subr.bf16.mxu0 0
  %1488 = vmatpush1.bf16.msra.mxu0 0
  %1489 = vmatprep.subr.bf16.mxu0 0
  %1490 = vmatpush1.bf16.msra.mxu0 0
  %1491 = vmatprep.subr.bf16.mxu0 0
  %1492 = vmatpush1.bf16.msra.mxu0 0
  %1493 = vmatprep.subr.bf16.mxu0 0
  %1494 = vmatpush1.bf16.msra.mxu0 0
  %1495 = vmatprep.subr.bf16.mxu0 0
  %1496 = vmatpush1.bf16.msra.mxu0 0
  %1497 = vmatprep.subr.bf16.mxu0 0
  %1498 = vmatpush1.bf16.msra.mxu0 0
  %1499 = vmatprep.subr.bf16.mxu0 0
  %1500 = vmatpush1.bf16.msra.mxu0 0
  %1501 = vmatprep.subr.bf16.mxu0 0
  %1502 = vmatpush1.bf16.msra.mxu0 0
  %1503 = vmatprep.subr.bf16.mxu0 0
  %1504 = vmatpush1.bf16.msra.mxu0 0
  %1505 = vmatprep.subr.bf16.mxu0 0
  %1506 = vmatpush1.bf16.msra.mxu0 0
  %1507 = vmatprep.mubr.bf16.mxu0 0
  %1508 = vmatmul.mubr.bf16.gmra.mrb[0].mxu0 %v184
  %v1509 = vpop.f32.mrb[0].mxu0
  %v1510 = vadd.f32 %v1473, %v1509
  %v1511 = vpop.f32.mrb[0].mxu0
  %v1512 = vpop.f32.mrb[0].mxu0
  %v1513 = vadd.f32 %v1473, %v1512
  %v1514 = vpop.f32.mrb[0].mxu0
  %1515 = vmatprep.mubr.bf16.mxu0 0
  %1516 = vmatmul.mubr.bf16.gmra.mrb[0].mxu0 %v187
  %v1517 = vpop.f32.mrb[0].mxu0
  %v1518 = vadd.f32 %v1473, %v1517
  %v1519 = vpop.f32.mrb[0].mxu0
  %v1520 = vpop.f32.mrb[0].mxu0
  %v1521 = vadd.f32 %v1473, %v1520
  %v1522 = vpop.f32.mrb[0].mxu0
  %1523 = vmatprep.mubr.bf16.mxu0 0
  %1524 = vmatmul.mubr.bf16.gmra.mrb[0].mxu0 %v190
  %v1525 = vpop.f32.mrb[0].mxu0
  %v1526 = vadd.f32 %v1473, %v1525
  %v1527 = vpop.f32.mrb[0].mxu0
  %v1528 = vpop.f32.mrb[0].mxu0
  %v1529 = vadd.f32 %v1473, %v1528
  %v1530 = vpop.f32.mrb[0].mxu0
  %1531 = vmatprep.mubr.bf16.mxu0 0
  %1532 = vmatmul.mubr.bf16.gmra.mrb[0].mxu0 %v193
  %v1533 = vpop.f32.mrb[0].mxu0
  %v1534 = vadd.f32 %v1473, %v1533
  %v1535 = vpop.f32.mrb[0].mxu0
  %v1536 = vpop.f32.mrb[0].mxu0
  %v1537 = vadd.f32 %v1473, %v1536
  %v1538 = vpop.f32.mrb[0].mxu0
  %1539 = vdwg.mxu0
  %v1540 = vmax.f32 %v1510, 0.0
  %v1541 = vmax.f32 %v1513, 0.0
  %v1542 = vmax.f32 %v1518, 0.0
  %v1543 = vmax.f32 %v1521, 0.0
  %v1544 = vmax.f32 %v1526, 0.0
  %v1545 = vmax.f32 %v1529, 0.0
  %v1546 = vmax.f32 %v1534, 0.0
  %v1547 = vmax.f32 %v1537, 0.0
  %v1548 = vadd.f32 %v1188, %v1540
  %v1549 = vadd.f32 %v1189, %v1541
  %v1550 = vadd.f32 %v1190, %v1542
  %v1551 = vadd.f32 %v1191, %v1543
  %v1552 = vadd.f32 %v1192, %v1544
  %v1553 = vadd.f32 %v1193, %v1545
  %v1554 = vadd.f32 %v1194, %v1546
  %v1555 = vadd.f32 %v1195, %v1547
  %v1556 = vmul.f32 %v1548, 0.5
  %v1557 = vmul.f32 %v1549, 0.5
  %v1558 = vmul.f32 %v1550, 0.5
  %v1559 = vmul.f32 %v1551, 0.5
  %v1560 = vmul.f32 %v1552, 0.5
  %v1561 = vmul.f32 %v1553, 0.5
  %v1562 = vmul.f32 %v1554, 0.5
  %v1563 = vmul.f32 %v1555, 0.5
  %s1564 = scalar_lea.hbm %s3, 9216
  // Predicated region
  $region54: #{graph_resnet_forward.1} parent=0 // pred_check
    _
  $region55: #{graph_resnet_forward.1} parent=0 // pred_check_branch
    %1566 = sbr.rel target = $region57
  $region56: #{graph_resnet_forward.1} parent=0 // pred_region
    %1567 = sst [smem:[#allocation6]] [#allocation25]
    %1568 = sst [smem:[#allocation7]] [#allocation24]
  $region57: #{graph_resnet_forward.1} parent=0 // pred_fallthru
    _
  %1570 = shalt.err (0)
  %s1572 = sshll.u32 %s57, 4
  %s1573 = int_to_ptr.vmem [resolvable:$true] %s1572
  %1575 = dma.hbm_to_vmem [thread:$0]  %s1564, 1024, %s1573, %s58
  %s1576 = sshll.u32 %s71, 4
  %1577 = dma.done [#allocation3], %s1576
  %v1578 = vld [vmem:[#allocation2] sm:$0xff]
  %v1579 = vld [vmem:[#allocation2 + $0x8] sm:$0xff]
  %v1580 = vld [vmem:[#allocation2 + $0x10] sm:$0xff]
  %v1581 = vld [vmem:[#allocation2 + $0x18] sm:$0xff]
  %v1582 = vld [vmem:[#allocation2 + $0x20] sm:$0xff]
  %v1583 = vld [vmem:[#allocation2 + $0x28] sm:$0xff]
  %v1584 = vld [vmem:[#allocation2 + $0x30] sm:$0xff]
  %v1585 = vld [vmem:[#allocation2 + $0x38] sm:$0xff]
  %s1586 = scalar_lea.vmem %s4, 8
  %v1587 = vld [vmem:[%s1586] sm:$0x1]
  %v1588 = vpack.c.bf16 %v1557, %v1556
  %v1589 = vpack.c.bf16 %v1559, %v1558
  %v1590 = vpack.c.bf16 %v1561, %v1560
  %v1591 = vpack.c.bf16 %v1563, %v1562
  %1592 = vmatprep.subr.bf16.mxu0 0
  %1593 = vmatpush1.bf16.msra.mxu0 %v1578
  %1594 = vmatprep.subr.bf16.mxu0 0
  %1595 = vmatpush1.bf16.msra.mxu0 %v1579
  %1596 = vmatprep.subr.bf16.mxu0 0
  %1597 = vmatpush1.bf16.msra.mxu0 %v1580
  %1598 = vmatprep.subr.bf16.mxu0 0
  %1599 = vmatpush1.bf16.msra.mxu0 %v1581
  %1600 = vmatprep.subr.bf16.mxu0 0
  %1601 = vmatpush1.bf16.msra.mxu0 %v1582
  %1602 = vmatprep.subr.bf16.mxu0 0
  %1603 = vmatpush1.bf16.msra.mxu0 %v1583
  %1604 = vmatprep.subr.bf16.mxu0 0
  %1605 = vmatpush1.bf16.msra.mxu0 %v1584
  %1606 = vmatprep.subr.bf16.mxu0 0
  %1607 = vmatpush1.bf16.msra.mxu0 %v1585
  %1608 = vmatprep.subr.bf16.mxu0 0
  %1609 = vmatpush1.bf16.msra.mxu0 0
  %1610 = vmatprep.subr.bf16.mxu0 0
  %1611 = vmatpush1.bf16.msra.mxu0 0
  %1612 = vmatprep.subr.bf16.mxu0 0
  %1613 = vmatpush1.bf16.msra.mxu0 0
  %1614 = vmatprep.subr.bf16.mxu0 0
  %1615 = vmatpush1.bf16.msra.mxu0 0
  %1616 = vmatprep.subr.bf16.mxu0 0
  %1617 = vmatpush1.bf16.msra.mxu0 0
  %1618 = vmatprep.subr.bf16.mxu0 0
  %1619 = vmatpush1.bf16.msra.mxu0 0
  %1620 = vmatprep.subr.bf16.mxu0 0
  %1621 = vmatpush1.bf16.msra.mxu0 0
  %1622 = vmatprep.subr.bf16.mxu0 0
  %1623 = vmatpush1.bf16.msra.mxu0 0
  %1624 = vmatprep.mubr.bf16.mxu0 0
  %1625 = vmatmul.mubr.bf16.gmra.mrb[0].mxu0 %v1588
  %v1626 = vpop.f32.mrb[0].mxu0
  %v1627 = vadd.f32 0.0, %v1626
  %v1628 = vpop.f32.mrb[0].mxu0
  %v1629 = vpop.f32.mrb[0].mxu0
  %v1630 = vadd.f32 0.0, %v1629
  %v1631 = vpop.f32.mrb[0].mxu0
  %1632 = vmatprep.mubr.bf16.mxu0 0
  %1633 = vmatmul.mubr.bf16.gmra.mrb[0].mxu0 %v1589
  %v1634 = vpop.f32.mrb[0].mxu0
  %v1635 = vadd.f32 0.0, %v1634
  %v1636 = vpop.f32.mrb[0].mxu0
  %v1637 = vpop.f32.mrb[0].mxu0
  %v1638 = vadd.f32 0.0, %v1637
  %v1639 = vpop.f32.mrb[0].mxu0
  %1640 = vmatprep.mubr.bf16.mxu0 0
  %1641 = vmatmul.mubr.bf16.gmra.mrb[0].mxu0 %v1590
  %v1642 = vpop.f32.mrb[0].mxu0
  %v1643 = vadd.f32 0.0, %v1642
  %v1644 = vpop.f32.mrb[0].mxu0
  %v1645 = vpop.f32.mrb[0].mxu0
  %v1646 = vadd.f32 0.0, %v1645
  %v1647 = vpop.f32.mrb[0].mxu0
  %1648 = vmatprep.mubr.bf16.mxu0 0
  %1649 = vmatmul.mubr.bf16.gmra.mrb[0].mxu0 %v1591
  %v1650 = vpop.f32.mrb[0].mxu0
  %v1651 = vadd.f32 0.0, %v1650
  %v1652 = vpop.f32.mrb[0].mxu0
  %v1653 = vpop.f32.mrb[0].mxu0
  %v1654 = vadd.f32 0.0, %v1653
  %v1655 = vpop.f32.mrb[0].mxu0
  %1656 = vdwg.mxu0
  %v1657 = vpack.c.bf16 %v1630, %v1627
  %v1658 = vpack.c.bf16 %v1638, %v1635
  %v1659 = vpack.c.bf16 %v1646, %v1643
  %v1660 = vpack.c.bf16 %v1654, %v1651
  %v1662 = vlaneseq
  %v1663 = vshrl.u32 %v1662, 7
  %v1664 = vsub.s32 0, %v1663
  %v1665 = vrot.slane %v1587, %v1664
  %1667 = vmatprep.subr.bf16.mxu0 0
  %1668 = vmatpush1.bf16.msra.mxu0 %v1657
  %1669 = vmatprep.subr.bf16.mxu0 0
  %1670 = vmatpush1.bf16.msra.mxu0 %v1658
  %1671 = vmatprep.subr.bf16.mxu0 0
  %1672 = vmatpush1.bf16.msra.mxu0 %v1659
  %1673 = vmatprep.subr.bf16.mxu0 0
  %1674 = vmatpush1.bf16.msra.mxu0 %v1660
  %1675 = vmatprep.subr.bf16.mxu0 0
  %1676 = vmatpush1.bf16.msra.mxu0 0
  %1677 = vmatprep.subr.bf16.mxu0 0
  %1678 = vmatpush1.bf16.msra.mxu0 0
  %1679 = vmatprep.subr.bf16.mxu0 0
  %1680 = vmatpush1.bf16.msra.mxu0 0
  %1681 = vmatprep.subr.bf16.mxu0 0
  %1682 = vmatpush1.bf16.msra.mxu0 0
  %1683 = vmatprep.subr.bf16.mxu0 0
  %1684 = vmatpush1.bf16.msra.mxu0 0
  %1685 = vmatprep.subr.bf16.mxu0 0
  %1686 = vmatpush1.bf16.msra.mxu0 0
  %1687 = vmatprep.subr.bf16.mxu0 0
  %1688 = vmatpush1.bf16.msra.mxu0 0
  %1689 = vmatprep.subr.bf16.mxu0 0
  %1690 = vmatpush1.bf16.msra.mxu0 0
  %1691 = vmatprep.subr.bf16.mxu0 0
  %1692 = vmatpush1.bf16.msra.mxu0 0
  %1693 = vmatprep.subr.bf16.mxu0 0
  %1694 = vmatpush1.bf16.msra.mxu0 0
  %1695 = vmatprep.subr.bf16.mxu0 0
  %1696 = vmatpush1.bf16.msra.mxu0 0
  %1697 = vmatprep.subr.bf16.mxu0 0
  %1698 = vmatpush1.bf16.msra.mxu0 0
  %1699 = vmatprep.mubr.bf16.mxu0 0
  %1700 = vmatmul.mubr.bf16.gmra.mrb[0].mxu0 %v184
  %v1701 = vpop.f32.mrb[0].mxu0
  %v1702 = vadd.f32 %v1665, %v1701
  %v1703 = vpop.f32.mrb[0].mxu0
  %v1704 = vpop.f32.mrb[0].mxu0
  %v1705 = vadd.f32 %v1665, %v1704
  %v1706 = vpop.f32.mrb[0].mxu0
  %1707 = vmatprep.mubr.bf16.mxu0 0
  %1708 = vmatmul.mubr.bf16.gmra.mrb[0].mxu0 %v187
  %v1709 = vpop.f32.mrb[0].mxu0
  %v1710 = vadd.f32 %v1665, %v1709
  %v1711 = vpop.f32.mrb[0].mxu0
  %v1712 = vpop.f32.mrb[0].mxu0
  %v1713 = vadd.f32 %v1665, %v1712
  %v1714 = vpop.f32.mrb[0].mxu0
  %1715 = vmatprep.mubr.bf16.mxu0 0
  %1716 = vmatmul.mubr.bf16.gmra.mrb[0].mxu0 %v190
  %v1717 = vpop.f32.mrb[0].mxu0
  %v1718 = vadd.f32 %v1665, %v1717
  %v1719 = vpop.f32.mrb[0].mxu0
  %v1720 = vpop.f32.mrb[0].mxu0
  %v1721 = vadd.f32 %v1665, %v1720
  %v1722 = vpop.f32.mrb[0].mxu0
  %1723 = vmatprep.mubr.bf16.mxu0 0
  %1724 = vmatmul.mubr.bf16.gmra.mrb[0].mxu0 %v193
  %v1725 = vpop.f32.mrb[0].mxu0
  %v1726 = vadd.f32 %v1665, %v1725
  %v1727 = vpop.f32.mrb[0].mxu0
  %v1728 = vpop.f32.mrb[0].mxu0
  %v1729 = vadd.f32 %v1665, %v1728
  %v1730 = vpop.f32.mrb[0].mxu0
  %1731 = vdwg.mxu0
  %v1732 = vmax.f32 %v1702, 0.0
  %v1733 = vmax.f32 %v1705, 0.0
  %v1734 = vmax.f32 %v1710, 0.0
  %v1735 = vmax.f32 %v1713, 0.0
  %v1736 = vmax.f32 %v1718, 0.0
  %v1737 = vmax.f32 %v1721, 0.0
  %v1738 = vmax.f32 %v1726, 0.0
  %v1739 = vmax.f32 %v1729, 0.0
  %s1740 = scalar_lea.hbm %s3, 10240
  // Predicated region
  $region58: #{graph_resnet_forward.1} parent=0 // pred_check
    _
  $region59: #{graph_resnet_forward.1} parent=0 // pred_check_branch
    %1742 = sbr.rel target = $region61
  $region60: #{graph_resnet_forward.1} parent=0 // pred_region
    %1743 = sst [smem:[#allocation6]] [#allocation27]
    %1744 = sst [smem:[#allocation7]] [#allocation26]
  $region61: #{graph_resnet_forward.1} parent=0 // pred_fallthru
    _
  %1746 = shalt.err (0)
  %s1748 = sshll.u32 [#allocation2], 4
  %s1749 = int_to_ptr.vmem [resolvable:$true] %s1748
  %1751 = dma.hbm_to_vmem [thread:$0]  %s1740, 1024, %s1749, [#allocation3]
  %s1752 = sshll.u32 %s71, 4
  %1753 = dma.done %s58, %s1752
  %v1754 = vld [vmem:[%s57] sm:$0xff]
  %v1755 = vld [vmem:[%s57 + $0x8] sm:$0xff]
  %v1756 = vld [vmem:[%s57 + $0x10] sm:$0xff]
  %v1757 = vld [vmem:[%s57 + $0x18] sm:$0xff]
  %v1758 = vld [vmem:[%s57 + $0x20] sm:$0xff]
  %v1759 = vld [vmem:[%s57 + $0x28] sm:$0xff]
  %v1760 = vld [vmem:[%s57 + $0x30] sm:$0xff]
  %v1761 = vld [vmem:[%s57 + $0x38] sm:$0xff]
  %s1762 = scalar_lea.vmem %s4, 9
  %v1763 = vld [vmem:[%s1762] sm:$0x1]
  %v1764 = vpack.c.bf16 %v1733, %v1732
  %v1765 = vpack.c.bf16 %v1735, %v1734
  %v1766 = vpack.c.bf16 %v1737, %v1736
  %v1767 = vpack.c.bf16 %v1739, %v1738
  %1768 = vmatprep.subr.bf16.mxu0 0
  %1769 = vmatpush1.bf16.msra.mxu0 %v1754
  %1770 = vmatprep.subr.bf16.mxu0 0
  %1771 = vmatpush1.bf16.msra.mxu0 %v1755
  %1772 = vmatprep.subr.bf16.mxu0 0
  %1773 = vmatpush1.bf16.msra.mxu0 %v1756
  %1774 = vmatprep.subr.bf16.mxu0 0
  %1775 = vmatpush1.bf16.msra.mxu0 %v1757
  %1776 = vmatprep.subr.bf16.mxu0 0
  %1777 = vmatpush1.bf16.msra.mxu0 %v1758
  %1778 = vmatprep.subr.bf16.mxu0 0
  %1779 = vmatpush1.bf16.msra.mxu0 %v1759
  %1780 = vmatprep.subr.bf16.mxu0 0
  %1781 = vmatpush1.bf16.msra.mxu0 %v1760
  %1782 = vmatprep.subr.bf16.mxu0 0
  %1783 = vmatpush1.bf16.msra.mxu0 %v1761
  %1784 = vmatprep.subr.bf16.mxu0 0
  %1785 = vmatpush1.bf16.msra.mxu0 0
  %1786 = vmatprep.subr.bf16.mxu0 0
  %1787 = vmatpush1.bf16.msra.mxu0 0
  %1788 = vmatprep.subr.bf16.mxu0 0
  %1789 = vmatpush1.bf16.msra.mxu0 0
  %1790 = vmatprep.subr.bf16.mxu0 0
  %1791 = vmatpush1.bf16.msra.mxu0 0
  %1792 = vmatprep.subr.bf16.mxu0 0
  %1793 = vmatpush1.bf16.msra.mxu0 0
  %1794 = vmatprep.subr.bf16.mxu0 0
  %1795 = vmatpush1.bf16.msra.mxu0 0
  %1796 = vmatprep.subr.bf16.mxu0 0
  %1797 = vmatpush1.bf16.msra.mxu0 0
  %1798 = vmatprep.subr.bf16.mxu0 0
  %1799 = vmatpush1.bf16.msra.mxu0 0
  %1800 = vmatprep.mubr.bf16.mxu0 0
  %1801 = vmatmul.mubr.bf16.gmra.mrb[0].mxu0 %v1764
  %v1802 = vpop.f32.mrb[0].mxu0
  %v1803 = vadd.f32 0.0, %v1802
  %v1804 = vpop.f32.mrb[0].mxu0
  %v1805 = vpop.f32.mrb[0].mxu0
  %v1806 = vadd.f32 0.0, %v1805
  %v1807 = vpop.f32.mrb[0].mxu0
  %1808 = vmatprep.mubr.bf16.mxu0 0
  %1809 = vmatmul.mubr.bf16.gmra.mrb[0].mxu0 %v1765
  %v1810 = vpop.f32.mrb[0].mxu0
  %v1811 = vadd.f32 0.0, %v1810
  %v1812 = vpop.f32.mrb[0].mxu0
  %v1813 = vpop.f32.mrb[0].mxu0
  %v1814 = vadd.f32 0.0, %v1813
  %v1815 = vpop.f32.mrb[0].mxu0
  %1816 = vmatprep.mubr.bf16.mxu0 0
  %1817 = vmatmul.mubr.bf16.gmra.mrb[0].mxu0 %v1766
  %v1818 = vpop.f32.mrb[0].mxu0
  %v1819 = vadd.f32 0.0, %v1818
  %v1820 = vpop.f32.mrb[0].mxu0
  %v1821 = vpop.f32.mrb[0].mxu0
  %v1822 = vadd.f32 0.0, %v1821
  %v1823 = vpop.f32.mrb[0].mxu0
  %1824 = vmatprep.mubr.bf16.mxu0 0
  %1825 = vmatmul.mubr.bf16.gmra.mrb[0].mxu0 %v1767
  %v1826 = vpop.f32.mrb[0].mxu0
  %v1827 = vadd.f32 0.0, %v1826
  %v1828 = vpop.f32.mrb[0].mxu0
  %v1829 = vpop.f32.mrb[0].mxu0
  %v1830 = vadd.f32 0.0, %v1829
  %v1831 = vpop.f32.mrb[0].mxu0
  %1832 = vdwg.mxu0
  %v1833 = vpack.c.bf16 %v1806, %v1803
  %v1834 = vpack.c.bf16 %v1814, %v1811
  %v1835 = vpack.c.bf16 %v1822, %v1819
  %v1836 = vpack.c.bf16 %v1830, %v1827
  %v1838 = vlaneseq
  %v1839 = vshrl.u32 %v1838, 7
  %v1840 = vsub.s32 0, %v1839
  %v1841 = vrot.slane %v1763, %v1840
  %1843 = vmatprep.subr.bf16.mxu0 0
  %1844 = vmatpush1.bf16.msra.mxu0 %v1833
  %1845 = vmatprep.subr.bf16.mxu0 0
  %1846 = vmatpush1.bf16.msra.mxu0 %v1834
  %1847 = vmatprep.subr.bf16.mxu0 0
  %1848 = vmatpush1.bf16.msra.mxu0 %v1835
  %1849 = vmatprep.subr.bf16.mxu0 0
  %1850 = vmatpush1.bf16.msra.mxu0 %v1836
  %1851 = vmatprep.subr.bf16.mxu0 0
  %1852 = vmatpush1.bf16.msra.mxu0 0
  %1853 = vmatprep.subr.bf16.mxu0 0
  %1854 = vmatpush1.bf16.msra.mxu0 0
  %1855 = vmatprep.subr.bf16.mxu0 0
  %1856 = vmatpush1.bf16.msra.mxu0 0
  %1857 = vmatprep.subr.bf16.mxu0 0
  %1858 = vmatpush1.bf16.msra.mxu0 0
  %1859 = vmatprep.subr.bf16.mxu0 0
  %1860 = vmatpush1.bf16.msra.mxu0 0
  %1861 = vmatprep.subr.bf16.mxu0 0
  %1862 = vmatpush1.bf16.msra.mxu0 0
  %1863 = vmatprep.subr.bf16.mxu0 0
  %1864 = vmatpush1.bf16.msra.mxu0 0
  %1865 = vmatprep.subr.bf16.mxu0 0
  %1866 = vmatpush1.bf16.msra.mxu0 0
  %1867 = vmatprep.subr.bf16.mxu0 0
  %1868 = vmatpush1.bf16.msra.mxu0 0
  %1869 = vmatprep.subr.bf16.mxu0 0
  %1870 = vmatpush1.bf16.msra.mxu0 0
  %1871 = vmatprep.subr.bf16.mxu0 0
  %1872 = vmatpush1.bf16.msra.mxu0 0
  %1873 = vmatprep.subr.bf16.mxu0 0
  %1874 = vmatpush1.bf16.msra.mxu0 0
  %1875 = vmatprep.mubr.bf16.mxu0 0
  %1876 = vmatmul.mubr.bf16.gmra.mrb[0].mxu0 %v184
  %v1877 = vpop.f32.mrb[0].mxu0
  %v1878 = vadd.f32 %v1841, %v1877
  %v1879 = vpop.f32.mrb[0].mxu0
  %v1880 = vpop.f32.mrb[0].mxu0
  %v1881 = vadd.f32 %v1841, %v1880
  %v1882 = vpop.f32.mrb[0].mxu0
  %1883 = vmatprep.mubr.bf16.mxu0 0
  %1884 = vmatmul.mubr.bf16.gmra.mrb[0].mxu0 %v187
  %v1885 = vpop.f32.mrb[0].mxu0
  %v1886 = vadd.f32 %v1841, %v1885
  %v1887 = vpop.f32.mrb[0].mxu0
  %v1888 = vpop.f32.mrb[0].mxu0
  %v1889 = vadd.f32 %v1841, %v1888
  %v1890 = vpop.f32.mrb[0].mxu0
  %1891 = vmatprep.mubr.bf16.mxu0 0
  %1892 = vmatmul.mubr.bf16.gmra.mrb[0].mxu0 %v190
  %v1893 = vpop.f32.mrb[0].mxu0
  %v1894 = vadd.f32 %v1841, %v1893
  %v1895 = vpop.f32.mrb[0].mxu0
  %v1896 = vpop.f32.mrb[0].mxu0
  %v1897 = vadd.f32 %v1841, %v1896
  %v1898 = vpop.f32.mrb[0].mxu0
  %1899 = vmatprep.mubr.bf16.mxu0 0
  %1900 = vmatmul.mubr.bf16.gmra.mrb[0].mxu0 %v193
  %v1901 = vpop.f32.mrb[0].mxu0
  %v1902 = vadd.f32 %v1841, %v1901
  %v1903 = vpop.f32.mrb[0].mxu0
  %v1904 = vpop.f32.mrb[0].mxu0
  %v1905 = vadd.f32 %v1841, %v1904
  %v1906 = vpop.f32.mrb[0].mxu0
  %1907 = vdwg.mxu0
  %v1908 = vmax.f32 %v1878, 0.0
  %v1909 = vmax.f32 %v1881, 0.0
  %v1910 = vmax.f32 %v1886, 0.0
  %v1911 = vmax.f32 %v1889, 0.0
  %v1912 = vmax.f32 %v1894, 0.0
  %v1913 = vmax.f32 %v1897, 0.0
  %v1914 = vmax.f32 %v1902, 0.0
  %v1915 = vmax.f32 %v1905, 0.0
  %v1916 = vadd.f32 %v1556, %v1908
  %v1917 = vadd.f32 %v1557, %v1909
  %v1918 = vadd.f32 %v1558, %v1910
  %v1919 = vadd.f32 %v1559, %v1911
  %v1920 = vadd.f32 %v1560, %v1912
  %v1921 = vadd.f32 %v1561, %v1913
  %v1922 = vadd.f32 %v1562, %v1914
  %v1923 = vadd.f32 %v1563, %v1915
  %v1924 = vmul.f32 %v1916, 0.5
  %v1925 = vmul.f32 %v1917, 0.5
  %v1926 = vmul.f32 %v1918, 0.5
  %v1927 = vmul.f32 %v1919, 0.5
  %v1928 = vmul.f32 %v1920, 0.5
  %v1929 = vmul.f32 %v1921, 0.5
  %v1930 = vmul.f32 %v1922, 0.5
  %v1931 = vmul.f32 %v1923, 0.5
  %s1932 = scalar_lea.hbm %s3, 11264
  // Predicated region
  $region62: #{graph_resnet_forward.1} parent=0 // pred_check
    _
  $region63: #{graph_resnet_forward.1} parent=0 // pred_check_branch
    %1934 = sbr.rel target = $region65
  $region64: #{graph_resnet_forward.1} parent=0 // pred_region
    %1935 = sst [smem:[#allocation6]] [#allocation29]
    %1936 = sst [smem:[#allocation7]] [#allocation28]
  $region65: #{graph_resnet_forward.1} parent=0 // pred_fallthru
    _
  %1938 = shalt.err (0)
  %s1940 = sshll.u32 %s57, 4
  %s1941 = int_to_ptr.vmem [resolvable:$true] %s1940
  %1943 = dma.hbm_to_vmem [thread:$0]  %s1932, 1024, %s1941, %s58
  %s1944 = sshll.u32 %s71, 4
  %1945 = dma.done [#allocation3], %s1944
  %v1946 = vld [vmem:[#allocation2] sm:$0xff]
  %v1947 = vld [vmem:[#allocation2 + $0x8] sm:$0xff]
  %v1948 = vld [vmem:[#allocation2 + $0x10] sm:$0xff]
  %v1949 = vld [vmem:[#allocation2 + $0x18] sm:$0xff]
  %v1950 = vld [vmem:[#allocation2 + $0x20] sm:$0xff]
  %v1951 = vld [vmem:[#allocation2 + $0x28] sm:$0xff]
  %v1952 = vld [vmem:[#allocation2 + $0x30] sm:$0xff]
  %v1953 = vld [vmem:[#allocation2 + $0x38] sm:$0xff]
  %s1954 = scalar_lea.vmem %s4, 10
  %v1955 = vld [vmem:[%s1954] sm:$0x1]
  %v1956 = vpack.c.bf16 %v1925, %v1924
  %v1957 = vpack.c.bf16 %v1927, %v1926
  %v1958 = vpack.c.bf16 %v1929, %v1928
  %v1959 = vpack.c.bf16 %v1931, %v1930
  %1960 = vmatprep.subr.bf16.mxu0 0
  %1961 = vmatpush1.bf16.msra.mxu0 %v1946
  %1962 = vmatprep.subr.bf16.mxu0 0
  %1963 = vmatpush1.bf16.msra.mxu0 %v1947
  %1964 = vmatprep.subr.bf16.mxu0 0
  %1965 = vmatpush1.bf16.msra.mxu0 %v1948
  %1966 = vmatprep.subr.bf16.mxu0 0
  %1967 = vmatpush1.bf16.msra.mxu0 %v1949
  %1968 = vmatprep.subr.bf16.mxu0 0
  %1969 = vmatpush1.bf16.msra.mxu0 %v1950
  %1970 = vmatprep.subr.bf16.mxu0 0
  %1971 = vmatpush1.bf16.msra.mxu0 %v1951
  %1972 = vmatprep.subr.bf16.mxu0 0
  %1973 = vmatpush1.bf16.msra.mxu0 %v1952
  %1974 = vmatprep.subr.bf16.mxu0 0
  %1975 = vmatpush1.bf16.msra.mxu0 %v1953
  %1976 = vmatprep.subr.bf16.mxu0 0
  %1977 = vmatpush1.bf16.msra.mxu0 0
  %1978 = vmatprep.subr.bf16.mxu0 0
  %1979 = vmatpush1.bf16.msra.mxu0 0
  %1980 = vmatprep.subr.bf16.mxu0 0
  %1981 = vmatpush1.bf16.msra.mxu0 0
  %1982 = vmatprep.subr.bf16.mxu0 0
  %1983 = vmatpush1.bf16.msra.mxu0 0
  %1984 = vmatprep.subr.bf16.mxu0 0
  %1985 = vmatpush1.bf16.msra.mxu0 0
  %1986 = vmatprep.subr.bf16.mxu0 0
  %1987 = vmatpush1.bf16.msra.mxu0 0
  %1988 = vmatprep.subr.bf16.mxu0 0
  %1989 = vmatpush1.bf16.msra.mxu0 0
  %1990 = vmatprep.subr.bf16.mxu0 0
  %1991 = vmatpush1.bf16.msra.mxu0 0
  %1992 = vmatprep.mubr.bf16.mxu0 0
  %1993 = vmatmul.mubr.bf16.gmra.mrb[0].mxu0 %v1956
  %v1994 = vpop.f32.mrb[0].mxu0
  %v1995 = vadd.f32 0.0, %v1994
  %v1996 = vpop.f32.mrb[0].mxu0
  %v1997 = vpop.f32.mrb[0].mxu0
  %v1998 = vadd.f32 0.0, %v1997
  %v1999 = vpop.f32.mrb[0].mxu0
  %2000 = vmatprep.mubr.bf16.mxu0 0
  %2001 = vmatmul.mubr.bf16.gmra.mrb[0].mxu0 %v1957
  %v2002 = vpop.f32.mrb[0].mxu0
  %v2003 = vadd.f32 0.0, %v2002
  %v2004 = vpop.f32.mrb[0].mxu0
  %v2005 = vpop.f32.mrb[0].mxu0
  %v2006 = vadd.f32 0.0, %v2005
  %v2007 = vpop.f32.mrb[0].mxu0
  %2008 = vmatprep.mubr.bf16.mxu0 0
  %2009 = vmatmul.mubr.bf16.gmra.mrb[0].mxu0 %v1958
  %v2010 = vpop.f32.mrb[0].mxu0
  %v2011 = vadd.f32 0.0, %v2010
  %v2012 = vpop.f32.mrb[0].mxu0
  %v2013 = vpop.f32.mrb[0].mxu0
  %v2014 = vadd.f32 0.0, %v2013
  %v2015 = vpop.f32.mrb[0].mxu0
  %2016 = vmatprep.mubr.bf16.mxu0 0
  %2017 = vmatmul.mubr.bf16.gmra.mrb[0].mxu0 %v1959
  %v2018 = vpop.f32.mrb[0].mxu0
  %v2019 = vadd.f32 0.0, %v2018
  %v2020 = vpop.f32.mrb[0].mxu0
  %v2021 = vpop.f32.mrb[0].mxu0
  %v2022 = vadd.f32 0.0, %v2021
  %v2023 = vpop.f32.mrb[0].mxu0
  %2024 = vdwg.mxu0
  %v2025 = vpack.c.bf16 %v1998, %v1995
  %v2026 = vpack.c.bf16 %v2006, %v2003
  %v2027 = vpack.c.bf16 %v2014, %v2011
  %v2028 = vpack.c.bf16 %v2022, %v2019
  %v2030 = vlaneseq
  %v2031 = vshrl.u32 %v2030, 7
  %v2032 = vsub.s32 0, %v2031
  %v2033 = vrot.slane %v1955, %v2032
  %2035 = vmatprep.subr.bf16.mxu0 0
  %2036 = vmatpush1.bf16.msra.mxu0 %v2025
  %2037 = vmatprep.subr.bf16.mxu0 0
  %2038 = vmatpush1.bf16.msra.mxu0 %v2026
  %2039 = vmatprep.subr.bf16.mxu0 0
  %2040 = vmatpush1.bf16.msra.mxu0 %v2027
  %2041 = vmatprep.subr.bf16.mxu0 0
  %2042 = vmatpush1.bf16.msra.mxu0 %v2028
  %2043 = vmatprep.subr.bf16.mxu0 0
  %2044 = vmatpush1.bf16.msra.mxu0 0
  %2045 = vmatprep.subr.bf16.mxu0 0
  %2046 = vmatpush1.bf16.msra.mxu0 0
  %2047 = vmatprep.subr.bf16.mxu0 0
  %2048 = vmatpush1.bf16.msra.mxu0 0
  %2049 = vmatprep.subr.bf16.mxu0 0
  %2050 = vmatpush1.bf16.msra.mxu0 0
  %2051 = vmatprep.subr.bf16.mxu0 0
  %2052 = vmatpush1.bf16.msra.mxu0 0
  %2053 = vmatprep.subr.bf16.mxu0 0
  %2054 = vmatpush1.bf16.msra.mxu0 0
  %2055 = vmatprep.subr.bf16.mxu0 0
  %2056 = vmatpush1.bf16.msra.mxu0 0
  %2057 = vmatprep.subr.bf16.mxu0 0
  %2058 = vmatpush1.bf16.msra.mxu0 0
  %2059 = vmatprep.subr.bf16.mxu0 0
  %2060 = vmatpush1.bf16.msra.mxu0 0
  %2061 = vmatprep.subr.bf16.mxu0 0
  %2062 = vmatpush1.bf16.msra.mxu0 0
  %2063 = vmatprep.subr.bf16.mxu0 0
  %2064 = vmatpush1.bf16.msra.mxu0 0
  %2065 = vmatprep.subr.bf16.mxu0 0
  %2066 = vmatpush1.bf16.msra.mxu0 0
  %2067 = vmatprep.mubr.bf16.mxu0 0
  %2068 = vmatmul.mubr.bf16.gmra.mrb[0].mxu0 %v184
  %v2069 = vpop.f32.mrb[0].mxu0
  %v2070 = vadd.f32 %v2033, %v2069
  %v2071 = vpop.f32.mrb[0].mxu0
  %v2072 = vpop.f32.mrb[0].mxu0
  %v2073 = vadd.f32 %v2033, %v2072
  %v2074 = vpop.f32.mrb[0].mxu0
  %2075 = vmatprep.mubr.bf16.mxu0 0
  %2076 = vmatmul.mubr.bf16.gmra.mrb[0].mxu0 %v187
  %v2077 = vpop.f32.mrb[0].mxu0
  %v2078 = vadd.f32 %v2033, %v2077
  %v2079 = vpop.f32.mrb[0].mxu0
  %v2080 = vpop.f32.mrb[0].mxu0
  %v2081 = vadd.f32 %v2033, %v2080
  %v2082 = vpop.f32.mrb[0].mxu0
  %2083 = vmatprep.mubr.bf16.mxu0 0
  %2084 = vmatmul.mubr.bf16.gmra.mrb[0].mxu0 %v190
  %v2085 = vpop.f32.mrb[0].mxu0
  %v2086 = vadd.f32 %v2033, %v2085
  %v2087 = vpop.f32.mrb[0].mxu0
  %v2088 = vpop.f32.mrb[0].mxu0
  %v2089 = vadd.f32 %v2033, %v2088
  %v2090 = vpop.f32.mrb[0].mxu0
  %2091 = vmatprep.mubr.bf16.mxu0 0
  %2092 = vmatmul.mubr.bf16.gmra.mrb[0].mxu0 %v193
  %v2093 = vpop.f32.mrb[0].mxu0
  %v2094 = vadd.f32 %v2033, %v2093
  %v2095 = vpop.f32.mrb[0].mxu0
  %v2096 = vpop.f32.mrb[0].mxu0
  %v2097 = vadd.f32 %v2033, %v2096
  %v2098 = vpop.f32.mrb[0].mxu0
  %2099 = vdwg.mxu0
  %v2100 = vmax.f32 %v2070, 0.0
  %v2101 = vmax.f32 %v2073, 0.0
  %v2102 = vmax.f32 %v2078, 0.0
  %v2103 = vmax.f32 %v2081, 0.0
  %v2104 = vmax.f32 %v2086, 0.0
  %v2105 = vmax.f32 %v2089, 0.0
  %v2106 = vmax.f32 %v2094, 0.0
  %v2107 = vmax.f32 %v2097, 0.0
  %s2108 = scalar_lea.hbm %s3, 12288
  // Predicated region
  $region66: #{graph_resnet_forward.1} parent=0 // pred_check
    _
  $region67: #{graph_resnet_forward.1} parent=0 // pred_check_branch
    %2110 = sbr.rel target = $region69
  $region68: #{graph_resnet_forward.1} parent=0 // pred_region
    %2111 = sst [smem:[#allocation6]] [#allocation31]
    %2112 = sst [smem:[#allocation7]] [#allocation30]
  $region69: #{graph_resnet_forward.1} parent=0 // pred_fallthru
    _
  %2114 = shalt.err (0)
  %s2116 = sshll.u32 [#allocation2], 4
  %s2117 = int_to_ptr.vmem [resolvable:$true] %s2116
  %2119 = dma.hbm_to_vmem [thread:$0]  %s2108, 1024, %s2117, [#allocation3]
  %s2120 = sshll.u32 %s71, 4
  %2121 = dma.done %s58, %s2120
  %v2122 = vld [vmem:[%s57] sm:$0xff]
  %v2123 = vld [vmem:[%s57 + $0x8] sm:$0xff]
  %v2124 = vld [vmem:[%s57 + $0x10] sm:$0xff]
  %v2125 = vld [vmem:[%s57 + $0x18] sm:$0xff]
  %v2126 = vld [vmem:[%s57 + $0x20] sm:$0xff]
  %v2127 = vld [vmem:[%s57 + $0x28] sm:$0xff]
  %v2128 = vld [vmem:[%s57 + $0x30] sm:$0xff]
  %v2129 = vld [vmem:[%s57 + $0x38] sm:$0xff]
  %s2130 = scalar_lea.vmem %s4, 11
  %v2131 = vld [vmem:[%s2130] sm:$0x1]
  %v2132 = vpack.c.bf16 %v2101, %v2100
  %v2133 = vpack.c.bf16 %v2103, %v2102
  %v2134 = vpack.c.bf16 %v2105, %v2104
  %v2135 = vpack.c.bf16 %v2107, %v2106
  %2136 = vmatprep.subr.bf16.mxu0 0
  %2137 = vmatpush1.bf16.msra.mxu0 %v2122
  %2138 = vmatprep.subr.bf16.mxu0 0
  %2139 = vmatpush1.bf16.msra.mxu0 %v2123
  %2140 = vmatprep.subr.bf16.mxu0 0
  %2141 = vmatpush1.bf16.msra.mxu0 %v2124
  %2142 = vmatprep.subr.bf16.mxu0 0
  %2143 = vmatpush1.bf16.msra.mxu0 %v2125
  %2144 = vmatprep.subr.bf16.mxu0 0
  %2145 = vmatpush1.bf16.msra.mxu0 %v2126
  %2146 = vmatprep.subr.bf16.mxu0 0
  %2147 = vmatpush1.bf16.msra.mxu0 %v2127
  %2148 = vmatprep.subr.bf16.mxu0 0
  %2149 = vmatpush1.bf16.msra.mxu0 %v2128
  %2150 = vmatprep.subr.bf16.mxu0 0
  %2151 = vmatpush1.bf16.msra.mxu0 %v2129
  %2152 = vmatprep.subr.bf16.mxu0 0
  %2153 = vmatpush1.bf16.msra.mxu0 0
  %2154 = vmatprep.subr.bf16.mxu0 0
  %2155 = vmatpush1.bf16.msra.mxu0 0
  %2156 = vmatprep.subr.bf16.mxu0 0
  %2157 = vmatpush1.bf16.msra.mxu0 0
  %2158 = vmatprep.subr.bf16.mxu0 0
  %2159 = vmatpush1.bf16.msra.mxu0 0
  %2160 = vmatprep.subr.bf16.mxu0 0
  %2161 = vmatpush1.bf16.msra.mxu0 0
  %2162 = vmatprep.subr.bf16.mxu0 0
  %2163 = vmatpush1.bf16.msra.mxu0 0
  %2164 = vmatprep.subr.bf16.mxu0 0
  %2165 = vmatpush1.bf16.msra.mxu0 0
  %2166 = vmatprep.subr.bf16.mxu0 0
  %2167 = vmatpush1.bf16.msra.mxu0 0
  %2168 = vmatprep.mubr.bf16.mxu0 0
  %2169 = vmatmul.mubr.bf16.gmra.mrb[0].mxu0 %v2132
  %v2170 = vpop.f32.mrb[0].mxu0
  %v2171 = vadd.f32 0.0, %v2170
  %v2172 = vpop.f32.mrb[0].mxu0
  %v2173 = vpop.f32.mrb[0].mxu0
  %v2174 = vadd.f32 0.0, %v2173
  %v2175 = vpop.f32.mrb[0].mxu0
  %2176 = vmatprep.mubr.bf16.mxu0 0
  %2177 = vmatmul.mubr.bf16.gmra.mrb[0].mxu0 %v2133
  %v2178 = vpop.f32.mrb[0].mxu0
  %v2179 = vadd.f32 0.0, %v2178
  %v2180 = vpop.f32.mrb[0].mxu0
  %v2181 = vpop.f32.mrb[0].mxu0
  %v2182 = vadd.f32 0.0, %v2181
  %v2183 = vpop.f32.mrb[0].mxu0
  %2184 = vmatprep.mubr.bf16.mxu0 0
  %2185 = vmatmul.mubr.bf16.gmra.mrb[0].mxu0 %v2134
  %v2186 = vpop.f32.mrb[0].mxu0
  %v2187 = vadd.f32 0.0, %v2186
  %v2188 = vpop.f32.mrb[0].mxu0
  %v2189 = vpop.f32.mrb[0].mxu0
  %v2190 = vadd.f32 0.0, %v2189
  %v2191 = vpop.f32.mrb[0].mxu0
  %2192 = vmatprep.mubr.bf16.mxu0 0
  %2193 = vmatmul.mubr.bf16.gmra.mrb[0].mxu0 %v2135
  %v2194 = vpop.f32.mrb[0].mxu0
  %v2195 = vadd.f32 0.0, %v2194
  %v2196 = vpop.f32.mrb[0].mxu0
  %v2197 = vpop.f32.mrb[0].mxu0
  %v2198 = vadd.f32 0.0, %v2197
  %v2199 = vpop.f32.mrb[0].mxu0
  %2200 = vdwg.mxu0
  %v2201 = vpack.c.bf16 %v2174, %v2171
  %v2202 = vpack.c.bf16 %v2182, %v2179
  %v2203 = vpack.c.bf16 %v2190, %v2187
  %v2204 = vpack.c.bf16 %v2198, %v2195
  %v2206 = vlaneseq
  %v2207 = vshrl.u32 %v2206, 7
  %v2208 = vsub.s32 0, %v2207
  %v2209 = vrot.slane %v2131, %v2208
  %2211 = vmatprep.subr.bf16.mxu0 0
  %2212 = vmatpush1.bf16.msra.mxu0 %v2201
  %2213 = vmatprep.subr.bf16.mxu0 0
  %2214 = vmatpush1.bf16.msra.mxu0 %v2202
  %2215 = vmatprep.subr.bf16.mxu0 0
  %2216 = vmatpush1.bf16.msra.mxu0 %v2203
  %2217 = vmatprep.subr.bf16.mxu0 0
  %2218 = vmatpush1.bf16.msra.mxu0 %v2204
  %2219 = vmatprep.subr.bf16.mxu0 0
  %2220 = vmatpush1.bf16.msra.mxu0 0
  %2221 = vmatprep.subr.bf16.mxu0 0
  %2222 = vmatpush1.bf16.msra.mxu0 0
  %2223 = vmatprep.subr.bf16.mxu0 0
  %2224 = vmatpush1.bf16.msra.mxu0 0
  %2225 = vmatprep.subr.bf16.mxu0 0
  %2226 = vmatpush1.bf16.msra.mxu0 0
  %2227 = vmatprep.subr.bf16.mxu0 0
  %2228 = vmatpush1.bf16.msra.mxu0 0
  %2229 = vmatprep.subr.bf16.mxu0 0
  %2230 = vmatpush1.bf16.msra.mxu0 0
  %2231 = vmatprep.subr.bf16.mxu0 0
  %2232 = vmatpush1.bf16.msra.mxu0 0
  %2233 = vmatprep.subr.bf16.mxu0 0
  %2234 = vmatpush1.bf16.msra.mxu0 0
  %2235 = vmatprep.subr.bf16.mxu0 0
  %2236 = vmatpush1.bf16.msra.mxu0 0
  %2237 = vmatprep.subr.bf16.mxu0 0
  %2238 = vmatpush1.bf16.msra.mxu0 0
  %2239 = vmatprep.subr.bf16.mxu0 0
  %2240 = vmatpush1.bf16.msra.mxu0 0
  %2241 = vmatprep.subr.bf16.mxu0 0
  %2242 = vmatpush1.bf16.msra.mxu0 0
  %2243 = vmatprep.mubr.bf16.mxu0 0
  %2244 = vmatmul.mubr.bf16.gmra.mrb[0].mxu0 %v184
  %v2245 = vpop.f32.mrb[0].mxu0
  %v2246 = vadd.f32 %v2209, %v2245
  %v2247 = vpop.f32.mrb[0].mxu0
  %v2248 = vpop.f32.mrb[0].mxu0
  %v2249 = vadd.f32 %v2209, %v2248
  %v2250 = vpop.f32.mrb[0].mxu0
  %2251 = vmatprep.mubr.bf16.mxu0 0
  %2252 = vmatmul.mubr.bf16.gmra.mrb[0].mxu0 %v187
  %v2253 = vpop.f32.mrb[0].mxu0
  %v2254 = vadd.f32 %v2209, %v2253
  %v2255 = vpop.f32.mrb[0].mxu0
  %v2256 = vpop.f32.mrb[0].mxu0
  %v2257 = vadd.f32 %v2209, %v2256
  %v2258 = vpop.f32.mrb[0].mxu0
  %2259 = vmatprep.mubr.bf16.mxu0 0
  %2260 = vmatmul.mubr.bf16.gmra.mrb[0].mxu0 %v190
  %v2261 = vpop.f32.mrb[0].mxu0
  %v2262 = vadd.f32 %v2209, %v2261
  %v2263 = vpop.f32.mrb[0].mxu0
  %v2264 = vpop.f32.mrb[0].mxu0
  %v2265 = vadd.f32 %v2209, %v2264
  %v2266 = vpop.f32.mrb[0].mxu0
  %2267 = vmatprep.mubr.bf16.mxu0 0
  %2268 = vmatmul.mubr.bf16.gmra.mrb[0].mxu0 %v193
  %v2269 = vpop.f32.mrb[0].mxu0
  %v2270 = vadd.f32 %v2209, %v2269
  %v2271 = vpop.f32.mrb[0].mxu0
  %v2272 = vpop.f32.mrb[0].mxu0
  %v2273 = vadd.f32 %v2209, %v2272
  %v2274 = vpop.f32.mrb[0].mxu0
  %2275 = vdwg.mxu0
  %v2276 = vmax.f32 %v2246, 0.0
  %v2277 = vmax.f32 %v2249, 0.0
  %v2278 = vmax.f32 %v2254, 0.0
  %v2279 = vmax.f32 %v2257, 0.0
  %v2280 = vmax.f32 %v2262, 0.0
  %v2281 = vmax.f32 %v2265, 0.0
  %v2282 = vmax.f32 %v2270, 0.0
  %v2283 = vmax.f32 %v2273, 0.0
  %v2284 = vadd.f32 %v1924, %v2276
  %v2285 = vadd.f32 %v1925, %v2277
  %v2286 = vadd.f32 %v1926, %v2278
  %v2287 = vadd.f32 %v1927, %v2279
  %v2288 = vadd.f32 %v1928, %v2280
  %v2289 = vadd.f32 %v1929, %v2281
  %v2290 = vadd.f32 %v1930, %v2282
  %v2291 = vadd.f32 %v1931, %v2283
  %v2292 = vmul.f32 %v2284, 0.5
  %v2293 = vmul.f32 %v2285, 0.5
  %v2294 = vmul.f32 %v2286, 0.5
  %v2295 = vmul.f32 %v2287, 0.5
  %v2296 = vmul.f32 %v2288, 0.5
  %v2297 = vmul.f32 %v2289, 0.5
  %v2298 = vmul.f32 %v2290, 0.5
  %v2299 = vmul.f32 %v2291, 0.5
  %s2300 = scalar_lea.hbm %s3, 13312
  // Predicated region
  $region70: #{graph_resnet_forward.1} parent=0 // pred_check
    _
  $region71: #{graph_resnet_forward.1} parent=0 // pred_check_branch
    %2302 = sbr.rel target = $region73
  $region72: #{graph_resnet_forward.1} parent=0 // pred_region
    %2303 = sst [smem:[#allocation6]] [#allocation33]
    %2304 = sst [smem:[#allocation7]] [#allocation32]
  $region73: #{graph_resnet_forward.1} parent=0 // pred_fallthru
    _
  %2306 = shalt.err (0)
  %s2308 = sshll.u32 %s57, 4
  %s2309 = int_to_ptr.vmem [resolvable:$true] %s2308
  %2311 = dma.hbm_to_vmem [thread:$0]  %s2300, 1024, %s2309, %s58
  %s2312 = sshll.u32 %s71, 4
  %2313 = dma.done [#allocation3], %s2312
  %v2314 = vld [vmem:[#allocation2] sm:$0xff]
  %v2315 = vld [vmem:[#allocation2 + $0x8] sm:$0xff]
  %v2316 = vld [vmem:[#allocation2 + $0x10] sm:$0xff]
  %v2317 = vld [vmem:[#allocation2 + $0x18] sm:$0xff]
  %v2318 = vld [vmem:[#allocation2 + $0x20] sm:$0xff]
  %v2319 = vld [vmem:[#allocation2 + $0x28] sm:$0xff]
  %v2320 = vld [vmem:[#allocation2 + $0x30] sm:$0xff]
  %v2321 = vld [vmem:[#allocation2 + $0x38] sm:$0xff]
  %s2322 = scalar_lea.vmem %s4, 12
  %v2323 = vld [vmem:[%s2322] sm:$0x1]
  %v2324 = vpack.c.bf16 %v2293, %v2292
  %v2325 = vpack.c.bf16 %v2295, %v2294
  %v2326 = vpack.c.bf16 %v2297, %v2296
  %v2327 = vpack.c.bf16 %v2299, %v2298
  %2328 = vmatprep.subr.bf16.mxu0 0
  %2329 = vmatpush1.bf16.msra.mxu0 %v2314
  %2330 = vmatprep.subr.bf16.mxu0 0
  %2331 = vmatpush1.bf16.msra.mxu0 %v2315
  %2332 = vmatprep.subr.bf16.mxu0 0
  %2333 = vmatpush1.bf16.msra.mxu0 %v2316
  %2334 = vmatprep.subr.bf16.mxu0 0
  %2335 = vmatpush1.bf16.msra.mxu0 %v2317
  %2336 = vmatprep.subr.bf16.mxu0 0
  %2337 = vmatpush1.bf16.msra.mxu0 %v2318
  %2338 = vmatprep.subr.bf16.mxu0 0
  %2339 = vmatpush1.bf16.msra.mxu0 %v2319
  %2340 = vmatprep.subr.bf16.mxu0 0
  %2341 = vmatpush1.bf16.msra.mxu0 %v2320
  %2342 = vmatprep.subr.bf16.mxu0 0
  %2343 = vmatpush1.bf16.msra.mxu0 %v2321
  %2344 = vmatprep.subr.bf16.mxu0 0
  %2345 = vmatpush1.bf16.msra.mxu0 0
  %2346 = vmatprep.subr.bf16.mxu0 0
  %2347 = vmatpush1.bf16.msra.mxu0 0
  %2348 = vmatprep.subr.bf16.mxu0 0
  %2349 = vmatpush1.bf16.msra.mxu0 0
  %2350 = vmatprep.subr.bf16.mxu0 0
  %2351 = vmatpush1.bf16.msra.mxu0 0
  %2352 = vmatprep.subr.bf16.mxu0 0
  %2353 = vmatpush1.bf16.msra.mxu0 0
  %2354 = vmatprep.subr.bf16.mxu0 0
  %2355 = vmatpush1.bf16.msra.mxu0 0
  %2356 = vmatprep.subr.bf16.mxu0 0
  %2357 = vmatpush1.bf16.msra.mxu0 0
  %2358 = vmatprep.subr.bf16.mxu0 0
  %2359 = vmatpush1.bf16.msra.mxu0 0
  %2360 = vmatprep.mubr.bf16.mxu0 0
  %2361 = vmatmul.mubr.bf16.gmra.mrb[0].mxu0 %v2324
  %v2362 = vpop.f32.mrb[0].mxu0
  %v2363 = vadd.f32 0.0, %v2362
  %v2364 = vpop.f32.mrb[0].mxu0
  %v2365 = vpop.f32.mrb[0].mxu0
  %v2366 = vadd.f32 0.0, %v2365
  %v2367 = vpop.f32.mrb[0].mxu0
  %2368 = vmatprep.mubr.bf16.mxu0 0
  %2369 = vmatmul.mubr.bf16.gmra.mrb[0].mxu0 %v2325
  %v2370 = vpop.f32.mrb[0].mxu0
  %v2371 = vadd.f32 0.0, %v2370
  %v2372 = vpop.f32.mrb[0].mxu0
  %v2373 = vpop.f32.mrb[0].mxu0
  %v2374 = vadd.f32 0.0, %v2373
  %v2375 = vpop.f32.mrb[0].mxu0
  %2376 = vmatprep.mubr.bf16.mxu0 0
  %2377 = vmatmul.mubr.bf16.gmra.mrb[0].mxu0 %v2326
  %v2378 = vpop.f32.mrb[0].mxu0
  %v2379 = vadd.f32 0.0, %v2378
  %v2380 = vpop.f32.mrb[0].mxu0
  %v2381 = vpop.f32.mrb[0].mxu0
  %v2382 = vadd.f32 0.0, %v2381
  %v2383 = vpop.f32.mrb[0].mxu0
  %2384 = vmatprep.mubr.bf16.mxu0 0
  %2385 = vmatmul.mubr.bf16.gmra.mrb[0].mxu0 %v2327
  %v2386 = vpop.f32.mrb[0].mxu0
  %v2387 = vadd.f32 0.0, %v2386
  %v2388 = vpop.f32.mrb[0].mxu0
  %v2389 = vpop.f32.mrb[0].mxu0
  %v2390 = vadd.f32 0.0, %v2389
  %v2391 = vpop.f32.mrb[0].mxu0
  %2392 = vdwg.mxu0
  %v2393 = vpack.c.bf16 %v2366, %v2363
  %v2394 = vpack.c.bf16 %v2374, %v2371
  %v2395 = vpack.c.bf16 %v2382, %v2379
  %v2396 = vpack.c.bf16 %v2390, %v2387
  %v2398 = vlaneseq
  %v2399 = vshrl.u32 %v2398, 7
  %v2400 = vsub.s32 0, %v2399
  %v2401 = vrot.slane %v2323, %v2400
  %2403 = vmatprep.subr.bf16.mxu0 0
  %2404 = vmatpush1.bf16.msra.mxu0 %v2393
  %2405 = vmatprep.subr.bf16.mxu0 0
  %2406 = vmatpush1.bf16.msra.mxu0 %v2394
  %2407 = vmatprep.subr.bf16.mxu0 0
  %2408 = vmatpush1.bf16.msra.mxu0 %v2395
  %2409 = vmatprep.subr.bf16.mxu0 0
  %2410 = vmatpush1.bf16.msra.mxu0 %v2396
  %2411 = vmatprep.subr.bf16.mxu0 0
  %2412 = vmatpush1.bf16.msra.mxu0 0
  %2413 = vmatprep.subr.bf16.mxu0 0
  %2414 = vmatpush1.bf16.msra.mxu0 0
  %2415 = vmatprep.subr.bf16.mxu0 0
  %2416 = vmatpush1.bf16.msra.mxu0 0
  %2417 = vmatprep.subr.bf16.mxu0 0
  %2418 = vmatpush1.bf16.msra.mxu0 0
  %2419 = vmatprep.subr.bf16.mxu0 0
  %2420 = vmatpush1.bf16.msra.mxu0 0
  %2421 = vmatprep.subr.bf16.mxu0 0
  %2422 = vmatpush1.bf16.msra.mxu0 0
  %2423 = vmatprep.subr.bf16.mxu0 0
  %2424 = vmatpush1.bf16.msra.mxu0 0
  %2425 = vmatprep.subr.bf16.mxu0 0
  %2426 = vmatpush1.bf16.msra.mxu0 0
  %2427 = vmatprep.subr.bf16.mxu0 0
  %2428 = vmatpush1.bf16.msra.mxu0 0
  %2429 = vmatprep.subr.bf16.mxu0 0
  %2430 = vmatpush1.bf16.msra.mxu0 0
  %2431 = vmatprep.subr.bf16.mxu0 0
  %2432 = vmatpush1.bf16.msra.mxu0 0
  %2433 = vmatprep.subr.bf16.mxu0 0
  %2434 = vmatpush1.bf16.msra.mxu0 0
  %2435 = vmatprep.mubr.bf16.mxu0 0
  %2436 = vmatmul.mubr.bf16.gmra.mrb[0].mxu0 %v184
  %v2437 = vpop.f32.mrb[0].mxu0
  %v2438 = vadd.f32 %v2401, %v2437
  %v2439 = vpop.f32.mrb[0].mxu0
  %v2440 = vpop.f32.mrb[0].mxu0
  %v2441 = vadd.f32 %v2401, %v2440
  %v2442 = vpop.f32.mrb[0].mxu0
  %2443 = vmatprep.mubr.bf16.mxu0 0
  %2444 = vmatmul.mubr.bf16.gmra.mrb[0].mxu0 %v187
  %v2445 = vpop.f32.mrb[0].mxu0
  %v2446 = vadd.f32 %v2401, %v2445
  %v2447 = vpop.f32.mrb[0].mxu0
  %v2448 = vpop.f32.mrb[0].mxu0
  %v2449 = vadd.f32 %v2401, %v2448
  %v2450 = vpop.f32.mrb[0].mxu0
  %2451 = vmatprep.mubr.bf16.mxu0 0
  %2452 = vmatmul.mubr.bf16.gmra.mrb[0].mxu0 %v190
  %v2453 = vpop.f32.mrb[0].mxu0
  %v2454 = vadd.f32 %v2401, %v2453
  %v2455 = vpop.f32.mrb[0].mxu0
  %v2456 = vpop.f32.mrb[0].mxu0
  %v2457 = vadd.f32 %v2401, %v2456
  %v2458 = vpop.f32.mrb[0].mxu0
  %2459 = vmatprep.mubr.bf16.mxu0 0
  %2460 = vmatmul.mubr.bf16.gmra.mrb[0].mxu0 %v193
  %v2461 = vpop.f32.mrb[0].mxu0
  %v2462 = vadd.f32 %v2401, %v2461
  %v2463 = vpop.f32.mrb[0].mxu0
  %v2464 = vpop.f32.mrb[0].mxu0
  %v2465 = vadd.f32 %v2401, %v2464
  %v2466 = vpop.f32.mrb[0].mxu0
  %2467 = vdwg.mxu0
  %v2468 = vmax.f32 %v2438, 0.0
  %v2469 = vmax.f32 %v2441, 0.0
  %v2470 = vmax.f32 %v2446, 0.0
  %v2471 = vmax.f32 %v2449, 0.0
  %v2472 = vmax.f32 %v2454, 0.0
  %v2473 = vmax.f32 %v2457, 0.0
  %v2474 = vmax.f32 %v2462, 0.0
  %v2475 = vmax.f32 %v2465, 0.0
  %v2476 = vadd.f32 %v2292, %v2468
  %v2477 = vadd.f32 %v2293, %v2469
  %v2478 = vadd.f32 %v2294, %v2470
  %v2479 = vadd.f32 %v2295, %v2471
  %v2480 = vadd.f32 %v2296, %v2472
  %v2481 = vadd.f32 %v2297, %v2473
  %v2482 = vadd.f32 %v2298, %v2474
  %v2483 = vadd.f32 %v2299, %v2475
  %v2484 = vmul.f32 %v2476, 0.5
  %v2485 = vmul.f32 %v2477, 0.5
  %v2486 = vmul.f32 %v2478, 0.5
  %v2487 = vmul.f32 %v2479, 0.5
  %v2488 = vmul.f32 %v2480, 0.5
  %v2489 = vmul.f32 %v2481, 0.5
  %v2490 = vmul.f32 %v2482, 0.5
  %v2491 = vmul.f32 %v2483, 0.5
  %s2492 = sshll.u32 %s71, 4
  %2493 = dma.done %s58, %s2492
  %v2494 = vld [vmem:[%s57] sm:$0xff]
  %v2495 = vld [vmem:[%s57 + $0x8] sm:$0xff]
  %v2496 = vld [vmem:[%s57 + $0x10] sm:$0xff]
  %v2497 = vld [vmem:[%s57 + $0x18] sm:$0xff]
  %v2498 = vld [vmem:[%s57 + $0x20] sm:$0xff]
  %v2499 = vld [vmem:[%s57 + $0x28] sm:$0xff]
  %v2500 = vld [vmem:[%s57 + $0x30] sm:$0xff]
  %v2501 = vld [vmem:[%s57 + $0x38] sm:$0xff]
  %s2502 = scalar_lea.vmem %s4, 13
  %v2503 = vld [vmem:[%s2502] sm:$0x1]
  %v2504 = vpack.c.bf16 %v2485, %v2484
  %v2505 = vpack.c.bf16 %v2487, %v2486
  %v2506 = vpack.c.bf16 %v2489, %v2488
  %v2507 = vpack.c.bf16 %v2491, %v2490
  %2508 = vmatprep.subr.bf16.mxu0 0
  %2509 = vmatpush1.bf16.msra.mxu0 %v2494
  %2510 = vmatprep.subr.bf16.mxu0 0
  %2511 = vmatpush1.bf16.msra.mxu0 %v2495
  %2512 = vmatprep.subr.bf16.mxu0 0
  %2513 = vmatpush1.bf16.msra.mxu0 %v2496
  %2514 = vmatprep.subr.bf16.mxu0 0
  %2515 = vmatpush1.bf16.msra.mxu0 %v2497
  %2516 = vmatprep.subr.bf16.mxu0 0
  %2517 = vmatpush1.bf16.msra.mxu0 %v2498
  %2518 = vmatprep.subr.bf16.mxu0 0
  %2519 = vmatpush1.bf16.msra.mxu0 %v2499
  %2520 = vmatprep.subr.bf16.mxu0 0
  %2521 = vmatpush1.bf16.msra.mxu0 %v2500
  %2522 = vmatprep.subr.bf16.mxu0 0
  %2523 = vmatpush1.bf16.msra.mxu0 %v2501
  %2524 = vmatprep.subr.bf16.mxu0 0
  %2525 = vmatpush1.bf16.msra.mxu0 0
  %2526 = vmatprep.subr.bf16.mxu0 0
  %2527 = vmatpush1.bf16.msra.mxu0 0
  %2528 = vmatprep.subr.bf16.mxu0 0
  %2529 = vmatpush1.bf16.msra.mxu0 0
  %2530 = vmatprep.subr.bf16.mxu0 0
  %2531 = vmatpush1.bf16.msra.mxu0 0
  %2532 = vmatprep.subr.bf16.mxu0 0
  %2533 = vmatpush1.bf16.msra.mxu0 0
  %2534 = vmatprep.subr.bf16.mxu0 0
  %2535 = vmatpush1.bf16.msra.mxu0 0
  %2536 = vmatprep.subr.bf16.mxu0 0
  %2537 = vmatpush1.bf16.msra.mxu0 0
  %2538 = vmatprep.subr.bf16.mxu0 0
  %2539 = vmatpush1.bf16.msra.mxu0 0
  %2540 = vmatprep.mubr.bf16.mxu0 0
  %2541 = vmatmul.mubr.bf16.gmra.mrb[0].mxu0 %v2504
  %v2542 = vpop.f32.mrb[0].mxu0
  %v2543 = vadd.f32 0.0, %v2542
  %v2544 = vpop.f32.mrb[0].mxu0
  %v2545 = vpop.f32.mrb[0].mxu0
  %v2546 = vadd.f32 0.0, %v2545
  %v2547 = vpop.f32.mrb[0].mxu0
  %2548 = vmatprep.mubr.bf16.mxu0 0
  %2549 = vmatmul.mubr.bf16.gmra.mrb[0].mxu0 %v2505
  %v2550 = vpop.f32.mrb[0].mxu0
  %v2551 = vadd.f32 0.0, %v2550
  %v2552 = vpop.f32.mrb[0].mxu0
  %v2553 = vpop.f32.mrb[0].mxu0
  %v2554 = vadd.f32 0.0, %v2553
  %v2555 = vpop.f32.mrb[0].mxu0
  %2556 = vmatprep.mubr.bf16.mxu0 0
  %2557 = vmatmul.mubr.bf16.gmra.mrb[0].mxu0 %v2506
  %v2558 = vpop.f32.mrb[0].mxu0
  %v2559 = vadd.f32 0.0, %v2558
  %v2560 = vpop.f32.mrb[0].mxu0
  %v2561 = vpop.f32.mrb[0].mxu0
  %v2562 = vadd.f32 0.0, %v2561
  %v2563 = vpop.f32.mrb[0].mxu0
  %2564 = vmatprep.mubr.bf16.mxu0 0
  %2565 = vmatmul.mubr.bf16.gmra.mrb[0].mxu0 %v2507
  %v2566 = vpop.f32.mrb[0].mxu0
  %v2567 = vadd.f32 0.0, %v2566
  %v2568 = vpop.f32.mrb[0].mxu0
  %v2569 = vpop.f32.mrb[0].mxu0
  %v2570 = vadd.f32 0.0, %v2569
  %v2571 = vpop.f32.mrb[0].mxu0
  %2572 = vdwg.mxu0
  %v2573 = vpack.c.bf16 %v2546, %v2543
  %v2574 = vpack.c.bf16 %v2554, %v2551
  %v2575 = vpack.c.bf16 %v2562, %v2559
  %v2576 = vpack.c.bf16 %v2570, %v2567
  %v2578 = vlaneseq
  %v2579 = vshrl.u32 %v2578, 7
  %v2580 = vsub.s32 0, %v2579
  %v2581 = vrot.slane %v2503, %v2580
  %2583 = vmatprep.subr.bf16.mxu0 0
  %2584 = vmatpush1.bf16.msra.mxu0 %v2573
  %2585 = vmatprep.subr.bf16.mxu0 0
  %2586 = vmatpush1.bf16.msra.mxu0 %v2574
  %2587 = vmatprep.subr.bf16.mxu0 0
  %2588 = vmatpush1.bf16.msra.mxu0 %v2575
  %2589 = vmatprep.subr.bf16.mxu0 0
  %2590 = vmatpush1.bf16.msra.mxu0 %v2576
  %2591 = vmatprep.subr.bf16.mxu0 0
  %2592 = vmatpush1.bf16.msra.mxu0 0
  %2593 = vmatprep.subr.bf16.mxu0 0
  %2594 = vmatpush1.bf16.msra.mxu0 0
  %2595 = vmatprep.subr.bf16.mxu0 0
  %2596 = vmatpush1.bf16.msra.mxu0 0
  %2597 = vmatprep.subr.bf16.mxu0 0
  %2598 = vmatpush1.bf16.msra.mxu0 0
  %2599 = vmatprep.subr.bf16.mxu0 0
  %2600 = vmatpush1.bf16.msra.mxu0 0
  %2601 = vmatprep.subr.bf16.mxu0 0
  %2602 = vmatpush1.bf16.msra.mxu0 0
  %2603 = vmatprep.subr.bf16.mxu0 0
  %2604 = vmatpush1.bf16.msra.mxu0 0
  %2605 = vmatprep.subr.bf16.mxu0 0
  %2606 = vmatpush1.bf16.msra.mxu0 0
  %2607 = vmatprep.subr.bf16.mxu0 0
  %2608 = vmatpush1.bf16.msra.mxu0 0
  %2609 = vmatprep.subr.bf16.mxu0 0
  %2610 = vmatpush1.bf16.msra.mxu0 0
  %2611 = vmatprep.subr.bf16.mxu0 0
  %2612 = vmatpush1.bf16.msra.mxu0 0
  %2613 = vmatprep.subr.bf16.mxu0 0
  %2614 = vmatpush1.bf16.msra.mxu0 0
  %2615 = vmatprep.mubr.bf16.mxu0 0
  %2616 = vmatmul.mubr.bf16.gmra.mrb[0].mxu0 %v184
  %v2617 = vpop.f32.mrb[0].mxu0
  %v2618 = vadd.f32 %v2581, %v2617
  %v2619 = vpop.f32.mrb[0].mxu0
  %v2620 = vpop.f32.mrb[0].mxu0
  %v2621 = vadd.f32 %v2581, %v2620
  %v2622 = vpop.f32.mrb[0].mxu0
  %2623 = vmatprep.mubr.bf16.mxu0 0
  %2624 = vmatmul.mubr.bf16.gmra.mrb[0].mxu0 %v187
  %v2625 = vpop.f32.mrb[0].mxu0
  %v2626 = vadd.f32 %v2581, %v2625
  %v2627 = vpop.f32.mrb[0].mxu0
  %v2628 = vpop.f32.mrb[0].mxu0
  %v2629 = vadd.f32 %v2581, %v2628
  %v2630 = vpop.f32.mrb[0].mxu0
  %2631 = vmatprep.mubr.bf16.mxu0 0
  %2632 = vmatmul.mubr.bf16.gmra.mrb[0].mxu0 %v190
  %v2633 = vpop.f32.mrb[0].mxu0
  %v2634 = vadd.f32 %v2581, %v2633
  %v2635 = vpop.f32.mrb[0].mxu0
  %v2636 = vpop.f32.mrb[0].mxu0
  %v2637 = vadd.f32 %v2581, %v2636
  %v2638 = vpop.f32.mrb[0].mxu0
  %2639 = vmatprep.mubr.bf16.mxu0 0
  %2640 = vmatmul.mubr.bf16.gmra.mrb[0].mxu0 %v193
  %v2641 = vpop.f32.mrb[0].mxu0
  %v2642 = vadd.f32 %v2581, %v2641
  %v2643 = vpop.f32.mrb[0].mxu0
  %v2644 = vpop.f32.mrb[0].mxu0
  %v2645 = vadd.f32 %v2581, %v2644
  %v2646 = vpop.f32.mrb[0].mxu0
  %2647 = vdwg.mxu0
  %2648 = vst [vmem:[%s5] sm:$0xff] %v2618
  %2649 = vst [vmem:[%s5 + $0x8] sm:$0xff] %v2621
  %2650 = vst [vmem:[%s5 + $0x10] sm:$0xff] %v2626
  %2651 = vst [vmem:[%s5 + $0x18] sm:$0xff] %v2629
  %2652 = vst [vmem:[%s5 + $0x20] sm:$0xff] %v2634
  %2653 = vst [vmem:[%s5 + $0x28] sm:$0xff] %v2637
  %2654 = vst [vmem:[%s5 + $0x30] sm:$0xff] %v2642
  %2655 = vst [vmem:[%s5 + $0x38] sm:$0xff] %v2645
  %2656 = vst [vmem:[%s6] sm:$0xff] %v2484
  %2657 = vst [vmem:[%s6 + $0x8] sm:$0xff] %v2485
  %2658 = vst [vmem:[%s6 + $0x10] sm:$0xff] %v2486
  %2659 = vst [vmem:[%s6 + $0x18] sm:$0xff] %v2487
  %2660 = vst [vmem:[%s6 + $0x20] sm:$0xff] %v2488
  %2661 = vst [vmem:[%s6 + $0x28] sm:$0xff] %v2489
  %2662 = vst [vmem:[%s6 + $0x30] sm:$0xff] %v2490
  %2663 = vst [vmem:[%s6 + $0x38] sm:$0xff] %v2491
  // Predicated region
  $region74: #{graph_resnet_forward.1} parent=0 // pred_check
    _
  $region75: #{graph_resnet_forward.1} parent=0 // pred_check_branch
    %2665 = sbr.rel (0) target = $region77
  $region76: #{graph_resnet_forward.1} parent=0 // pred_region
    _
  $region77: #{graph_resnet_forward.1} parent=0 // pred_fallthru
    _
  // Predicated region
  $region78: #{graph_resnet_forward.1} parent=0 // pred_check
    _
  $region79: #{graph_resnet_forward.1} parent=0 // pred_check_branch
    %2667 = sbr.rel (0) target = $region81
  $region80: #{graph_resnet_forward.1} parent=0 // pred_region
    _
  $region81: #{graph_resnet_forward.1} parent=0 // pred_fallthru
    _
  // Predicated region
  $region82: #{graph_resnet_forward.1} parent=0 // pred_check
    _
  $region83: #{graph_resnet_forward.1} parent=0 // pred_check_branch
    %2669 = sbr.rel (0) target = $region85
  $region84: #{graph_resnet_forward.1} parent=0 // pred_region
    _
  $region85: #{graph_resnet_forward.1} parent=0 // pred_fallthru
    _
  // Predicated region
  $region86: #{graph_resnet_forward.1} parent=0 // pred_check
    _
  $region87: #{graph_resnet_forward.1} parent=0 // pred_check_branch
    %2671 = sbr.rel (0) target = $region89
  $region88: #{graph_resnet_forward.1} parent=0 // pred_region
    _
  $region89: #{graph_resnet_forward.1} parent=0 // pred_fallthru
    _
  %2672 = vsyncmov [#allocation3]
  %s2673 = vpop.sfrf %2672
  %p2674 = scmp.eq.s32.totalorder %s2673, 0
  %p2675 = pneg %p2674
  %2677 = shalt.err (%p2675)
  %s2678 = scalar_lea.sflag [#allocation3], 1
  %2679 = vsyncmov %s2678
  %s2680 = vpop.sfrf %2679
  %p2681 = scmp.eq.s32.totalorder %s2680, 0
  %p2682 = pneg %p2681
  %2684 = shalt.err (%p2682)

</llo_original>
